<compile_context>
chip_gen: v5e
topology: v5e:2x2
jax: 0.10.0
libtpu: 0.0.40
codegen_flags: <defaults>
</compile_context>

<pallas_src>
import functools
import math

import jax
import jax.numpy as jnp
from jax.experimental import pallas as pl
from jax.experimental.pallas import tpu as pltpu


# Order in which stacked parameter arrays are passed to the kernel.
PARAM_KEYS = (
    "b1_w1", "b1_b1", "b1_w2", "b1_b2",        # body1: conv -> (leaky) -> conv
    "b2_w1", "b2_b1", "b2_w2", "b2_b2",        # body2
    "ca1_w", "ca1_b",                          # CA_body1 fused concat conv (K = K1*K1*(C1+C2))
    "ca1_w1t", "ca1_b1", "ca1_w2", "ca1_b2",   # CA_body1 CALayer (squeeze / excite)
    "ca2_w1t", "ca2_b1", "ca2_w2", "ca2_b2",   # CA_body2 CALayer
)


# ---------------------------------------------------------------------------
# Fused Pallas kernel: the whole DPCAG for one batch element per grid step
# ---------------------------------------------------------------------------

def _stable_sigmoid(z):
    e = jnp.exp(-jnp.abs(z))
    return jnp.where(z >= 0.0, 1.0 / (1.0 + e), e / (1.0 + e))


def _dpcag_kernel(mask_ref, x0_ref, x1_ref, *rest,
                  nb, H, W, Wp, Lpad, K1, K2, C1, C2):
    n_params = len(PARAM_KEYS)
    p_refs = rest[:n_params]
    y0_ref, y1_ref = rest[n_params], rest[n_params + 1]
    lhs_ref = rest[n_params + 2]                  # (max LHS rows, Lpad) VMEM scratch
    prm = dict(zip(PARAM_KEYS, p_refs))

    inv_hw = 1.0 / float(H * W)

    # Interior mask (1 on the HxW interior, 0 on the conv border and the lane-pad tail).
    # Broadcast ONCE to full channel height and reuse (JAX does not CSE broadcasts).
    mask_row = mask_ref[...]                      # (1, Lpad)
    mask1 = jnp.broadcast_to(mask_row, (C1, Lpad))
    mask2 = jnp.broadcast_to(mask_row, (C2, Lpad))

    def build_taps(x, ksize, row0):
        """Write the ksize*ksize lane-shifted tap views of x into lhs_ref at row0.

        x: (Cin, Lpad) activation that is zero outside the interior.  Each tap view is
        a circular lane roll; wrapped lanes only affect non-interior outputs, which are
        re-zeroed by the post-conv mask.  Returns the number of rows written.
        """
        cin = x.shape[0]
        p = ksize // 2
        t = 0
        for kh in range(ksize):
            for kw in range(ksize):
                d = (kh - p) * Wp + (kw - p)      # static lane offset of this tap
                r = row0 + t * cin
                if d == 0:
                    lhs_ref[r:r + cin, :] = x
                else:
                    lhs_ref[r:r + cin, :] = pltpu.roll(x, shift=(-d) % Lpad, axis=1)
                t += 1
        return ksize * ksize * cin

    def conv(x, w2d, b, ksize, mask_c):
        """KxK conv as ONE matmul with contraction K = ksize*ksize*Cin."""
        rows = build_taps(x, ksize, 0)
        y = jnp.dot(w2d, lhs_ref[0:rows, :], preferred_element_type=jnp.float32)
        # bias add + re-zero everything outside the interior (this keeps the activation
        # usable as the next conv's zero padding and keeps the CA avg-pool exact).
        return (y + b) * mask_c

    def conv_cat(xa, xb, w2d, b, ksize, mask_c):
        """conv(cat([xa, xb], channel)) as ONE matmul (K = ksize*ksize*(Ca+Cb))."""
        rows_a = build_taps(xa, ksize, 0)
        rows_b = build_taps(xb, ksize, rows_a)
        y = jnp.dot(w2d, lhs_ref[0:rows_a + rows_b, :],
                    preferred_element_type=jnp.float32)
        return (y + b) * mask_c

    def leaky(x):
        return jnp.where(x >= 0.0, x, 0.1 * x)

    def ca(x, w1t, b1, w2, b2):
        """CALayer on the VPU: avg-pool -> 1x1 -> ReLU -> 1x1 -> sigmoid -> scale.

        x: (C, Lpad) zero outside interior; w1t: (C, Cr); b1: (1, Cr); w2: (C, Cr);
        b2: (C, 1).
        """
        mean = jnp.sum(x, axis=1, keepdims=True) * inv_hw                        # (C, 1)
        h = jnp.maximum(jnp.sum(w1t * mean, axis=0, keepdims=True) + b1, 0.0)    # (1, Cr)
        a = _stable_sigmoid(jnp.sum(w2 * h, axis=1, keepdims=True) + b2)         # (C, 1)
        return x * a

    y0 = x0_ref[0].astype(jnp.float32)            # (C1, Lpad), zero outside interior
    y1 = x1_ref[0].astype(jnp.float32)            # (C2, Lpad)

    # nb is small (2) -> full unroll.  For large nb switch to lax.fori_loop carrying
    # (y0, y1) and dynamic indexing of the stacked params to bound register pressure.
    for blk in range(nb):
        def g(key, _b=blk):
            return prm[key][_b].astype(jnp.float32)

        # body1 / body2: conv -> LeakyReLU(0.1) -> conv
        f1 = conv(y0, g("b1_w1"), g("b1_b1"), K1, mask1)
        f1 = conv(leaky(f1), g("b1_w2"), g("b1_b2"), K1, mask1)
        f2 = conv(y1, g("b2_w1"), g("b2_b1"), K2, mask2)
        f2 = conv(leaky(f2), g("b2_w2"), g("b2_b2"), K2, mask2)

        # CA_body1: LeakyReLU -> conv(cat([f1, f2], channel)) -> CALayer
        c1 = conv_cat(leaky(f1), leaky(f2), g("ca1_w"), g("ca1_b"), K1, mask1)
        c1 = ca(c1, g("ca1_w1t"), g("ca1_b1"), g("ca1_w2"), g("ca1_b2"))

        # CA_body2: CALayer(f2)
        c2 = ca(f2, g("ca2_w1t"), g("ca2_b1"), g("ca2_w2"), g("ca2_b2"))

        y0 = y0 + c1
        y1 = y1 + c2

    # DPCAG epilogue: in PyTorch, x is a list mutated in place by every DPCAB, so
    # `y = self.body(x)` aliases x and `y[0] = x[0] + y[0]` doubles the accumulated value.
    y0_ref[0] = (y0 + y0).astype(y0_ref.dtype)
    y1_ref[0] = (y1 + y1).astype(y1_ref.dtype)


# ---------------------------------------------------------------------------
# Wrapper: one pallas_call for the whole DPCAG (NCHW in, NCHW out)
# ---------------------------------------------------------------------------

def dpcag_forward(kparams, x0_nchw, x1_nchw, *, k1, k2):
    """x0/x1: NCHW float32.  kparams: dict of stacked (nb, ...) kernel-layout params."""
    N, C1, H, W = x0_nchw.shape
    _, C2, _, _ = x1_nchw.shape
    nb = kparams[PARAM_KEYS[0]].shape[0]
    P = max(k1 // 2, k2 // 2)
    Hp, Wp = H + 2 * P, W + 2 * P
    L = Hp * Wp
    Lpad = ((L + 127) // 128) * 128              # lane-dense stores: multiple of 128

    def pad_to_tile(x, c):
        xp = jnp.pad(x, ((0, 0), (0, 0), (P, P), (P, P))).reshape(N, c, L)
        return jnp.pad(xp, ((0, 0), (0, 0), (0, Lpad - L)))

    # Zero-pad once; the kernel keeps this (C, Lpad) layout resident the whole time.
    x0p = pad_to_tile(x0_nchw, C1)
    x1p = pad_to_tile(x1_nchw, C2)

    hh = jnp.arange(Hp)[:, None]
    ww = jnp.arange(Wp)[None, :]
    interior = (hh >= P) & (hh < P + H) & (ww >= P) & (ww < P + W)
    mask = jnp.pad(interior.astype(jnp.float32).reshape(1, L),
                   ((0, 0), (0, Lpad - L)))

    # One scratch holds the largest stacked im2col LHS used in a block.
    lhs_rows = max(k1 * k1 * (C1 + C2), k1 * k1 * C1, k2 * k2 * C2)

    kernel = functools.partial(_dpcag_kernel, nb=nb, H=H, W=W, Wp=Wp, Lpad=Lpad,
                               K1=k1, K2=k2, C1=C1, C2=C2)

    param_arrays = [kparams[k] for k in PARAM_KEYS]

    def _const_map(ndim):
        return lambda n: (0,) * ndim

    param_specs = [pl.BlockSpec(a.shape, _const_map(a.ndim)) for a in param_arrays]

    y0p, y1p = pl.pallas_call(
        kernel,
        out_shape=(jax.ShapeDtypeStruct((N, C1, Lpad), x0_nchw.dtype),
                   jax.ShapeDtypeStruct((N, C2, Lpad), x1_nchw.dtype)),
        grid=(N,),
        in_specs=[
            pl.BlockSpec((1, Lpad), lambda n: (0, 0)),          # interior mask (shared)
            pl.BlockSpec((1, C1, Lpad), lambda n: (n, 0, 0)),   # x0, one batch elem/step
            pl.BlockSpec((1, C2, Lpad), lambda n: (n, 0, 0)),   # x1
        ] + param_specs,
        out_specs=(pl.BlockSpec((1, C1, Lpad), lambda n: (n, 0, 0)),
                   pl.BlockSpec((1, C2, Lpad), lambda n: (n, 0, 0))),
        scratch_shapes=[pltpu.VMEM((lhs_rows, Lpad), jnp.float32)],
        # Padded inputs are dead after the call -> reuse their HBM for the outputs.
        input_output_aliases={1: 0, 2: 1},
        compiler_params=pltpu.CompilerParams(
            dimension_semantics=("parallel",)),   # N>=2 keeps both v7x TCs busy
        # TODO(synk): at production H/W/C set vmem_limit_bytes and add an H-row halo
        # tile as a second "parallel" grid axis (v7x 64 MiB VMEM, N==1 case).
    )(mask, x0p, x1p, *param_arrays)

    # Single crop at the very end (the only XLA-side slice in the whole forward).
    y0 = y0p[:, :, :L].reshape(N, C1, Hp, Wp)[:, :, P:P + H, P:P + W]
    y1 = y1p[:, :, :L].reshape(N, C2, Hp, Wp)[:, :, P:P + H, P:P + W]
    return y0, y1


# ---------------------------------------------------------------------------
# Parameter init (PyTorch OIHW layout) and conversion to the kernel layout
# ---------------------------------------------------------------------------

def _init_conv(key, cout, cin, kh, kw):
    kw_key, kb_key = jax.random.split(key)
    bound = 1.0 / math.sqrt(kh * kw * cin)
    w = jax.random.uniform(kw_key, (cout, cin, kh, kw), jnp.float32, -bound, bound)
    b = jax.random.uniform(kb_key, (cout,), jnp.float32, -bound, bound)
    return w, b


def init_dpcag_raw(key, nf1, nf2, k1, k2, nb, reduction=4):
    """Per-block parameters in PyTorch (OIHW) layout, shapes follow DPCAB.__init__."""
    blocks = []
    for bkey in jax.random.split(key, nb):
        keys = jax.random.split(bkey, 9)
        p = {}
        p["b1_w1"], p["b1_b1"] = _init_conv(keys[0], nf1, nf1, k1, k1)
        p["b1_w2"], p["b1_b2"] = _init_conv(keys[1], nf1, nf1, k1, k1)
        p["b2_w1"], p["b2_b1"] = _init_conv(keys[2], nf2, nf2, k2, k2)
        p["b2_w2"], p["b2_b2"] = _init_conv(keys[3], nf2, nf2, k2, k2)
        p["ca1_w"], p["ca1_b"] = _init_conv(keys[4], nf1, nf1 + nf2, k1, k1)
        w, b = _init_conv(keys[5], nf1 // reduction, nf1, 1, 1)
        p["ca1_du_w1"], p["ca1_du_b1"] = w.reshape(nf1 // reduction, nf1), b
        w, b = _init_conv(keys[6], nf1, nf1 // reduction, 1, 1)
        p["ca1_du_w2"], p["ca1_du_b2"] = w.reshape(nf1, nf1 // reduction), b
        w, b = _init_conv(keys[7], nf2 // reduction, nf2, 1, 1)
        p["ca2_du_w1"], p["ca2_du_b1"] = w.reshape(nf2 // reduction, nf2), b
        w, b = _init_conv(keys[8], nf2, nf2 // reduction, 1, 1)
        p["ca2_du_w2"], p["ca2_du_b2"] = w.reshape(nf2, nf2 // reduction), b
        blocks.append(p)
    return blocks


def _conv_w_to_kernel(w):
    # (Cout, Cin, KH, KW) -> (Cout, KH*KW*Cin), row order (kh*KW + kw)*Cin + cin,
    # matching the in-kernel tap-stacking order.
    cout, cin, kh, kw = w.shape
    return jnp.transpose(w, (0, 2, 3, 1)).reshape(cout, kh * kw * cin)


def prep_params(raw_blocks, nf1, nf2):
    """Convert PyTorch-layout per-block params to the stacked kernel layout."""
    per_block = []
    for p in raw_blocks:
        # Fuse the concat conv into ONE matmul weight: columns [taps of f1 | taps of f2].
        ca1_w_fused = jnp.concatenate(
            [_conv_w_to_kernel(p["ca1_w"][:, :nf1]),
             _conv_w_to_kernel(p["ca1_w"][:, nf1:])], axis=1)
        kp = {
            "b1_w1": _conv_w_to_kernel(p["b1_w1"]), "b1_b1": p["b1_b1"][:, None],
            "b1_w2": _conv_w_to_kernel(p["b1_w2"]), "b1_b2": p["b1_b2"][:, None],
            "b2_w1": _conv_w_to_kernel(p["b2_w1"]), "b2_b1": p["b2_b1"][:, None],
            "b2_w2": _conv_w_to_kernel(p["b2_w2"]), "b2_b2": p["b2_b2"][:, None],
            "ca1_w": ca1_w_fused,
            "ca1_b": p["ca1_b"][:, None],
            "ca1_w1t": p["ca1_du_w1"].T,           # (C1, C1//r)
            "ca1_b1": p["ca1_du_b1"][None, :],     # (1, C1//r)
            "ca1_w2": p["ca1_du_w2"],              # (C1, C1//r)
            "ca1_b2": p["ca1_du_b2"][:, None],     # (C1, 1)
            "ca2_w1t": p["ca2_du_w1"].T,
            "ca2_b1": p["ca2_du_b1"][None, :],
            "ca2_w2": p["ca2_du_w2"],
            "ca2_b2": p["ca2_du_b2"][:, None],
        }
        per_block.append(kp)
    return {k: jnp.stack([bp[k] for bp in per_block], axis=0) for k in PARAM_KEYS}


# ---------------------------------------------------------------------------
# Pure-JAX reference (mirrors the PyTorch module) for correctness validation
# ---------------------------------------------------------------------------

def _conv_ref(x, w, b, p):
    y = jax.lax.conv_general_dilated(
        x, w, window_strides=(1, 1), padding=[(p, p), (p, p)],
        dimension_numbers=("NCHW", "OIHW", "NCHW"),
        precision=jax.lax.Precision.HIGHEST)
    return y + b[None, :, None, None]


def _leaky_ref(x):
    return jnp.where(x >= 0.0, x, 0.1 * x)


def _ca_ref(x, w1, b1, w2, b2):
    m = jnp.mean(x, axis=(2, 3))                                                   # (N, C)
    h = jnp.maximum(jnp.sum(m[:, None, :] * w1[None, :, :], axis=-1) + b1, 0.0)    # (N, Cr)
    a = jax.nn.sigmoid(jnp.sum(h[:, None, :] * w2[None, :, :], axis=-1) + b2)      # (N, C)
    return x * a[:, :, None, None]


def dpcag_reference(raw_blocks, x0, x1, k1, k2):
    y0, y1 = x0, x1
    for p in raw_blocks:
        f1 = _conv_ref(y0, p["b1_w1"], p["b1_b1"], k1 // 2)
        f1 = _conv_ref(_leaky_ref(f1), p["b1_w2"], p["b1_b2"], k1 // 2)
        f2 = _conv_ref(y1, p["b2_w1"], p["b2_b1"], k2 // 2)
        f2 = _conv_ref(_leaky_ref(f2), p["b2_w2"], p["b2_b2"], k2 // 2)
        cat = jnp.concatenate([f1, f2], axis=1)
        c1 = _conv_ref(_leaky_ref(cat), p["ca1_w"], p["ca1_b"], k1 // 2)
        c1 = _ca_ref(c1, p["ca1_du_w1"], p["ca1_du_b1"], p["ca1_du_w2"], p["ca1_du_b2"])
        c2 = _ca_ref(f2, p["ca2_du_w1"], p["ca2_du_b1"], p["ca2_du_w2"], p["ca2_du_b2"])
        y0 = y0 + c1
        y1 = y1 + c2
    # PyTorch list-aliasing: y is x, so y[0] = x[0] + y[0] doubles the value.
    return y0 + y0, y1 + y1


# ---------------------------------------------------------------------------

if __name__ == "__main__":
    nf1, nf2, k1, k2, nb = 8, 8, 3, 3, 2
    N, H, W = 2, 16, 16

    key = jax.random.PRNGKey(0)
    kx0, kx1, kp = jax.random.split(key, 3)
    # PyTorch-convention NCHW inputs (the kernel layout is native NCHW — no transposes).
    x0 = jax.random.normal(kx0, (N, nf1, H, W), jnp.float32)
    x1 = jax.random.normal(kx1, (N, nf2, H, W), jnp.float32)

    raw_params = init_dpcag_raw(kp, nf1, nf2, k1, k2, nb)
    kparams = prep_params(raw_params, nf1, nf2)

    fwd = jax.jit(functools.partial(dpcag_forward, k1=k1, k2=k2))
    y0, y1 = fwd(kparams, x0, x1)
    jax.block_until_ready((y0, y1))
    assert y0.shape == (N, nf1, H, W) and y1.shape == (N, nf2, H, W)

    # Correctness check against the pure-JAX reference of the PyTorch module.
    # Tolerance is loose enough to cover the MXU's default (bf16-pass) contraction
    # precision vs. the Precision.HIGHEST f32 reference ("looser parity" per review).
    r0, r1 = dpcag_reference(raw_params, x0, x1, k1, k2)
    err0 = float(jnp.max(jnp.abs(y0 - r0)))
    err1 = float(jnp.max(jnp.abs(y1 - r1)))
    assert jnp.allclose(y0, r0, rtol=2e-2, atol=2e-2), f"path0 mismatch, max abs err {err0}"
    assert jnp.allclose(y1, r1, rtol=2e-2, atol=2e-2), f"path1 mismatch, max abs err {err1}"

    print("KERNEL_OK")
</pallas_src>

<mosaic_0001>
module attributes {stable_mosaic.version = 11 : i64} {
  func.func @_dpcag_kernel(%arg0: i32, %arg1: memref<1x384xf32, #tpu.memory_space<vmem>>, %arg2: memref<1x8x384xf32, #tpu.memory_space<vmem>>, %arg3: memref<1x8x384xf32, #tpu.memory_space<vmem>>, %arg4: memref<2x8x72xf32, #tpu.memory_space<vmem>>, %arg5: memref<2x8x1xf32, #tpu.memory_space<vmem>>, %arg6: memref<2x8x72xf32, #tpu.memory_space<vmem>>, %arg7: memref<2x8x1xf32, #tpu.memory_space<vmem>>, %arg8: memref<2x8x72xf32, #tpu.memory_space<vmem>>, %arg9: memref<2x8x1xf32, #tpu.memory_space<vmem>>, %arg10: memref<2x8x72xf32, #tpu.memory_space<vmem>>, %arg11: memref<2x8x1xf32, #tpu.memory_space<vmem>>, %arg12: memref<2x8x144xf32, #tpu.memory_space<vmem>>, %arg13: memref<2x8x1xf32, #tpu.memory_space<vmem>>, %arg14: memref<2x8x2xf32, #tpu.memory_space<vmem>>, %arg15: memref<2x1x2xf32, #tpu.memory_space<vmem>>, %arg16: memref<2x8x2xf32, #tpu.memory_space<vmem>>, %arg17: memref<2x8x1xf32, #tpu.memory_space<vmem>>, %arg18: memref<2x8x2xf32, #tpu.memory_space<vmem>>, %arg19: memref<2x1x2xf32, #tpu.memory_space<vmem>>, %arg20: memref<2x8x2xf32, #tpu.memory_space<vmem>>, %arg21: memref<2x8x1xf32, #tpu.memory_space<vmem>>, %arg22: memref<1x8x384xf32, #tpu.memory_space<vmem>>, %arg23: memref<1x8x384xf32, #tpu.memory_space<vmem>>, %arg24: memref<144x384xf32, #tpu.memory_space<vmem>>) attributes {dimension_semantics = [#tpu.dimension_semantics<parallel>], iteration_bounds = array<i64: 2>, scalar_prefetch = 0 : i64, scratch_operands = 1 : i64, tpu.core_type = #tpu.core_type<tc>, window_params = [{pipeline_mode = #tpu.pipeline_mode<synchronous>, transform_indices = @transform_0, window_bounds = array<i64: 1, 384>}, {transform_indices = @transform_1, window_bounds = array<i64: 1, 8, 384>}, {transform_indices = @transform_2, window_bounds = array<i64: 1, 8, 384>}, {pipeline_mode = #tpu.pipeline_mode<synchronous>, transform_indices = @transform_3, window_bounds = array<i64: 2, 8, 72>}, {pipeline_mode = #tpu.pipeline_mode<synchronous>, transform_indices = @transform_4, window_bounds = array<i64: 2, 8, 1>}, {pipeline_mode = #tpu.pipeline_mode<synchronous>, transform_indices = @transform_5, window_bounds = array<i64: 2, 8, 72>}, {pipeline_mode = #tpu.pipeline_mode<synchronous>, transform_indices = @transform_6, window_bounds = array<i64: 2, 8, 1>}, {pipeline_mode = #tpu.pipeline_mode<synchronous>, transform_indices = @transform_7, window_bounds = array<i64: 2, 8, 72>}, {pipeline_mode = #tpu.pipeline_mode<synchronous>, transform_indices = @transform_8, window_bounds = array<i64: 2, 8, 1>}, {pipeline_mode = #tpu.pipeline_mode<synchronous>, transform_indices = @transform_9, window_bounds = array<i64: 2, 8, 72>}, {pipeline_mode = #tpu.pipeline_mode<synchronous>, transform_indices = @transform_10, window_bounds = array<i64: 2, 8, 1>}, {pipeline_mode = #tpu.pipeline_mode<synchronous>, transform_indices = @transform_11, window_bounds = array<i64: 2, 8, 144>}, {pipeline_mode = #tpu.pipeline_mode<synchronous>, transform_indices = @transform_12, window_bounds = array<i64: 2, 8, 1>}, {pipeline_mode = #tpu.pipeline_mode<synchronous>, transform_indices = @transform_13, window_bounds = array<i64: 2, 8, 2>}, {pipeline_mode = #tpu.pipeline_mode<synchronous>, transform_indices = @transform_14, window_bounds = array<i64: 2, 1, 2>}, {pipeline_mode = #tpu.pipeline_mode<synchronous>, transform_indices = @transform_15, window_bounds = array<i64: 2, 8, 2>}, {pipeline_mode = #tpu.pipeline_mode<synchronous>, transform_indices = @transform_16, window_bounds = array<i64: 2, 8, 1>}, {pipeline_mode = #tpu.pipeline_mode<synchronous>, transform_indices = @transform_17, window_bounds = array<i64: 2, 8, 2>}, {pipeline_mode = #tpu.pipeline_mode<synchronous>, transform_indices = @transform_18, window_bounds = array<i64: 2, 1, 2>}, {pipeline_mode = #tpu.pipeline_mode<synchronous>, transform_indices = @transform_19, window_bounds = array<i64: 2, 8, 2>}, {pipeline_mode = #tpu.pipeline_mode<synchronous>, transform_indices = @transform_20, window_bounds = array<i64: 2, 8, 1>}, {transform_indices = @transform_21, window_bounds = array<i64: 1, 8, 384>}, {transform_indices = @transform_22, window_bounds = array<i64: 1, 8, 384>}]} {
    %c0 = arith.constant 0 : index
    %c0_0 = arith.constant 0 : index
    %0 = vector.load %arg1[%c0, %c0_0] : memref<1x384xf32, #tpu.memory_space<vmem>>, vector<1x384xf32>
    %1 = vector.shape_cast %0 : vector<1x384xf32> to vector<1x384xf32>
    %2 = vector.broadcast %1 : vector<1x384xf32> to vector<8x384xf32>
    %3 = vector.shape_cast %0 : vector<1x384xf32> to vector<1x384xf32>
    %4 = vector.broadcast %3 : vector<1x384xf32> to vector<8x384xf32>
    %c0_1 = arith.constant 0 : index
    %c0_2 = arith.constant 0 : index
    %c0_3 = arith.constant 0 : index
    %5 = vector.load %arg2[%c0_1, %c0_2, %c0_3] : memref<1x8x384xf32, #tpu.memory_space<vmem>>, vector<1x8x384xf32>
    %6 = vector.shape_cast %5 : vector<1x8x384xf32> to vector<8x384xf32>
    %c0_4 = arith.constant 0 : index
    %c0_5 = arith.constant 0 : index
    %c0_6 = arith.constant 0 : index
    %7 = vector.load %arg3[%c0_4, %c0_5, %c0_6] : memref<1x8x384xf32, #tpu.memory_space<vmem>>, vector<1x8x384xf32>
    %8 = vector.shape_cast %7 : vector<1x8x384xf32> to vector<8x384xf32>
    %c0_7 = arith.constant 0 : index
    %c0_8 = arith.constant 0 : index
    %c0_9 = arith.constant 0 : index
    %9 = vector.load %arg4[%c0_7, %c0_8, %c0_9] : memref<2x8x72xf32, #tpu.memory_space<vmem>>, vector<1x8x72xf32>
    %10 = vector.shape_cast %9 : vector<1x8x72xf32> to vector<8x72xf32>
    %c0_10 = arith.constant 0 : index
    %c0_11 = arith.constant 0 : index
    %c0_12 = arith.constant 0 : index
    %11 = vector.load %arg5[%c0_10, %c0_11, %c0_12] : memref<2x8x1xf32, #tpu.memory_space<vmem>>, vector<1x8x1xf32>
    %12 = vector.shape_cast %11 : vector<1x8x1xf32> to vector<8x1xf32>
    %c19_i32 = arith.constant 19 : i32
    %13 = tpu.dynamic_rotate %6 by %c19_i32 dim 1 : vector<8x384xf32>, i32 -> vector<8x384xf32>
    %c0_13 = arith.constant 0 : index
    %c0_14 = arith.constant 0 : index
    %14 = vector.load %arg24[%c0_13, %c0_14] : memref<144x384xf32, #tpu.memory_space<vmem>>, vector<8x384xf32>
    tpu.vector_store %arg24[%c0_13, %c0_14], %13 {strides = array<i32>} : memref<144x384xf32, #tpu.memory_space<vmem>>, vector<8x384xf32>,
    %c18_i32 = arith.constant 18 : i32
    %15 = tpu.dynamic_rotate %6 by %c18_i32 dim 1 : vector<8x384xf32>, i32 -> vector<8x384xf32>
    %c8 = arith.constant 8 : index
    %c0_15 = arith.constant 0 : index
    %16 = vector.load %arg24[%c8, %c0_15] : memref<144x384xf32, #tpu.memory_space<vmem>>, vector<8x384xf32>
    tpu.vector_store %arg24[%c8, %c0_15], %15 {strides = array<i32>} : memref<144x384xf32, #tpu.memory_space<vmem>>, vector<8x384xf32>,
    %c17_i32 = arith.constant 17 : i32
    %17 = tpu.dynamic_rotate %6 by %c17_i32 dim 1 : vector<8x384xf32>, i32 -> vector<8x384xf32>
    %c16 = arith.constant 16 : index
    %c0_16 = arith.constant 0 : index
    %18 = vector.load %arg24[%c16, %c0_16] : memref<144x384xf32, #tpu.memory_space<vmem>>, vector<8x384xf32>
    tpu.vector_store %arg24[%c16, %c0_16], %17 {strides = array<i32>} : memref<144x384xf32, #tpu.memory_space<vmem>>, vector<8x384xf32>,
    %c1_i32 = arith.constant 1 : i32
    %19 = tpu.dynamic_rotate %6 by %c1_i32 dim 1 : vector<8x384xf32>, i32 -> vector<8x384xf32>
    %c24 = arith.constant 24 : index
    %c0_17 = arith.constant 0 : index
    %20 = vector.load %arg24[%c24, %c0_17] : memref<144x384xf32, #tpu.memory_space<vmem>>, vector<8x384xf32>
    tpu.vector_store %arg24[%c24, %c0_17], %19 {strides = array<i32>} : memref<144x384xf32, #tpu.memory_space<vmem>>, vector<8x384xf32>,
    %c32 = arith.constant 32 : index
    %c0_18 = arith.constant 0 : index
    %21 = vector.load %arg24[%c32, %c0_18] : memref<144x384xf32, #tpu.memory_space<vmem>>, vector<8x384xf32>
    tpu.vector_store %arg24[%c32, %c0_18], %6 {strides = array<i32>} : memref<144x384xf32, #tpu.memory_space<vmem>>, vector<8x384xf32>,
    %c383_i32 = arith.constant 383 : i32
    %22 = tpu.dynamic_rotate %6 by %c383_i32 dim 1 : vector<8x384xf32>, i32 -> vector<8x384xf32>
    %c40 = arith.constant 40 : index
    %c0_19 = arith.constant 0 : index
    %23 = vector.load %arg24[%c40, %c0_19] : memref<144x384xf32, #tpu.memory_space<vmem>>, vector<8x384xf32>
    tpu.vector_store %arg24[%c40, %c0_19], %22 {strides = array<i32>} : memref<144x384xf32, #tpu.memory_space<vmem>>, vector<8x384xf32>,
    %c367_i32 = arith.constant 367 : i32
    %24 = tpu.dynamic_rotate %6 by %c367_i32 dim 1 : vector<8x384xf32>, i32 -> vector<8x384xf32>
    %c48 = arith.constant 48 : index
    %c0_20 = arith.constant 0 : index
    %25 = vector.load %arg24[%c48, %c0_20] : memref<144x384xf32, #tpu.memory_space<vmem>>, vector<8x384xf32>
    tpu.vector_store %arg24[%c48, %c0_20], %24 {strides = array<i32>} : memref<144x384xf32, #tpu.memory_space<vmem>>, vector<8x384xf32>,
    %c366_i32 = arith.constant 366 : i32
    %26 = tpu.dynamic_rotate %6 by %c366_i32 dim 1 : vector<8x384xf32>, i32 -> vector<8x384xf32>
    %c56 = arith.constant 56 : index
    %c0_21 = arith.constant 0 : index
    %27 = vector.load %arg24[%c56, %c0_21] : memref<144x384xf32, #tpu.memory_space<vmem>>, vector<8x384xf32>
    tpu.vector_store %arg24[%c56, %c0_21], %26 {strides = array<i32>} : memref<144x384xf32, #tpu.memory_space<vmem>>, vector<8x384xf32>,
    %c365_i32 = arith.constant 365 : i32
    %28 = tpu.dynamic_rotate %6 by %c365_i32 dim 1 : vector<8x384xf32>, i32 -> vector<8x384xf32>
    %c64 = arith.constant 64 : index
    %c0_22 = arith.constant 0 : index
    %29 = vector.load %arg24[%c64, %c0_22] : memref<144x384xf32, #tpu.memory_space<vmem>>, vector<8x384xf32>
    tpu.vector_store %arg24[%c64, %c0_22], %28 {strides = array<i32>} : memref<144x384xf32, #tpu.memory_space<vmem>>, vector<8x384xf32>,
    %c0_23 = arith.constant 0 : index
    %c0_24 = arith.constant 0 : index
    %30 = vector.load %arg24[%c0_23, %c0_24] : memref<144x384xf32, #tpu.memory_space<vmem>>, vector<72x384xf32>
    %cst = arith.constant dense<0.000000e+00> : vector<8x384xf32>
    %31 = tpu.matmul %10, %30, %cst {dimension_numbers = #tpu.dot_dimension_numbers<[1], [0], [0], [1], [0, 0, 1, 1], [], []>} : vector<8x72xf32>, vector<72x384xf32>, vector<8x384xf32> -> vector<8x384xf32>
    %32 = vector.broadcast %12 : vector<8x1xf32> to vector<8x384xf32>
    %33 = arith.addf %31, %32 : vector<8x384xf32>
    %34 = arith.mulf %33, %2 : vector<8x384xf32>
    %cst_25 = arith.constant 0.000000e+00 : f32
    %35 = vector.broadcast %cst_25 : f32 to vector<8x384xf32>
    %36 = arith.cmpf oge, %34, %35 : vector<8x384xf32>
    %cst_26 = arith.constant 1.000000e-01 : f32
    %37 = vector.broadcast %cst_26 : f32 to vector<8x384xf32>
    %38 = arith.mulf %37, %34 : vector<8x384xf32>
    %39 = arith.select %36, %34, %38 : vector<8x384xi1>, vector<8x384xf32>
    %c0_27 = arith.constant 0 : index
    %c0_28 = arith.constant 0 : index
    %c0_29 = arith.constant 0 : index
    %40 = vector.load %arg6[%c0_27, %c0_28, %c0_29] : memref<2x8x72xf32, #tpu.memory_space<vmem>>, vector<1x8x72xf32>
    %41 = vector.shape_cast %40 : vector<1x8x72xf32> to vector<8x72xf32>
    %c0_30 = arith.constant 0 : index
    %c0_31 = arith.constant 0 : index
    %c0_32 = arith.constant 0 : index
    %42 = vector.load %arg7[%c0_30, %c0_31, %c0_32] : memref<2x8x1xf32, #tpu.memory_space<vmem>>, vector<1x8x1xf32>
    %43 = vector.shape_cast %42 : vector<1x8x1xf32> to vector<8x1xf32>
    %c19_i32_33 = arith.constant 19 : i32
    %44 = tpu.dynamic_rotate %39 by %c19_i32_33 dim 1 : vector<8x384xf32>, i32 -> vector<8x384xf32>
    %c0_34 = arith.constant 0 : index
    %c0_35 = arith.constant 0 : index
    %45 = vector.load %arg24[%c0_34, %c0_35] : memref<144x384xf32, #tpu.memory_space<vmem>>, vector<8x384xf32>
    tpu.vector_store %arg24[%c0_34, %c0_35], %44 {strides = array<i32>} : memref<144x384xf32, #tpu.memory_space<vmem>>, vector<8x384xf32>,
    %c18_i32_36 = arith.constant 18 : i32
    %46 = tpu.dynamic_rotate %39 by %c18_i32_36 dim 1 : vector<8x384xf32>, i32 -> vector<8x384xf32>
    %c8_37 = arith.constant 8 : index
    %c0_38 = arith.constant 0 : index
    %47 = vector.load %arg24[%c8_37, %c0_38] : memref<144x384xf32, #tpu.memory_space<vmem>>, vector<8x384xf32>
    tpu.vector_store %arg24[%c8_37, %c0_38], %46 {strides = array<i32>} : memref<144x384xf32, #tpu.memory_space<vmem>>, vector<8x384xf32>,
    %c17_i32_39 = arith.constant 17 : i32
    %48 = tpu.dynamic_rotate %39 by %c17_i32_39 dim 1 : vector<8x384xf32>, i32 -> vector<8x384xf32>
    %c16_40 = arith.constant 16 : index
    %c0_41 = arith.constant 0 : index
    %49 = vector.load %arg24[%c16_40, %c0_41] : memref<144x384xf32, #tpu.memory_space<vmem>>, vector<8x384xf32>
    tpu.vector_store %arg24[%c16_40, %c0_41], %48 {strides = array<i32>} : memref<144x384xf32, #tpu.memory_space<vmem>>, vector<8x384xf32>,
    %c1_i32_42 = arith.constant 1 : i32
    %50 = tpu.dynamic_rotate %39 by %c1_i32_42 dim 1 : vector<8x384xf32>, i32 -> vector<8x384xf32>
    %c24_43 = arith.constant 24 : index
    %c0_44 = arith.constant 0 : index
    %51 = vector.load %arg24[%c24_43, %c0_44] : memref<144x384xf32, #tpu.memory_space<vmem>>, vector<8x384xf32>
    tpu.vector_store %arg24[%c24_43, %c0_44], %50 {strides = array<i32>} : memref<144x384xf32, #tpu.memory_space<vmem>>, vector<8x384xf32>,
    %c32_45 = arith.constant 32 : index
    %c0_46 = arith.constant 0 : index
    %52 = vector.load %arg24[%c32_45, %c0_46] : memref<144x384xf32, #tpu.memory_space<vmem>>, vector<8x384xf32>
    tpu.vector_store %arg24[%c32_45, %c0_46], %39 {strides = array<i32>} : memref<144x384xf32, #tpu.memory_space<vmem>>, vector<8x384xf32>,
    %c383_i32_47 = arith.constant 383 : i32
    %53 = tpu.dynamic_rotate %39 by %c383_i32_47 dim 1 : vector<8x384xf32>, i32 -> vector<8x384xf32>
    %c40_48 = arith.constant 40 : index
    %c0_49 = arith.constant 0 : index
    %54 = vector.load %arg24[%c40_48, %c0_49] : memref<144x384xf32, #tpu.memory_space<vmem>>, vector<8x384xf32>
    tpu.vector_store %arg24[%c40_48, %c0_49], %53 {strides = array<i32>} : memref<144x384xf32, #tpu.memory_space<vmem>>, vector<8x384xf32>,
    %c367_i32_50 = arith.constant 367 : i32
    %55 = tpu.dynamic_rotate %39 by %c367_i32_50 dim 1 : vector<8x384xf32>, i32 -> vector<8x384xf32>
    %c48_51 = arith.constant 48 : index
    %c0_52 = arith.constant 0 : index
    %56 = vector.load %arg24[%c48_51, %c0_52] : memref<144x384xf32, #tpu.memory_space<vmem>>, vector<8x384xf32>
    tpu.vector_store %arg24[%c48_51, %c0_52], %55 {strides = array<i32>} : memref<144x384xf32, #tpu.memory_space<vmem>>, vector<8x384xf32>,
    %c366_i32_53 = arith.constant 366 : i32
    %57 = tpu.dynamic_rotate %39 by %c366_i32_53 dim 1 : vector<8x384xf32>, i32 -> vector<8x384xf32>
    %c56_54 = arith.constant 56 : index
    %c0_55 = arith.constant 0 : index
    %58 = vector.load %arg24[%c56_54, %c0_55] : memref<144x384xf32, #tpu.memory_space<vmem>>, vector<8x384xf32>
    tpu.vector_store %arg24[%c56_54, %c0_55], %57 {strides = array<i32>} : memref<144x384xf32, #tpu.memory_space<vmem>>, vector<8x384xf32>,
    %c365_i32_56 = arith.constant 365 : i32
    %59 = tpu.dynamic_rotate %39 by %c365_i32_56 dim 1 : vector<8x384xf32>, i32 -> vector<8x384xf32>
    %c64_57 = arith.constant 64 : index
    %c0_58 = arith.constant 0 : index
    %60 = vector.load %arg24[%c64_57, %c0_58] : memref<144x384xf32, #tpu.memory_space<vmem>>, vector<8x384xf32>
    tpu.vector_store %arg24[%c64_57, %c0_58], %59 {strides = array<i32>} : memref<144x384xf32, #tpu.memory_space<vmem>>, vector<8x384xf32>,
    %c0_59 = arith.constant 0 : index
    %c0_60 = arith.constant 0 : index
    %61 = vector.load %arg24[%c0_59, %c0_60] : memref<144x384xf32, #tpu.memory_space<vmem>>, vector<72x384xf32>
    %cst_61 = arith.constant dense<0.000000e+00> : vector<8x384xf32>
    %62 = tpu.matmul %41, %61, %cst_61 {dimension_numbers = #tpu.dot_dimension_numbers<[1], [0], [0], [1], [0, 0, 1, 1], [], []>} : vector<8x72xf32>, vector<72x384xf32>, vector<8x384xf32> -> vector<8x384xf32>
    %63 = vector.broadcast %43 : vector<8x1xf32> to vector<8x384xf32>
    %64 = arith.addf %62, %63 : vector<8x384xf32>
    %65 = arith.mulf %64, %2 : vector<8x384xf32>
    %c0_62 = arith.constant 0 : index
    %c0_63 = arith.constant 0 : index
    %c0_64 = arith.constant 0 : index
    %66 = vector.load %arg8[%c0_62, %c0_63, %c0_64] : memref<2x8x72xf32, #tpu.memory_space<vmem>>, vector<1x8x72xf32>
    %67 = vector.shape_cast %66 : vector<1x8x72xf32> to vector<8x72xf32>
    %c0_65 = arith.constant 0 : index
    %c0_66 = arith.constant 0 : index
    %c0_67 = arith.constant 0 : index
    %68 = vector.load %arg9[%c0_65, %c0_66, %c0_67] : memref<2x8x1xf32, #tpu.memory_space<vmem>>, vector<1x8x1xf32>
    %69 = vector.shape_cast %68 : vector<1x8x1xf32> to vector<8x1xf32>
    %c19_i32_68 = arith.constant 19 : i32
    %70 = tpu.dynamic_rotate %8 by %c19_i32_68 dim 1 : vector<8x384xf32>, i32 -> vector<8x384xf32>
    %c0_69 = arith.constant 0 : index
    %c0_70 = arith.constant 0 : index
    %71 = vector.load %arg24[%c0_69, %c0_70] : memref<144x384xf32, #tpu.memory_space<vmem>>, vector<8x384xf32>
    tpu.vector_store %arg24[%c0_69, %c0_70], %70 {strides = array<i32>} : memref<144x384xf32, #tpu.memory_space<vmem>>, vector<8x384xf32>,
    %c18_i32_71 = arith.constant 18 : i32
    %72 = tpu.dynamic_rotate %8 by %c18_i32_71 dim 1 : vector<8x384xf32>, i32 -> vector<8x384xf32>
    %c8_72 = arith.constant 8 : index
    %c0_73 = arith.constant 0 : index
    %73 = vector.load %arg24[%c8_72, %c0_73] : memref<144x384xf32, #tpu.memory_space<vmem>>, vector<8x384xf32>
    tpu.vector_store %arg24[%c8_72, %c0_73], %72 {strides = array<i32>} : memref<144x384xf32, #tpu.memory_space<vmem>>, vector<8x384xf32>,
    %c17_i32_74 = arith.constant 17 : i32
    %74 = tpu.dynamic_rotate %8 by %c17_i32_74 dim 1 : vector<8x384xf32>, i32 -> vector<8x384xf32>
    %c16_75 = arith.constant 16 : index
    %c0_76 = arith.constant 0 : index
    %75 = vector.load %arg24[%c16_75, %c0_76] : memref<144x384xf32, #tpu.memory_space<vmem>>, vector<8x384xf32>
    tpu.vector_store %arg24[%c16_75, %c0_76], %74 {strides = array<i32>} : memref<144x384xf32, #tpu.memory_space<vmem>>, vector<8x384xf32>,
    %c1_i32_77 = arith.constant 1 : i32
    %76 = tpu.dynamic_rotate %8 by %c1_i32_77 dim 1 : vector<8x384xf32>, i32 -> vector<8x384xf32>
    %c24_78 = arith.constant 24 : index
    %c0_79 = arith.constant 0 : index
    %77 = vector.load %arg24[%c24_78, %c0_79] : memref<144x384xf32, #tpu.memory_space<vmem>>, vector<8x384xf32>
    tpu.vector_store %arg24[%c24_78, %c0_79], %76 {strides = array<i32>} : memref<144x384xf32, #tpu.memory_space<vmem>>, vector<8x384xf32>,
    %c32_80 = arith.constant 32 : index
    %c0_81 = arith.constant 0 : index
    %78 = vector.load %arg24[%c32_80, %c0_81] : memref<144x384xf32, #tpu.memory_space<vmem>>, vector<8x384xf32>
    tpu.vector_store %arg24[%c32_80, %c0_81], %8 {strides = array<i32>} : memref<144x384xf32, #tpu.memory_space<vmem>>, vector<8x384xf32>,
    %c383_i32_82 = arith.constant 383 : i32
    %79 = tpu.dynamic_rotate %8 by %c383_i32_82 dim 1 : vector<8x384xf32>, i32 -> vector<8x384xf32>
    %c40_83 = arith.constant 40 : index
    %c0_84 = arith.constant 0 : index
    %80 = vector.load %arg24[%c40_83, %c0_84] : memref<144x384xf32, #tpu.memory_space<vmem>>, vector<8x384xf32>
    tpu.vector_store %arg24[%c40_83, %c0_84], %79 {strides = array<i32>} : memref<144x384xf32, #tpu.memory_space<vmem>>, vector<8x384xf32>,
    %c367_i32_85 = arith.constant 367 : i32
    %81 = tpu.dynamic_rotate %8 by %c367_i32_85 dim 1 : vector<8x384xf32>, i32 -> vector<8x384xf32>
    %c48_86 = arith.constant 48 : index
    %c0_87 = arith.constant 0 : index
    %82 = vector.load %arg24[%c48_86, %c0_87] : memref<144x384xf32, #tpu.memory_space<vmem>>, vector<8x384xf32>
    tpu.vector_store %arg24[%c48_86, %c0_87], %81 {strides = array<i32>} : memref<144x384xf32, #tpu.memory_space<vmem>>, vector<8x384xf32>,
    %c366_i32_88 = arith.constant 366 : i32
    %83 = tpu.dynamic_rotate %8 by %c366_i32_88 dim 1 : vector<8x384xf32>, i32 -> vector<8x384xf32>
    %c56_89 = arith.constant 56 : index
    %c0_90 = arith.constant 0 : index
    %84 = vector.load %arg24[%c56_89, %c0_90] : memref<144x384xf32, #tpu.memory_space<vmem>>, vector<8x384xf32>
    tpu.vector_store %arg24[%c56_89, %c0_90], %83 {strides = array<i32>} : memref<144x384xf32, #tpu.memory_space<vmem>>, vector<8x384xf32>,
    %c365_i32_91 = arith.constant 365 : i32
    %85 = tpu.dynamic_rotate %8 by %c365_i32_91 dim 1 : vector<8x384xf32>, i32 -> vector<8x384xf32>
    %c64_92 = arith.constant 64 : index
    %c0_93 = arith.constant 0 : index
    %86 = vector.load %arg24[%c64_92, %c0_93] : memref<144x384xf32, #tpu.memory_space<vmem>>, vector<8x384xf32>
    tpu.vector_store %arg24[%c64_92, %c0_93], %85 {strides = array<i32>} : memref<144x384xf32, #tpu.memory_space<vmem>>, vector<8x384xf32>,
    %c0_94 = arith.constant 0 : index
    %c0_95 = arith.constant 0 : index
    %87 = vector.load %arg24[%c0_94, %c0_95] : memref<144x384xf32, #tpu.memory_space<vmem>>, vector<72x384xf32>
    %cst_96 = arith.constant dense<0.000000e+00> : vector<8x384xf32>
    %88 = tpu.matmul %67, %87, %cst_96 {dimension_numbers = #tpu.dot_dimension_numbers<[1], [0], [0], [1], [0, 0, 1, 1], [], []>} : vector<8x72xf32>, vector<72x384xf32>, vector<8x384xf32> -> vector<8x384xf32>
    %89 = vector.broadcast %69 : vector<8x1xf32> to vector<8x384xf32>
    %90 = arith.addf %88, %89 : vector<8x384xf32>
    %91 = arith.mulf %90, %4 : vector<8x384xf32>
    %cst_97 = arith.constant 0.000000e+00 : f32
    %92 = vector.broadcast %cst_97 : f32 to vector<8x384xf32>
    %93 = arith.cmpf oge, %91, %92 : vector<8x384xf32>
    %cst_98 = arith.constant 1.000000e-01 : f32
    %94 = vector.broadcast %cst_98 : f32 to vector<8x384xf32>
    %95 = arith.mulf %94, %91 : vector<8x384xf32>
    %96 = arith.select %93, %91, %95 : vector<8x384xi1>, vector<8x384xf32>
    %c0_99 = arith.constant 0 : index
    %c0_100 = arith.constant 0 : index
    %c0_101 = arith.constant 0 : index
    %97 = vector.load %arg10[%c0_99, %c0_100, %c0_101] : memref<2x8x72xf32, #tpu.memory_space<vmem>>, vector<1x8x72xf32>
    %98 = vector.shape_cast %97 : vector<1x8x72xf32> to vector<8x72xf32>
    %c0_102 = arith.constant 0 : index
    %c0_103 = arith.constant 0 : index
    %c0_104 = arith.constant 0 : index
    %99 = vector.load %arg11[%c0_102, %c0_103, %c0_104] : memref<2x8x1xf32, #tpu.memory_space<vmem>>, vector<1x8x1xf32>
    %100 = vector.shape_cast %99 : vector<1x8x1xf32> to vector<8x1xf32>
    %c19_i32_105 = arith.constant 19 : i32
    %101 = tpu.dynamic_rotate %96 by %c19_i32_105 dim 1 : vector<8x384xf32>, i32 -> vector<8x384xf32>
    %c0_106 = arith.constant 0 : index
    %c0_107 = arith.constant 0 : index
    %102 = vector.load %arg24[%c0_106, %c0_107] : memref<144x384xf32, #tpu.memory_space<vmem>>, vector<8x384xf32>
    tpu.vector_store %arg24[%c0_106, %c0_107], %101 {strides = array<i32>} : memref<144x384xf32, #tpu.memory_space<vmem>>, vector<8x384xf32>,
    %c18_i32_108 = arith.constant 18 : i32
    %103 = tpu.dynamic_rotate %96 by %c18_i32_108 dim 1 : vector<8x384xf32>, i32 -> vector<8x384xf32>
    %c8_109 = arith.constant 8 : index
    %c0_110 = arith.constant 0 : index
    %104 = vector.load %arg24[%c8_109, %c0_110] : memref<144x384xf32, #tpu.memory_space<vmem>>, vector<8x384xf32>
    tpu.vector_store %arg24[%c8_109, %c0_110], %103 {strides = array<i32>} : memref<144x384xf32, #tpu.memory_space<vmem>>, vector<8x384xf32>,
    %c17_i32_111 = arith.constant 17 : i32
    %105 = tpu.dynamic_rotate %96 by %c17_i32_111 dim 1 : vector<8x384xf32>, i32 -> vector<8x384xf32>
    %c16_112 = arith.constant 16 : index
    %c0_113 = arith.constant 0 : index
    %106 = vector.load %arg24[%c16_112, %c0_113] : memref<144x384xf32, #tpu.memory_space<vmem>>, vector<8x384xf32>
    tpu.vector_store %arg24[%c16_112, %c0_113], %105 {strides = array<i32>} : memref<144x384xf32, #tpu.memory_space<vmem>>, vector<8x384xf32>,
    %c1_i32_114 = arith.constant 1 : i32
    %107 = tpu.dynamic_rotate %96 by %c1_i32_114 dim 1 : vector<8x384xf32>, i32 -> vector<8x384xf32>
    %c24_115 = arith.constant 24 : index
    %c0_116 = arith.constant 0 : index
    %108 = vector.load %arg24[%c24_115, %c0_116] : memref<144x384xf32, #tpu.memory_space<vmem>>, vector<8x384xf32>
    tpu.vector_store %arg24[%c24_115, %c0_116], %107 {strides = array<i32>} : memref<144x384xf32, #tpu.memory_space<vmem>>, vector<8x384xf32>,
    %c32_117 = arith.constant 32 : index
    %c0_118 = arith.constant 0 : index
    %109 = vector.load %arg24[%c32_117, %c0_118] : memref<144x384xf32, #tpu.memory_space<vmem>>, vector<8x384xf32>
    tpu.vector_store %arg24[%c32_117, %c0_118], %96 {strides = array<i32>} : memref<144x384xf32, #tpu.memory_space<vmem>>, vector<8x384xf32>,
    %c383_i32_119 = arith.constant 383 : i32
    %110 = tpu.dynamic_rotate %96 by %c383_i32_119 dim 1 : vector<8x384xf32>, i32 -> vector<8x384xf32>
    %c40_120 = arith.constant 40 : index
    %c0_121 = arith.constant 0 : index
    %111 = vector.load %arg24[%c40_120, %c0_121] : memref<144x384xf32, #tpu.memory_space<vmem>>, vector<8x384xf32>
    tpu.vector_store %arg24[%c40_120, %c0_121], %110 {strides = array<i32>} : memref<144x384xf32, #tpu.memory_space<vmem>>, vector<8x384xf32>,
    %c367_i32_122 = arith.constant 367 : i32
    %112 = tpu.dynamic_rotate %96 by %c367_i32_122 dim 1 : vector<8x384xf32>, i32 -> vector<8x384xf32>
    %c48_123 = arith.constant 48 : index
    %c0_124 = arith.constant 0 : index
    %113 = vector.load %arg24[%c48_123, %c0_124] : memref<144x384xf32, #tpu.memory_space<vmem>>, vector<8x384xf32>
    tpu.vector_store %arg24[%c48_123, %c0_124], %112 {strides = array<i32>} : memref<144x384xf32, #tpu.memory_space<vmem>>, vector<8x384xf32>,
    %c366_i32_125 = arith.constant 366 : i32
    %114 = tpu.dynamic_rotate %96 by %c366_i32_125 dim 1 : vector<8x384xf32>, i32 -> vector<8x384xf32>
    %c56_126 = arith.constant 56 : index
    %c0_127 = arith.constant 0 : index
    %115 = vector.load %arg24[%c56_126, %c0_127] : memref<144x384xf32, #tpu.memory_space<vmem>>, vector<8x384xf32>
    tpu.vector_store %arg24[%c56_126, %c0_127], %114 {strides = array<i32>} : memref<144x384xf32, #tpu.memory_space<vmem>>, vector<8x384xf32>,
    %c365_i32_128 = arith.constant 365 : i32
    %116 = tpu.dynamic_rotate %96 by %c365_i32_128 dim 1 : vector<8x384xf32>, i32 -> vector<8x384xf32>
    %c64_129 = arith.constant 64 : index
    %c0_130 = arith.constant 0 : index
    %117 = vector.load %arg24[%c64_129, %c0_130] : memref<144x384xf32, #tpu.memory_space<vmem>>, vector<8x384xf32>
    tpu.vector_store %arg24[%c64_129, %c0_130], %116 {strides = array<i32>} : memref<144x384xf32, #tpu.memory_space<vmem>>, vector<8x384xf32>,
    %c0_131 = arith.constant 0 : index
    %c0_132 = arith.constant 0 : index
    %118 = vector.load %arg24[%c0_131, %c0_132] : memref<144x384xf32, #tpu.memory_space<vmem>>, vector<72x384xf32>
    %cst_133 = arith.constant dense<0.000000e+00> : vector<8x384xf32>
    %119 = tpu.matmul %98, %118, %cst_133 {dimension_numbers = #tpu.dot_dimension_numbers<[1], [0], [0], [1], [0, 0, 1, 1], [], []>} : vector<8x72xf32>, vector<72x384xf32>, vector<8x384xf32> -> vector<8x384xf32>
    %120 = vector.broadcast %100 : vector<8x1xf32> to vector<8x384xf32>
    %121 = arith.addf %119, %120 : vector<8x384xf32>
    %122 = arith.mulf %121, %4 : vector<8x384xf32>
    %cst_134 = arith.constant 0.000000e+00 : f32
    %123 = vector.broadcast %cst_134 : f32 to vector<8x384xf32>
    %124 = arith.cmpf oge, %65, %123 : vector<8x384xf32>
    %cst_135 = arith.constant 1.000000e-01 : f32
    %125 = vector.broadcast %cst_135 : f32 to vector<8x384xf32>
    %126 = arith.mulf %125, %65 : vector<8x384xf32>
    %127 = arith.select %124, %65, %126 : vector<8x384xi1>, vector<8x384xf32>
    %cst_136 = arith.constant 0.000000e+00 : f32
    %128 = vector.broadcast %cst_136 : f32 to vector<8x384xf32>
    %129 = arith.cmpf oge, %122, %128 : vector<8x384xf32>
    %cst_137 = arith.constant 1.000000e-01 : f32
    %130 = vector.broadcast %cst_137 : f32 to vector<8x384xf32>
    %131 = arith.mulf %130, %122 : vector<8x384xf32>
    %132 = arith.select %129, %122, %131 : vector<8x384xi1>, vector<8x384xf32>
    %c0_138 = arith.constant 0 : index
    %c0_139 = arith.constant 0 : index
    %c0_140 = arith.constant 0 : index
    %133 = vector.load %arg12[%c0_138, %c0_139, %c0_140] : memref<2x8x144xf32, #tpu.memory_space<vmem>>, vector<1x8x144xf32>
    %134 = vector.shape_cast %133 : vector<1x8x144xf32> to vector<8x144xf32>
    %c0_141 = arith.constant 0 : index
    %c0_142 = arith.constant 0 : index
    %c0_143 = arith.constant 0 : index
    %135 = vector.load %arg13[%c0_141, %c0_142, %c0_143] : memref<2x8x1xf32, #tpu.memory_space<vmem>>, vector<1x8x1xf32>
    %136 = vector.shape_cast %135 : vector<1x8x1xf32> to vector<8x1xf32>
    %c19_i32_144 = arith.constant 19 : i32
    %137 = tpu.dynamic_rotate %127 by %c19_i32_144 dim 1 : vector<8x384xf32>, i32 -> vector<8x384xf32>
    %c0_145 = arith.constant 0 : index
    %c0_146 = arith.constant 0 : index
    %138 = vector.load %arg24[%c0_145, %c0_146] : memref<144x384xf32, #tpu.memory_space<vmem>>, vector<8x384xf32>
    tpu.vector_store %arg24[%c0_145, %c0_146], %137 {strides = array<i32>} : memref<144x384xf32, #tpu.memory_space<vmem>>, vector<8x384xf32>,
    %c18_i32_147 = arith.constant 18 : i32
    %139 = tpu.dynamic_rotate %127 by %c18_i32_147 dim 1 : vector<8x384xf32>, i32 -> vector<8x384xf32>
    %c8_148 = arith.constant 8 : index
    %c0_149 = arith.constant 0 : index
    %140 = vector.load %arg24[%c8_148, %c0_149] : memref<144x384xf32, #tpu.memory_space<vmem>>, vector<8x384xf32>
    tpu.vector_store %arg24[%c8_148, %c0_149], %139 {strides = array<i32>} : memref<144x384xf32, #tpu.memory_space<vmem>>, vector<8x384xf32>,
    %c17_i32_150 = arith.constant 17 : i32
    %141 = tpu.dynamic_rotate %127 by %c17_i32_150 dim 1 : vector<8x384xf32>, i32 -> vector<8x384xf32>
    %c16_151 = arith.constant 16 : index
    %c0_152 = arith.constant 0 : index
    %142 = vector.load %arg24[%c16_151, %c0_152] : memref<144x384xf32, #tpu.memory_space<vmem>>, vector<8x384xf32>
    tpu.vector_store %arg24[%c16_151, %c0_152], %141 {strides = array<i32>} : memref<144x384xf32, #tpu.memory_space<vmem>>, vector<8x384xf32>,
    %c1_i32_153 = arith.constant 1 : i32
    %143 = tpu.dynamic_rotate %127 by %c1_i32_153 dim 1 : vector<8x384xf32>, i32 -> vector<8x384xf32>
    %c24_154 = arith.constant 24 : index
    %c0_155 = arith.constant 0 : index
    %144 = vector.load %arg24[%c24_154, %c0_155] : memref<144x384xf32, #tpu.memory_space<vmem>>, vector<8x384xf32>
    tpu.vector_store %arg24[%c24_154, %c0_155], %143 {strides = array<i32>} : memref<144x384xf32, #tpu.memory_space<vmem>>, vector<8x384xf32>,
    %c32_156 = arith.constant 32 : index
    %c0_157 = arith.constant 0 : index
    %145 = vector.load %arg24[%c32_156, %c0_157] : memref<144x384xf32, #tpu.memory_space<vmem>>, vector<8x384xf32>
    tpu.vector_store %arg24[%c32_156, %c0_157], %127 {strides = array<i32>} : memref<144x384xf32, #tpu.memory_space<vmem>>, vector<8x384xf32>,
    %c383_i32_158 = arith.constant 383 : i32
    %146 = tpu.dynamic_rotate %127 by %c383_i32_158 dim 1 : vector<8x384xf32>, i32 -> vector<8x384xf32>
    %c40_159 = arith.constant 40 : index
    %c0_160 = arith.constant 0 : index
    %147 = vector.load %arg24[%c40_159, %c0_160] : memref<144x384xf32, #tpu.memory_space<vmem>>, vector<8x384xf32>
    tpu.vector_store %arg24[%c40_159, %c0_160], %146 {strides = array<i32>} : memref<144x384xf32, #tpu.memory_space<vmem>>, vector<8x384xf32>,
    %c367_i32_161 = arith.constant 367 : i32
    %148 = tpu.dynamic_rotate %127 by %c367_i32_161 dim 1 : vector<8x384xf32>, i32 -> vector<8x384xf32>
    %c48_162 = arith.constant 48 : index
    %c0_163 = arith.constant 0 : index
    %149 = vector.load %arg24[%c48_162, %c0_163] : memref<144x384xf32, #tpu.memory_space<vmem>>, vector<8x384xf32>
    tpu.vector_store %arg24[%c48_162, %c0_163], %148 {strides = array<i32>} : memref<144x384xf32, #tpu.memory_space<vmem>>, vector<8x384xf32>,
    %c366_i32_164 = arith.constant 366 : i32
    %150 = tpu.dynamic_rotate %127 by %c366_i32_164 dim 1 : vector<8x384xf32>, i32 -> vector<8x384xf32>
    %c56_165 = arith.constant 56 : index
    %c0_166 = arith.constant 0 : index
    %151 = vector.load %arg24[%c56_165, %c0_166] : memref<144x384xf32, #tpu.memory_space<vmem>>, vector<8x384xf32>
    tpu.vector_store %arg24[%c56_165, %c0_166], %150 {strides = array<i32>} : memref<144x384xf32, #tpu.memory_space<vmem>>, vector<8x384xf32>,
    %c365_i32_167 = arith.constant 365 : i32
    %152 = tpu.dynamic_rotate %127 by %c365_i32_167 dim 1 : vector<8x384xf32>, i32 -> vector<8x384xf32>
    %c64_168 = arith.constant 64 : index
    %c0_169 = arith.constant 0 : index
    %153 = vector.load %arg24[%c64_168, %c0_169] : memref<144x384xf32, #tpu.memory_space<vmem>>, vector<8x384xf32>
    tpu.vector_store %arg24[%c64_168, %c0_169], %152 {strides = array<i32>} : memref<144x384xf32, #tpu.memory_space<vmem>>, vector<8x384xf32>,
    %c19_i32_170 = arith.constant 19 : i32
    %154 = tpu.dynamic_rotate %132 by %c19_i32_170 dim 1 : vector<8x384xf32>, i32 -> vector<8x384xf32>
    %c72 = arith.constant 72 : index
    %c0_171 = arith.constant 0 : index
    %155 = vector.load %arg24[%c72, %c0_171] : memref<144x384xf32, #tpu.memory_space<vmem>>, vector<8x384xf32>
    tpu.vector_store %arg24[%c72, %c0_171], %154 {strides = array<i32>} : memref<144x384xf32, #tpu.memory_space<vmem>>, vector<8x384xf32>,
    %c18_i32_172 = arith.constant 18 : i32
    %156 = tpu.dynamic_rotate %132 by %c18_i32_172 dim 1 : vector<8x384xf32>, i32 -> vector<8x384xf32>
    %c80 = arith.constant 80 : index
    %c0_173 = arith.constant 0 : index
    %157 = vector.load %arg24[%c80, %c0_173] : memref<144x384xf32, #tpu.memory_space<vmem>>, vector<8x384xf32>
    tpu.vector_store %arg24[%c80, %c0_173], %156 {strides = array<i32>} : memref<144x384xf32, #tpu.memory_space<vmem>>, vector<8x384xf32>,
    %c17_i32_174 = arith.constant 17 : i32
    %158 = tpu.dynamic_rotate %132 by %c17_i32_174 dim 1 : vector<8x384xf32>, i32 -> vector<8x384xf32>
    %c88 = arith.constant 88 : index
    %c0_175 = arith.constant 0 : index
    %159 = vector.load %arg24[%c88, %c0_175] : memref<144x384xf32, #tpu.memory_space<vmem>>, vector<8x384xf32>
    tpu.vector_store %arg24[%c88, %c0_175], %158 {strides = array<i32>} : memref<144x384xf32, #tpu.memory_space<vmem>>, vector<8x384xf32>,
    %c1_i32_176 = arith.constant 1 : i32
    %160 = tpu.dynamic_rotate %132 by %c1_i32_176 dim 1 : vector<8x384xf32>, i32 -> vector<8x384xf32>
    %c96 = arith.constant 96 : index
    %c0_177 = arith.constant 0 : index
    %161 = vector.load %arg24[%c96, %c0_177] : memref<144x384xf32, #tpu.memory_space<vmem>>, vector<8x384xf32>
    tpu.vector_store %arg24[%c96, %c0_177], %160 {strides = array<i32>} : memref<144x384xf32, #tpu.memory_space<vmem>>, vector<8x384xf32>,
    %c104 = arith.constant 104 : index
    %c0_178 = arith.constant 0 : index
    %162 = vector.load %arg24[%c104, %c0_178] : memref<144x384xf32, #tpu.memory_space<vmem>>, vector<8x384xf32>
    tpu.vector_store %arg24[%c104, %c0_178], %132 {strides = array<i32>} : memref<144x384xf32, #tpu.memory_space<vmem>>, vector<8x384xf32>,
    %c383_i32_179 = arith.constant 383 : i32
    %163 = tpu.dynamic_rotate %132 by %c383_i32_179 dim 1 : vector<8x384xf32>, i32 -> vector<8x384xf32>
    %c112 = arith.constant 112 : index
    %c0_180 = arith.constant 0 : index
    %164 = vector.load %arg24[%c112, %c0_180] : memref<144x384xf32, #tpu.memory_space<vmem>>, vector<8x384xf32>
    tpu.vector_store %arg24[%c112, %c0_180], %163 {strides = array<i32>} : memref<144x384xf32, #tpu.memory_space<vmem>>, vector<8x384xf32>,
    %c367_i32_181 = arith.constant 367 : i32
    %165 = tpu.dynamic_rotate %132 by %c367_i32_181 dim 1 : vector<8x384xf32>, i32 -> vector<8x384xf32>
    %c120 = arith.constant 120 : index
    %c0_182 = arith.constant 0 : index
    %166 = vector.load %arg24[%c120, %c0_182] : memref<144x384xf32, #tpu.memory_space<vmem>>, vector<8x384xf32>
    tpu.vector_store %arg24[%c120, %c0_182], %165 {strides = array<i32>} : memref<144x384xf32, #tpu.memory_space<vmem>>, vector<8x384xf32>,
    %c366_i32_183 = arith.constant 366 : i32
    %167 = tpu.dynamic_rotate %132 by %c366_i32_183 dim 1 : vector<8x384xf32>, i32 -> vector<8x384xf32>
    %c128 = arith.constant 128 : index
    %c0_184 = arith.constant 0 : index
    %168 = vector.load %arg24[%c128, %c0_184] : memref<144x384xf32, #tpu.memory_space<vmem>>, vector<8x384xf32>
    tpu.vector_store %arg24[%c128, %c0_184], %167 {strides = array<i32>} : memref<144x384xf32, #tpu.memory_space<vmem>>, vector<8x384xf32>,
    %c365_i32_185 = arith.constant 365 : i32
    %169 = tpu.dynamic_rotate %132 by %c365_i32_185 dim 1 : vector<8x384xf32>, i32 -> vector<8x384xf32>
    %c136 = arith.constant 136 : index
    %c0_186 = arith.constant 0 : index
    %170 = vector.load %arg24[%c136, %c0_186] : memref<144x384xf32, #tpu.memory_space<vmem>>, vector<8x384xf32>
    tpu.vector_store %arg24[%c136, %c0_186], %169 {strides = array<i32>} : memref<144x384xf32, #tpu.memory_space<vmem>>, vector<8x384xf32>,
    %c0_187 = arith.constant 0 : index
    %c0_188 = arith.constant 0 : index
    %171 = vector.load %arg24[%c0_187, %c0_188] : memref<144x384xf32, #tpu.memory_space<vmem>>, vector<144x384xf32>
    %cst_189 = arith.constant dense<0.000000e+00> : vector<8x384xf32>
    %172 = tpu.matmul %134, %171, %cst_189 {dimension_numbers = #tpu.dot_dimension_numbers<[1], [0], [0], [1], [0, 0, 1, 1], [], []>} : vector<8x144xf32>, vector<144x384xf32>, vector<8x384xf32> -> vector<8x384xf32>
    %173 = vector.broadcast %136 : vector<8x1xf32> to vector<8x384xf32>
    %174 = arith.addf %172, %173 : vector<8x384xf32>
    %175 = arith.mulf %174, %2 : vector<8x384xf32>
    %c0_190 = arith.constant 0 : index
    %c0_191 = arith.constant 0 : index
    %c0_192 = arith.constant 0 : index
    %176 = vector.load %arg14[%c0_190, %c0_191, %c0_192] : memref<2x8x2xf32, #tpu.memory_space<vmem>>, vector<1x8x2xf32>
    %177 = vector.shape_cast %176 : vector<1x8x2xf32> to vector<8x2xf32>
    %c0_193 = arith.constant 0 : index
    %c0_194 = arith.constant 0 : index
    %c0_195 = arith.constant 0 : index
    %178 = vector.load %arg15[%c0_193, %c0_194, %c0_195] : memref<2x1x2xf32, #tpu.memory_space<vmem>>, vector<1x1x2xf32>
    %179 = vector.shape_cast %178 : vector<1x1x2xf32> to vector<1x2xf32>
    %c0_196 = arith.constant 0 : index
    %c0_197 = arith.constant 0 : index
    %c0_198 = arith.constant 0 : index
    %180 = vector.load %arg16[%c0_196, %c0_197, %c0_198] : memref<2x8x2xf32, #tpu.memory_space<vmem>>, vector<1x8x2xf32>
    %181 = vector.shape_cast %180 : vector<1x8x2xf32> to vector<8x2xf32>
    %c0_199 = arith.constant 0 : index
    %c0_200 = arith.constant 0 : index
    %c0_201 = arith.constant 0 : index
    %182 = vector.load %arg17[%c0_199, %c0_200, %c0_201] : memref<2x8x1xf32, #tpu.memory_space<vmem>>, vector<1x8x1xf32>
    %183 = vector.shape_cast %182 : vector<1x8x1xf32> to vector<8x1xf32>
    %cst_202 = arith.constant dense<0.000000e+00> : vector<8xf32>
    %184 = vector.multi_reduction <add>, %175, %cst_202 [1] : vector<8x384xf32> to vector<8xf32>
    %185 = vector.shape_cast %184 : vector<8xf32> to vector<8x1xf32>
    %cst_203 = arith.constant 3.906250e-03 : f32
    %186 = vector.broadcast %cst_203 : f32 to vector<8x1xf32>
    %187 = arith.mulf %185, %186 : vector<8x1xf32>
    %188 = vector.broadcast %187 : vector<8x1xf32> to vector<8x2xf32>
    %189 = arith.mulf %177, %188 : vector<8x2xf32>
    %cst_204 = arith.constant dense<0.000000e+00> : vector<2xf32>
    %190 = vector.multi_reduction <add>, %189, %cst_204 [0] : vector<8x2xf32> to vector<2xf32>
    %191 = vector.shape_cast %190 : vector<2xf32> to vector<1x2xf32>
    %192 = arith.addf %191, %179 : vector<1x2xf32>
    %cst_205 = arith.constant 0.000000e+00 : f32
    %193 = vector.broadcast %cst_205 : f32 to vector<1x2xf32>
    %194 = arith.maximumf %192, %193 : vector<1x2xf32>
    %195 = vector.broadcast %194 : vector<1x2xf32> to vector<8x2xf32>
    %196 = arith.mulf %181, %195 : vector<8x2xf32>
    %cst_206 = arith.constant dense<0.000000e+00> : vector<8xf32>
    %197 = vector.multi_reduction <add>, %196, %cst_206 [1] : vector<8x2xf32> to vector<8xf32>
    %198 = vector.shape_cast %197 : vector<8xf32> to vector<8x1xf32>
    %199 = arith.addf %198, %183 : vector<8x1xf32>
    %200 = math.absf %199 : vector<8x1xf32>
    %cst_207 = arith.constant 0.000000e+00 : f32
    %201 = vector.broadcast %cst_207 : f32 to vector<8x1xf32>
    %202 = arith.subf %201, %200 : vector<8x1xf32>
    %203 = math.exp %202 : vector<8x1xf32>
    %cst_208 = arith.constant 0.000000e+00 : f32
    %204 = vector.broadcast %cst_208 : f32 to vector<8x1xf32>
    %205 = arith.cmpf oge, %199, %204 : vector<8x1xf32>
    %cst_209 = arith.constant 1.000000e+00 : f32
    %206 = vector.broadcast %cst_209 : f32 to vector<8x1xf32>
    %207 = arith.addf %206, %203 : vector<8x1xf32>
    %cst_210 = arith.constant 1.000000e+00 : f32
    %208 = vector.broadcast %cst_210 : f32 to vector<8x1xf32>
    %209 = arith.divf %208, %207 : vector<8x1xf32>
    %cst_211 = arith.constant 1.000000e+00 : f32
    %210 = vector.broadcast %cst_211 : f32 to vector<8x1xf32>
    %211 = arith.addf %210, %203 : vector<8x1xf32>
    %212 = arith.divf %203, %211 : vector<8x1xf32>
    %213 = arith.select %205, %209, %212 : vector<8x1xi1>, vector<8x1xf32>
    %214 = vector.broadcast %213 : vector<8x1xf32> to vector<8x384xf32>
    %215 = arith.mulf %175, %214 : vector<8x384xf32>
    %c0_212 = arith.constant 0 : index
    %c0_213 = arith.constant 0 : index
    %c0_214 = arith.constant 0 : index
    %216 = vector.load %arg18[%c0_212, %c0_213, %c0_214] : memref<2x8x2xf32, #tpu.memory_space<vmem>>, vector<1x8x2xf32>
    %217 = vector.shape_cast %216 : vector<1x8x2xf32> to vector<8x2xf32>
    %c0_215 = arith.constant 0 : index
    %c0_216 = arith.constant 0 : index
    %c0_217 = arith.constant 0 : index
    %218 = vector.load %arg19[%c0_215, %c0_216, %c0_217] : memref<2x1x2xf32, #tpu.memory_space<vmem>>, vector<1x1x2xf32>
    %219 = vector.shape_cast %218 : vector<1x1x2xf32> to vector<1x2xf32>
    %c0_218 = arith.constant 0 : index
    %c0_219 = arith.constant 0 : index
    %c0_220 = arith.constant 0 : index
    %220 = vector.load %arg20[%c0_218, %c0_219, %c0_220] : memref<2x8x2xf32, #tpu.memory_space<vmem>>, vector<1x8x2xf32>
    %221 = vector.shape_cast %220 : vector<1x8x2xf32> to vector<8x2xf32>
    %c0_221 = arith.constant 0 : index
    %c0_222 = arith.constant 0 : index
    %c0_223 = arith.constant 0 : index
    %222 = vector.load %arg21[%c0_221, %c0_222, %c0_223] : memref<2x8x1xf32, #tpu.memory_space<vmem>>, vector<1x8x1xf32>
    %223 = vector.shape_cast %222 : vector<1x8x1xf32> to vector<8x1xf32>
    %cst_224 = arith.constant dense<0.000000e+00> : vector<8xf32>
    %224 = vector.multi_reduction <add>, %122, %cst_224 [1] : vector<8x384xf32> to vector<8xf32>
    %225 = vector.shape_cast %224 : vector<8xf32> to vector<8x1xf32>
    %cst_225 = arith.constant 3.906250e-03 : f32
    %226 = vector.broadcast %cst_225 : f32 to vector<8x1xf32>
    %227 = arith.mulf %225, %226 : vector<8x1xf32>
    %228 = vector.broadcast %227 : vector<8x1xf32> to vector<8x2xf32>
    %229 = arith.mulf %217, %228 : vector<8x2xf32>
    %cst_226 = arith.constant dense<0.000000e+00> : vector<2xf32>
    %230 = vector.multi_reduction <add>, %229, %cst_226 [0] : vector<8x2xf32> to vector<2xf32>
    %231 = vector.shape_cast %230 : vector<2xf32> to vector<1x2xf32>
    %232 = arith.addf %231, %219 : vector<1x2xf32>
    %cst_227 = arith.constant 0.000000e+00 : f32
    %233 = vector.broadcast %cst_227 : f32 to vector<1x2xf32>
    %234 = arith.maximumf %232, %233 : vector<1x2xf32>
    %235 = vector.broadcast %234 : vector<1x2xf32> to vector<8x2xf32>
    %236 = arith.mulf %221, %235 : vector<8x2xf32>
    %cst_228 = arith.constant dense<0.000000e+00> : vector<8xf32>
    %237 = vector.multi_reduction <add>, %236, %cst_228 [1] : vector<8x2xf32> to vector<8xf32>
    %238 = vector.shape_cast %237 : vector<8xf32> to vector<8x1xf32>
    %239 = arith.addf %238, %223 : vector<8x1xf32>
    %240 = math.absf %239 : vector<8x1xf32>
    %cst_229 = arith.constant 0.000000e+00 : f32
    %241 = vector.broadcast %cst_229 : f32 to vector<8x1xf32>
    %242 = arith.subf %241, %240 : vector<8x1xf32>
    %243 = math.exp %242 : vector<8x1xf32>
    %cst_230 = arith.constant 0.000000e+00 : f32
    %244 = vector.broadcast %cst_230 : f32 to vector<8x1xf32>
    %245 = arith.cmpf oge, %239, %244 : vector<8x1xf32>
    %cst_231 = arith.constant 1.000000e+00 : f32
    %246 = vector.broadcast %cst_231 : f32 to vector<8x1xf32>
    %247 = arith.addf %246, %243 : vector<8x1xf32>
    %cst_232 = arith.constant 1.000000e+00 : f32
    %248 = vector.broadcast %cst_232 : f32 to vector<8x1xf32>
    %249 = arith.divf %248, %247 : vector<8x1xf32>
    %cst_233 = arith.constant 1.000000e+00 : f32
    %250 = vector.broadcast %cst_233 : f32 to vector<8x1xf32>
    %251 = arith.addf %250, %243 : vector<8x1xf32>
    %252 = arith.divf %243, %251 : vector<8x1xf32>
    %253 = arith.select %245, %249, %252 : vector<8x1xi1>, vector<8x1xf32>
    %254 = vector.broadcast %253 : vector<8x1xf32> to vector<8x384xf32>
    %255 = arith.mulf %122, %254 : vector<8x384xf32>
    %256 = arith.addf %6, %215 : vector<8x384xf32>
    %257 = arith.addf %8, %255 : vector<8x384xf32>
    %c1 = arith.constant 1 : index
    %c0_234 = arith.constant 0 : index
    %c0_235 = arith.constant 0 : index
    %258 = vector.load %arg4[%c1, %c0_234, %c0_235] : memref<2x8x72xf32, #tpu.memory_space<vmem>>, vector<1x8x72xf32>
    %259 = vector.shape_cast %258 : vector<1x8x72xf32> to vector<8x72xf32>
    %c1_236 = arith.constant 1 : index
    %c0_237 = arith.constant 0 : index
    %c0_238 = arith.constant 0 : index
    %260 = vector.load %arg5[%c1_236, %c0_237, %c0_238] : memref<2x8x1xf32, #tpu.memory_space<vmem>>, vector<1x8x1xf32>
    %261 = vector.shape_cast %260 : vector<1x8x1xf32> to vector<8x1xf32>
    %c19_i32_239 = arith.constant 19 : i32
    %262 = tpu.dynamic_rotate %256 by %c19_i32_239 dim 1 : vector<8x384xf32>, i32 -> vector<8x384xf32>
    %c0_240 = arith.constant 0 : index
    %c0_241 = arith.constant 0 : index
    %263 = vector.load %arg24[%c0_240, %c0_241] : memref<144x384xf32, #tpu.memory_space<vmem>>, vector<8x384xf32>
    tpu.vector_store %arg24[%c0_240, %c0_241], %262 {strides = array<i32>} : memref<144x384xf32, #tpu.memory_space<vmem>>, vector<8x384xf32>,
    %c18_i32_242 = arith.constant 18 : i32
    %264 = tpu.dynamic_rotate %256 by %c18_i32_242 dim 1 : vector<8x384xf32>, i32 -> vector<8x384xf32>
    %c8_243 = arith.constant 8 : index
    %c0_244 = arith.constant 0 : index
    %265 = vector.load %arg24[%c8_243, %c0_244] : memref<144x384xf32, #tpu.memory_space<vmem>>, vector<8x384xf32>
    tpu.vector_store %arg24[%c8_243, %c0_244], %264 {strides = array<i32>} : memref<144x384xf32, #tpu.memory_space<vmem>>, vector<8x384xf32>,
    %c17_i32_245 = arith.constant 17 : i32
    %266 = tpu.dynamic_rotate %256 by %c17_i32_245 dim 1 : vector<8x384xf32>, i32 -> vector<8x384xf32>
    %c16_246 = arith.constant 16 : index
    %c0_247 = arith.constant 0 : index
    %267 = vector.load %arg24[%c16_246, %c0_247] : memref<144x384xf32, #tpu.memory_space<vmem>>, vector<8x384xf32>
    tpu.vector_store %arg24[%c16_246, %c0_247], %266 {strides = array<i32>} : memref<144x384xf32, #tpu.memory_space<vmem>>, vector<8x384xf32>,
    %c1_i32_248 = arith.constant 1 : i32
    %268 = tpu.dynamic_rotate %256 by %c1_i32_248 dim 1 : vector<8x384xf32>, i32 -> vector<8x384xf32>
    %c24_249 = arith.constant 24 : index
    %c0_250 = arith.constant 0 : index
    %269 = vector.load %arg24[%c24_249, %c0_250] : memref<144x384xf32, #tpu.memory_space<vmem>>, vector<8x384xf32>
    tpu.vector_store %arg24[%c24_249, %c0_250], %268 {strides = array<i32>} : memref<144x384xf32, #tpu.memory_space<vmem>>, vector<8x384xf32>,
    %c32_251 = arith.constant 32 : index
    %c0_252 = arith.constant 0 : index
    %270 = vector.load %arg24[%c32_251, %c0_252] : memref<144x384xf32, #tpu.memory_space<vmem>>, vector<8x384xf32>
    tpu.vector_store %arg24[%c32_251, %c0_252], %256 {strides = array<i32>} : memref<144x384xf32, #tpu.memory_space<vmem>>, vector<8x384xf32>,
    %c383_i32_253 = arith.constant 383 : i32
    %271 = tpu.dynamic_rotate %256 by %c383_i32_253 dim 1 : vector<8x384xf32>, i32 -> vector<8x384xf32>
    %c40_254 = arith.constant 40 : index
    %c0_255 = arith.constant 0 : index
    %272 = vector.load %arg24[%c40_254, %c0_255] : memref<144x384xf32, #tpu.memory_space<vmem>>, vector<8x384xf32>
    tpu.vector_store %arg24[%c40_254, %c0_255], %271 {strides = array<i32>} : memref<144x384xf32, #tpu.memory_space<vmem>>, vector<8x384xf32>,
    %c367_i32_256 = arith.constant 367 : i32
    %273 = tpu.dynamic_rotate %256 by %c367_i32_256 dim 1 : vector<8x384xf32>, i32 -> vector<8x384xf32>
    %c48_257 = arith.constant 48 : index
    %c0_258 = arith.constant 0 : index
    %274 = vector.load %arg24[%c48_257, %c0_258] : memref<144x384xf32, #tpu.memory_space<vmem>>, vector<8x384xf32>
    tpu.vector_store %arg24[%c48_257, %c0_258], %273 {strides = array<i32>} : memref<144x384xf32, #tpu.memory_space<vmem>>, vector<8x384xf32>,
    %c366_i32_259 = arith.constant 366 : i32
    %275 = tpu.dynamic_rotate %256 by %c366_i32_259 dim 1 : vector<8x384xf32>, i32 -> vector<8x384xf32>
    %c56_260 = arith.constant 56 : index
    %c0_261 = arith.constant 0 : index
    %276 = vector.load %arg24[%c56_260, %c0_261] : memref<144x384xf32, #tpu.memory_space<vmem>>, vector<8x384xf32>
    tpu.vector_store %arg24[%c56_260, %c0_261], %275 {strides = array<i32>} : memref<144x384xf32, #tpu.memory_space<vmem>>, vector<8x384xf32>,
    %c365_i32_262 = arith.constant 365 : i32
    %277 = tpu.dynamic_rotate %256 by %c365_i32_262 dim 1 : vector<8x384xf32>, i32 -> vector<8x384xf32>
    %c64_263 = arith.constant 64 : index
    %c0_264 = arith.constant 0 : index
    %278 = vector.load %arg24[%c64_263, %c0_264] : memref<144x384xf32, #tpu.memory_space<vmem>>, vector<8x384xf32>
    tpu.vector_store %arg24[%c64_263, %c0_264], %277 {strides = array<i32>} : memref<144x384xf32, #tpu.memory_space<vmem>>, vector<8x384xf32>,
    %c0_265 = arith.constant 0 : index
    %c0_266 = arith.constant 0 : index
    %279 = vector.load %arg24[%c0_265, %c0_266] : memref<144x384xf32, #tpu.memory_space<vmem>>, vector<72x384xf32>
    %cst_267 = arith.constant dense<0.000000e+00> : vector<8x384xf32>
    %280 = tpu.matmul %259, %279, %cst_267 {dimension_numbers = #tpu.dot_dimension_numbers<[1], [0], [0], [1], [0, 0, 1, 1], [], []>} : vector<8x72xf32>, vector<72x384xf32>, vector<8x384xf32> -> vector<8x384xf32>
    %281 = vector.broadcast %261 : vector<8x1xf32> to vector<8x384xf32>
    %282 = arith.addf %280, %281 : vector<8x384xf32>
    %283 = arith.mulf %282, %2 : vector<8x384xf32>
    %cst_268 = arith.constant 0.000000e+00 : f32
    %284 = vector.broadcast %cst_268 : f32 to vector<8x384xf32>
    %285 = arith.cmpf oge, %283, %284 : vector<8x384xf32>
    %cst_269 = arith.constant 1.000000e-01 : f32
    %286 = vector.broadcast %cst_269 : f32 to vector<8x384xf32>
    %287 = arith.mulf %286, %283 : vector<8x384xf32>
    %288 = arith.select %285, %283, %287 : vector<8x384xi1>, vector<8x384xf32>
    %c1_270 = arith.constant 1 : index
    %c0_271 = arith.constant 0 : index
    %c0_272 = arith.constant 0 : index
    %289 = vector.load %arg6[%c1_270, %c0_271, %c0_272] : memref<2x8x72xf32, #tpu.memory_space<vmem>>, vector<1x8x72xf32>
    %290 = vector.shape_cast %289 : vector<1x8x72xf32> to vector<8x72xf32>
    %c1_273 = arith.constant 1 : index
    %c0_274 = arith.constant 0 : index
    %c0_275 = arith.constant 0 : index
    %291 = vector.load %arg7[%c1_273, %c0_274, %c0_275] : memref<2x8x1xf32, #tpu.memory_space<vmem>>, vector<1x8x1xf32>
    %292 = vector.shape_cast %291 : vector<1x8x1xf32> to vector<8x1xf32>
    %c19_i32_276 = arith.constant 19 : i32
    %293 = tpu.dynamic_rotate %288 by %c19_i32_276 dim 1 : vector<8x384xf32>, i32 -> vector<8x384xf32>
    %c0_277 = arith.constant 0 : index
    %c0_278 = arith.constant 0 : index
    %294 = vector.load %arg24[%c0_277, %c0_278] : memref<144x384xf32, #tpu.memory_space<vmem>>, vector<8x384xf32>
    tpu.vector_store %arg24[%c0_277, %c0_278], %293 {strides = array<i32>} : memref<144x384xf32, #tpu.memory_space<vmem>>, vector<8x384xf32>,
    %c18_i32_279 = arith.constant 18 : i32
    %295 = tpu.dynamic_rotate %288 by %c18_i32_279 dim 1 : vector<8x384xf32>, i32 -> vector<8x384xf32>
    %c8_280 = arith.constant 8 : index
    %c0_281 = arith.constant 0 : index
    %296 = vector.load %arg24[%c8_280, %c0_281] : memref<144x384xf32, #tpu.memory_space<vmem>>, vector<8x384xf32>
    tpu.vector_store %arg24[%c8_280, %c0_281], %295 {strides = array<i32>} : memref<144x384xf32, #tpu.memory_space<vmem>>, vector<8x384xf32>,
    %c17_i32_282 = arith.constant 17 : i32
    %297 = tpu.dynamic_rotate %288 by %c17_i32_282 dim 1 : vector<8x384xf32>, i32 -> vector<8x384xf32>
    %c16_283 = arith.constant 16 : index
    %c0_284 = arith.constant 0 : index
    %298 = vector.load %arg24[%c16_283, %c0_284] : memref<144x384xf32, #tpu.memory_space<vmem>>, vector<8x384xf32>
    tpu.vector_store %arg24[%c16_283, %c0_284], %297 {strides = array<i32>} : memref<144x384xf32, #tpu.memory_space<vmem>>, vector<8x384xf32>,
    %c1_i32_285 = arith.constant 1 : i32
    %299 = tpu.dynamic_rotate %288 by %c1_i32_285 dim 1 : vector<8x384xf32>, i32 -> vector<8x384xf32>
    %c24_286 = arith.constant 24 : index
    %c0_287 = arith.constant 0 : index
    %300 = vector.load %arg24[%c24_286, %c0_287] : memref<144x384xf32, #tpu.memory_space<vmem>>, vector<8x384xf32>
    tpu.vector_store %arg24[%c24_286, %c0_287], %299 {strides = array<i32>} : memref<144x384xf32, #tpu.memory_space<vmem>>, vector<8x384xf32>,
    %c32_288 = arith.constant 32 : index
    %c0_289 = arith.constant 0 : index
    %301 = vector.load %arg24[%c32_288, %c0_289] : memref<144x384xf32, #tpu.memory_space<vmem>>, vector<8x384xf32>
    tpu.vector_store %arg24[%c32_288, %c0_289], %288 {strides = array<i32>} : memref<144x384xf32, #tpu.memory_space<vmem>>, vector<8x384xf32>,
    %c383_i32_290 = arith.constant 383 : i32
    %302 = tpu.dynamic_rotate %288 by %c383_i32_290 dim 1 : vector<8x384xf32>, i32 -> vector<8x384xf32>
    %c40_291 = arith.constant 40 : index
    %c0_292 = arith.constant 0 : index
    %303 = vector.load %arg24[%c40_291, %c0_292] : memref<144x384xf32, #tpu.memory_space<vmem>>, vector<8x384xf32>
    tpu.vector_store %arg24[%c40_291, %c0_292], %302 {strides = array<i32>} : memref<144x384xf32, #tpu.memory_space<vmem>>, vector<8x384xf32>,
    %c367_i32_293 = arith.constant 367 : i32
    %304 = tpu.dynamic_rotate %288 by %c367_i32_293 dim 1 : vector<8x384xf32>, i32 -> vector<8x384xf32>
    %c48_294 = arith.constant 48 : index
    %c0_295 = arith.constant 0 : index
    %305 = vector.load %arg24[%c48_294, %c0_295] : memref<144x384xf32, #tpu.memory_space<vmem>>, vector<8x384xf32>
    tpu.vector_store %arg24[%c48_294, %c0_295], %304 {strides = array<i32>} : memref<144x384xf32, #tpu.memory_space<vmem>>, vector<8x384xf32>,
    %c366_i32_296 = arith.constant 366 : i32
    %306 = tpu.dynamic_rotate %288 by %c366_i32_296 dim 1 : vector<8x384xf32>, i32 -> vector<8x384xf32>
    %c56_297 = arith.constant 56 : index
    %c0_298 = arith.constant 0 : index
    %307 = vector.load %arg24[%c56_297, %c0_298] : memref<144x384xf32, #tpu.memory_space<vmem>>, vector<8x384xf32>
    tpu.vector_store %arg24[%c56_297, %c0_298], %306 {strides = array<i32>} : memref<144x384xf32, #tpu.memory_space<vmem>>, vector<8x384xf32>,
    %c365_i32_299 = arith.constant 365 : i32
    %308 = tpu.dynamic_rotate %288 by %c365_i32_299 dim 1 : vector<8x384xf32>, i32 -> vector<8x384xf32>
    %c64_300 = arith.constant 64 : index
    %c0_301 = arith.constant 0 : index
    %309 = vector.load %arg24[%c64_300, %c0_301] : memref<144x384xf32, #tpu.memory_space<vmem>>, vector<8x384xf32>
    tpu.vector_store %arg24[%c64_300, %c0_301], %308 {strides = array<i32>} : memref<144x384xf32, #tpu.memory_space<vmem>>, vector<8x384xf32>,
    %c0_302 = arith.constant 0 : index
    %c0_303 = arith.constant 0 : index
    %310 = vector.load %arg24[%c0_302, %c0_303] : memref<144x384xf32, #tpu.memory_space<vmem>>, vector<72x384xf32>
    %cst_304 = arith.constant dense<0.000000e+00> : vector<8x384xf32>
    %311 = tpu.matmul %290, %310, %cst_304 {dimension_numbers = #tpu.dot_dimension_numbers<[1], [0], [0], [1], [0, 0, 1, 1], [], []>} : vector<8x72xf32>, vector<72x384xf32>, vector<8x384xf32> -> vector<8x384xf32>
    %312 = vector.broadcast %292 : vector<8x1xf32> to vector<8x384xf32>
    %313 = arith.addf %311, %312 : vector<8x384xf32>
    %314 = arith.mulf %313, %2 : vector<8x384xf32>
    %c1_305 = arith.constant 1 : index
    %c0_306 = arith.constant 0 : index
    %c0_307 = arith.constant 0 : index
    %315 = vector.load %arg8[%c1_305, %c0_306, %c0_307] : memref<2x8x72xf32, #tpu.memory_space<vmem>>, vector<1x8x72xf32>
    %316 = vector.shape_cast %315 : vector<1x8x72xf32> to vector<8x72xf32>
    %c1_308 = arith.constant 1 : index
    %c0_309 = arith.constant 0 : index
    %c0_310 = arith.constant 0 : index
    %317 = vector.load %arg9[%c1_308, %c0_309, %c0_310] : memref<2x8x1xf32, #tpu.memory_space<vmem>>, vector<1x8x1xf32>
    %318 = vector.shape_cast %317 : vector<1x8x1xf32> to vector<8x1xf32>
    %c19_i32_311 = arith.constant 19 : i32
    %319 = tpu.dynamic_rotate %257 by %c19_i32_311 dim 1 : vector<8x384xf32>, i32 -> vector<8x384xf32>
    %c0_312 = arith.constant 0 : index
    %c0_313 = arith.constant 0 : index
    %320 = vector.load %arg24[%c0_312, %c0_313] : memref<144x384xf32, #tpu.memory_space<vmem>>, vector<8x384xf32>
    tpu.vector_store %arg24[%c0_312, %c0_313], %319 {strides = array<i32>} : memref<144x384xf32, #tpu.memory_space<vmem>>, vector<8x384xf32>,
    %c18_i32_314 = arith.constant 18 : i32
    %321 = tpu.dynamic_rotate %257 by %c18_i32_314 dim 1 : vector<8x384xf32>, i32 -> vector<8x384xf32>
    %c8_315 = arith.constant 8 : index
    %c0_316 = arith.constant 0 : index
    %322 = vector.load %arg24[%c8_315, %c0_316] : memref<144x384xf32, #tpu.memory_space<vmem>>, vector<8x384xf32>
    tpu.vector_store %arg24[%c8_315, %c0_316], %321 {strides = array<i32>} : memref<144x384xf32, #tpu.memory_space<vmem>>, vector<8x384xf32>,
    %c17_i32_317 = arith.constant 17 : i32
    %323 = tpu.dynamic_rotate %257 by %c17_i32_317 dim 1 : vector<8x384xf32>, i32 -> vector<8x384xf32>
    %c16_318 = arith.constant 16 : index
    %c0_319 = arith.constant 0 : index
    %324 = vector.load %arg24[%c16_318, %c0_319] : memref<144x384xf32, #tpu.memory_space<vmem>>, vector<8x384xf32>
    tpu.vector_store %arg24[%c16_318, %c0_319], %323 {strides = array<i32>} : memref<144x384xf32, #tpu.memory_space<vmem>>, vector<8x384xf32>,
    %c1_i32_320 = arith.constant 1 : i32
    %325 = tpu.dynamic_rotate %257 by %c1_i32_320 dim 1 : vector<8x384xf32>, i32 -> vector<8x384xf32>
    %c24_321 = arith.constant 24 : index
    %c0_322 = arith.constant 0 : index
    %326 = vector.load %arg24[%c24_321, %c0_322] : memref<144x384xf32, #tpu.memory_space<vmem>>, vector<8x384xf32>
    tpu.vector_store %arg24[%c24_321, %c0_322], %325 {strides = array<i32>} : memref<144x384xf32, #tpu.memory_space<vmem>>, vector<8x384xf32>,
    %c32_323 = arith.constant 32 : index
    %c0_324 = arith.constant 0 : index
    %327 = vector.load %arg24[%c32_323, %c0_324] : memref<144x384xf32, #tpu.memory_space<vmem>>, vector<8x384xf32>
    tpu.vector_store %arg24[%c32_323, %c0_324], %257 {strides = array<i32>} : memref<144x384xf32, #tpu.memory_space<vmem>>, vector<8x384xf32>,
    %c383_i32_325 = arith.constant 383 : i32
    %328 = tpu.dynamic_rotate %257 by %c383_i32_325 dim 1 : vector<8x384xf32>, i32 -> vector<8x384xf32>
    %c40_326 = arith.constant 40 : index
    %c0_327 = arith.constant 0 : index
    %329 = vector.load %arg24[%c40_326, %c0_327] : memref<144x384xf32, #tpu.memory_space<vmem>>, vector<8x384xf32>
    tpu.vector_store %arg24[%c40_326, %c0_327], %328 {strides = array<i32>} : memref<144x384xf32, #tpu.memory_space<vmem>>, vector<8x384xf32>,
    %c367_i32_328 = arith.constant 367 : i32
    %330 = tpu.dynamic_rotate %257 by %c367_i32_328 dim 1 : vector<8x384xf32>, i32 -> vector<8x384xf32>
    %c48_329 = arith.constant 48 : index
    %c0_330 = arith.constant 0 : index
    %331 = vector.load %arg24[%c48_329, %c0_330] : memref<144x384xf32, #tpu.memory_space<vmem>>, vector<8x384xf32>
    tpu.vector_store %arg24[%c48_329, %c0_330], %330 {strides = array<i32>} : memref<144x384xf32, #tpu.memory_space<vmem>>, vector<8x384xf32>,
    %c366_i32_331 = arith.constant 366 : i32
    %332 = tpu.dynamic_rotate %257 by %c366_i32_331 dim 1 : vector<8x384xf32>, i32 -> vector<8x384xf32>
    %c56_332 = arith.constant 56 : index
    %c0_333 = arith.constant 0 : index
    %333 = vector.load %arg24[%c56_332, %c0_333] : memref<144x384xf32, #tpu.memory_space<vmem>>, vector<8x384xf32>
    tpu.vector_store %arg24[%c56_332, %c0_333], %332 {strides = array<i32>} : memref<144x384xf32, #tpu.memory_space<vmem>>, vector<8x384xf32>,
    %c365_i32_334 = arith.constant 365 : i32
    %334 = tpu.dynamic_rotate %257 by %c365_i32_334 dim 1 : vector<8x384xf32>, i32 -> vector<8x384xf32>
    %c64_335 = arith.constant 64 : index
    %c0_336 = arith.constant 0 : index
    %335 = vector.load %arg24[%c64_335, %c0_336] : memref<144x384xf32, #tpu.memory_space<vmem>>, vector<8x384xf32>
    tpu.vector_store %arg24[%c64_335, %c0_336], %334 {strides = array<i32>} : memref<144x384xf32, #tpu.memory_space<vmem>>, vector<8x384xf32>,
    %c0_337 = arith.constant 0 : index
    %c0_338 = arith.constant 0 : index
    %336 = vector.load %arg24[%c0_337, %c0_338] : memref<144x384xf32, #tpu.memory_space<vmem>>, vector<72x384xf32>
    %cst_339 = arith.constant dense<0.000000e+00> : vector<8x384xf32>
    %337 = tpu.matmul %316, %336, %cst_339 {dimension_numbers = #tpu.dot_dimension_numbers<[1], [0], [0], [1], [0, 0, 1, 1], [], []>} : vector<8x72xf32>, vector<72x384xf32>, vector<8x384xf32> -> vector<8x384xf32>
    %338 = vector.broadcast %318 : vector<8x1xf32> to vector<8x384xf32>
    %339 = arith.addf %337, %338 : vector<8x384xf32>
    %340 = arith.mulf %339, %4 : vector<8x384xf32>
    %cst_340 = arith.constant 0.000000e+00 : f32
    %341 = vector.broadcast %cst_340 : f32 to vector<8x384xf32>
    %342 = arith.cmpf oge, %340, %341 : vector<8x384xf32>
    %cst_341 = arith.constant 1.000000e-01 : f32
    %343 = vector.broadcast %cst_341 : f32 to vector<8x384xf32>
    %344 = arith.mulf %343, %340 : vector<8x384xf32>
    %345 = arith.select %342, %340, %344 : vector<8x384xi1>, vector<8x384xf32>
    %c1_342 = arith.constant 1 : index
    %c0_343 = arith.constant 0 : index
    %c0_344 = arith.constant 0 : index
    %346 = vector.load %arg10[%c1_342, %c0_343, %c0_344] : memref<2x8x72xf32, #tpu.memory_space<vmem>>, vector<1x8x72xf32>
    %347 = vector.shape_cast %346 : vector<1x8x72xf32> to vector<8x72xf32>
    %c1_345 = arith.constant 1 : index
    %c0_346 = arith.constant 0 : index
    %c0_347 = arith.constant 0 : index
    %348 = vector.load %arg11[%c1_345, %c0_346, %c0_347] : memref<2x8x1xf32, #tpu.memory_space<vmem>>, vector<1x8x1xf32>
    %349 = vector.shape_cast %348 : vector<1x8x1xf32> to vector<8x1xf32>
    %c19_i32_348 = arith.constant 19 : i32
    %350 = tpu.dynamic_rotate %345 by %c19_i32_348 dim 1 : vector<8x384xf32>, i32 -> vector<8x384xf32>
    %c0_349 = arith.constant 0 : index
    %c0_350 = arith.constant 0 : index
    %351 = vector.load %arg24[%c0_349, %c0_350] : memref<144x384xf32, #tpu.memory_space<vmem>>, vector<8x384xf32>
    tpu.vector_store %arg24[%c0_349, %c0_350], %350 {strides = array<i32>} : memref<144x384xf32, #tpu.memory_space<vmem>>, vector<8x384xf32>,
    %c18_i32_351 = arith.constant 18 : i32
    %352 = tpu.dynamic_rotate %345 by %c18_i32_351 dim 1 : vector<8x384xf32>, i32 -> vector<8x384xf32>
    %c8_352 = arith.constant 8 : index
    %c0_353 = arith.constant 0 : index
    %353 = vector.load %arg24[%c8_352, %c0_353] : memref<144x384xf32, #tpu.memory_space<vmem>>, vector<8x384xf32>
    tpu.vector_store %arg24[%c8_352, %c0_353], %352 {strides = array<i32>} : memref<144x384xf32, #tpu.memory_space<vmem>>, vector<8x384xf32>,
    %c17_i32_354 = arith.constant 17 : i32
    %354 = tpu.dynamic_rotate %345 by %c17_i32_354 dim 1 : vector<8x384xf32>, i32 -> vector<8x384xf32>
    %c16_355 = arith.constant 16 : index
    %c0_356 = arith.constant 0 : index
    %355 = vector.load %arg24[%c16_355, %c0_356] : memref<144x384xf32, #tpu.memory_space<vmem>>, vector<8x384xf32>
    tpu.vector_store %arg24[%c16_355, %c0_356], %354 {strides = array<i32>} : memref<144x384xf32, #tpu.memory_space<vmem>>, vector<8x384xf32>,
    %c1_i32_357 = arith.constant 1 : i32
    %356 = tpu.dynamic_rotate %345 by %c1_i32_357 dim 1 : vector<8x384xf32>, i32 -> vector<8x384xf32>
    %c24_358 = arith.constant 24 : index
    %c0_359 = arith.constant 0 : index
    %357 = vector.load %arg24[%c24_358, %c0_359] : memref<144x384xf32, #tpu.memory_space<vmem>>, vector<8x384xf32>
    tpu.vector_store %arg24[%c24_358, %c0_359], %356 {strides = array<i32>} : memref<144x384xf32, #tpu.memory_space<vmem>>, vector<8x384xf32>,
    %c32_360 = arith.constant 32 : index
    %c0_361 = arith.constant 0 : index
    %358 = vector.load %arg24[%c32_360, %c0_361] : memref<144x384xf32, #tpu.memory_space<vmem>>, vector<8x384xf32>
    tpu.vector_store %arg24[%c32_360, %c0_361], %345 {strides = array<i32>} : memref<144x384xf32, #tpu.memory_space<vmem>>, vector<8x384xf32>,
    %c383_i32_362 = arith.constant 383 : i32
    %359 = tpu.dynamic_rotate %345 by %c383_i32_362 dim 1 : vector<8x384xf32>, i32 -> vector<8x384xf32>
    %c40_363 = arith.constant 40 : index
    %c0_364 = arith.constant 0 : index
    %360 = vector.load %arg24[%c40_363, %c0_364] : memref<144x384xf32, #tpu.memory_space<vmem>>, vector<8x384xf32>
    tpu.vector_store %arg24[%c40_363, %c0_364], %359 {strides = array<i32>} : memref<144x384xf32, #tpu.memory_space<vmem>>, vector<8x384xf32>,
    %c367_i32_365 = arith.constant 367 : i32
    %361 = tpu.dynamic_rotate %345 by %c367_i32_365 dim 1 : vector<8x384xf32>, i32 -> vector<8x384xf32>
    %c48_366 = arith.constant 48 : index
    %c0_367 = arith.constant 0 : index
    %362 = vector.load %arg24[%c48_366, %c0_367] : memref<144x384xf32, #tpu.memory_space<vmem>>, vector<8x384xf32>
    tpu.vector_store %arg24[%c48_366, %c0_367], %361 {strides = array<i32>} : memref<144x384xf32, #tpu.memory_space<vmem>>, vector<8x384xf32>,
    %c366_i32_368 = arith.constant 366 : i32
    %363 = tpu.dynamic_rotate %345 by %c366_i32_368 dim 1 : vector<8x384xf32>, i32 -> vector<8x384xf32>
    %c56_369 = arith.constant 56 : index
    %c0_370 = arith.constant 0 : index
    %364 = vector.load %arg24[%c56_369, %c0_370] : memref<144x384xf32, #tpu.memory_space<vmem>>, vector<8x384xf32>
    tpu.vector_store %arg24[%c56_369, %c0_370], %363 {strides = array<i32>} : memref<144x384xf32, #tpu.memory_space<vmem>>, vector<8x384xf32>,
    %c365_i32_371 = arith.constant 365 : i32
    %365 = tpu.dynamic_rotate %345 by %c365_i32_371 dim 1 : vector<8x384xf32>, i32 -> vector<8x384xf32>
    %c64_372 = arith.constant 64 : index
    %c0_373 = arith.constant 0 : index
    %366 = vector.load %arg24[%c64_372, %c0_373] : memref<144x384xf32, #tpu.memory_space<vmem>>, vector<8x384xf32>
    tpu.vector_store %arg24[%c64_372, %c0_373], %365 {strides = array<i32>} : memref<144x384xf32, #tpu.memory_space<vmem>>, vector<8x384xf32>,
    %c0_374 = arith.constant 0 : index
    %c0_375 = arith.constant 0 : index
    %367 = vector.load %arg24[%c0_374, %c0_375] : memref<144x384xf32, #tpu.memory_space<vmem>>, vector<72x384xf32>
    %cst_376 = arith.constant dense<0.000000e+00> : vector<8x384xf32>
    %368 = tpu.matmul %347, %367, %cst_376 {dimension_numbers = #tpu.dot_dimension_numbers<[1], [0], [0], [1], [0, 0, 1, 1], [], []>} : vector<8x72xf32>, vector<72x384xf32>, vector<8x384xf32> -> vector<8x384xf32>
    %369 = vector.broadcast %349 : vector<8x1xf32> to vector<8x384xf32>
    %370 = arith.addf %368, %369 : vector<8x384xf32>
    %371 = arith.mulf %370, %4 : vector<8x384xf32>
    %cst_377 = arith.constant 0.000000e+00 : f32
    %372 = vector.broadcast %cst_377 : f32 to vector<8x384xf32>
    %373 = arith.cmpf oge, %314, %372 : vector<8x384xf32>
    %cst_378 = arith.constant 1.000000e-01 : f32
    %374 = vector.broadcast %cst_378 : f32 to vector<8x384xf32>
    %375 = arith.mulf %374, %314 : vector<8x384xf32>
    %376 = arith.select %373, %314, %375 : vector<8x384xi1>, vector<8x384xf32>
    %cst_379 = arith.constant 0.000000e+00 : f32
    %377 = vector.broadcast %cst_379 : f32 to vector<8x384xf32>
    %378 = arith.cmpf oge, %371, %377 : vector<8x384xf32>
    %cst_380 = arith.constant 1.000000e-01 : f32
    %379 = vector.broadcast %cst_380 : f32 to vector<8x384xf32>
    %380 = arith.mulf %379, %371 : vector<8x384xf32>
    %381 = arith.select %378, %371, %380 : vector<8x384xi1>, vector<8x384xf32>
    %c1_381 = arith.constant 1 : index
    %c0_382 = arith.constant 0 : index
    %c0_383 = arith.constant 0 : index
    %382 = vector.load %arg12[%c1_381, %c0_382, %c0_383] : memref<2x8x144xf32, #tpu.memory_space<vmem>>, vector<1x8x144xf32>
    %383 = vector.shape_cast %382 : vector<1x8x144xf32> to vector<8x144xf32>
    %c1_384 = arith.constant 1 : index
    %c0_385 = arith.constant 0 : index
    %c0_386 = arith.constant 0 : index
    %384 = vector.load %arg13[%c1_384, %c0_385, %c0_386] : memref<2x8x1xf32, #tpu.memory_space<vmem>>, vector<1x8x1xf32>
    %385 = vector.shape_cast %384 : vector<1x8x1xf32> to vector<8x1xf32>
    %c19_i32_387 = arith.constant 19 : i32
    %386 = tpu.dynamic_rotate %376 by %c19_i32_387 dim 1 : vector<8x384xf32>, i32 -> vector<8x384xf32>
    %c0_388 = arith.constant 0 : index
    %c0_389 = arith.constant 0 : index
    %387 = vector.load %arg24[%c0_388, %c0_389] : memref<144x384xf32, #tpu.memory_space<vmem>>, vector<8x384xf32>
    tpu.vector_store %arg24[%c0_388, %c0_389], %386 {strides = array<i32>} : memref<144x384xf32, #tpu.memory_space<vmem>>, vector<8x384xf32>,
    %c18_i32_390 = arith.constant 18 : i32
    %388 = tpu.dynamic_rotate %376 by %c18_i32_390 dim 1 : vector<8x384xf32>, i32 -> vector<8x384xf32>
    %c8_391 = arith.constant 8 : index
    %c0_392 = arith.constant 0 : index
    %389 = vector.load %arg24[%c8_391, %c0_392] : memref<144x384xf32, #tpu.memory_space<vmem>>, vector<8x384xf32>
    tpu.vector_store %arg24[%c8_391, %c0_392], %388 {strides = array<i32>} : memref<144x384xf32, #tpu.memory_space<vmem>>, vector<8x384xf32>,
    %c17_i32_393 = arith.constant 17 : i32
    %390 = tpu.dynamic_rotate %376 by %c17_i32_393 dim 1 : vector<8x384xf32>, i32 -> vector<8x384xf32>
    %c16_394 = arith.constant 16 : index
    %c0_395 = arith.constant 0 : index
    %391 = vector.load %arg24[%c16_394, %c0_395] : memref<144x384xf32, #tpu.memory_space<vmem>>, vector<8x384xf32>
    tpu.vector_store %arg24[%c16_394, %c0_395], %390 {strides = array<i32>} : memref<144x384xf32, #tpu.memory_space<vmem>>, vector<8x384xf32>,
    %c1_i32_396 = arith.constant 1 : i32
    %392 = tpu.dynamic_rotate %376 by %c1_i32_396 dim 1 : vector<8x384xf32>, i32 -> vector<8x384xf32>
    %c24_397 = arith.constant 24 : index
    %c0_398 = arith.constant 0 : index
    %393 = vector.load %arg24[%c24_397, %c0_398] : memref<144x384xf32, #tpu.memory_space<vmem>>, vector<8x384xf32>
    tpu.vector_store %arg24[%c24_397, %c0_398], %392 {strides = array<i32>} : memref<144x384xf32, #tpu.memory_space<vmem>>, vector<8x384xf32>,
    %c32_399 = arith.constant 32 : index
    %c0_400 = arith.constant 0 : index
    %394 = vector.load %arg24[%c32_399, %c0_400] : memref<144x384xf32, #tpu.memory_space<vmem>>, vector<8x384xf32>
    tpu.vector_store %arg24[%c32_399, %c0_400], %376 {strides = array<i32>} : memref<144x384xf32, #tpu.memory_space<vmem>>, vector<8x384xf32>,
    %c383_i32_401 = arith.constant 383 : i32
    %395 = tpu.dynamic_rotate %376 by %c383_i32_401 dim 1 : vector<8x384xf32>, i32 -> vector<8x384xf32>
    %c40_402 = arith.constant 40 : index
    %c0_403 = arith.constant 0 : index
    %396 = vector.load %arg24[%c40_402, %c0_403] : memref<144x384xf32, #tpu.memory_space<vmem>>, vector<8x384xf32>
    tpu.vector_store %arg24[%c40_402, %c0_403], %395 {strides = array<i32>} : memref<144x384xf32, #tpu.memory_space<vmem>>, vector<8x384xf32>,
    %c367_i32_404 = arith.constant 367 : i32
    %397 = tpu.dynamic_rotate %376 by %c367_i32_404 dim 1 : vector<8x384xf32>, i32 -> vector<8x384xf32>
    %c48_405 = arith.constant 48 : index
    %c0_406 = arith.constant 0 : index
    %398 = vector.load %arg24[%c48_405, %c0_406] : memref<144x384xf32, #tpu.memory_space<vmem>>, vector<8x384xf32>
    tpu.vector_store %arg24[%c48_405, %c0_406], %397 {strides = array<i32>} : memref<144x384xf32, #tpu.memory_space<vmem>>, vector<8x384xf32>,
    %c366_i32_407 = arith.constant 366 : i32
    %399 = tpu.dynamic_rotate %376 by %c366_i32_407 dim 1 : vector<8x384xf32>, i32 -> vector<8x384xf32>
    %c56_408 = arith.constant 56 : index
    %c0_409 = arith.constant 0 : index
    %400 = vector.load %arg24[%c56_408, %c0_409] : memref<144x384xf32, #tpu.memory_space<vmem>>, vector<8x384xf32>
    tpu.vector_store %arg24[%c56_408, %c0_409], %399 {strides = array<i32>} : memref<144x384xf32, #tpu.memory_space<vmem>>, vector<8x384xf32>,
    %c365_i32_410 = arith.constant 365 : i32
    %401 = tpu.dynamic_rotate %376 by %c365_i32_410 dim 1 : vector<8x384xf32>, i32 -> vector<8x384xf32>
    %c64_411 = arith.constant 64 : index
    %c0_412 = arith.constant 0 : index
    %402 = vector.load %arg24[%c64_411, %c0_412] : memref<144x384xf32, #tpu.memory_space<vmem>>, vector<8x384xf32>
    tpu.vector_store %arg24[%c64_411, %c0_412], %401 {strides = array<i32>} : memref<144x384xf32, #tpu.memory_space<vmem>>, vector<8x384xf32>,
    %c19_i32_413 = arith.constant 19 : i32
    %403 = tpu.dynamic_rotate %381 by %c19_i32_413 dim 1 : vector<8x384xf32>, i32 -> vector<8x384xf32>
    %c72_414 = arith.constant 72 : index
    %c0_415 = arith.constant 0 : index
    %404 = vector.load %arg24[%c72_414, %c0_415] : memref<144x384xf32, #tpu.memory_space<vmem>>, vector<8x384xf32>
    tpu.vector_store %arg24[%c72_414, %c0_415], %403 {strides = array<i32>} : memref<144x384xf32, #tpu.memory_space<vmem>>, vector<8x384xf32>,
    %c18_i32_416 = arith.constant 18 : i32
    %405 = tpu.dynamic_rotate %381 by %c18_i32_416 dim 1 : vector<8x384xf32>, i32 -> vector<8x384xf32>
    %c80_417 = arith.constant 80 : index
    %c0_418 = arith.constant 0 : index
    %406 = vector.load %arg24[%c80_417, %c0_418] : memref<144x384xf32, #tpu.memory_space<vmem>>, vector<8x384xf32>
    tpu.vector_store %arg24[%c80_417, %c0_418], %405 {strides = array<i32>} : memref<144x384xf32, #tpu.memory_space<vmem>>, vector<8x384xf32>,
    %c17_i32_419 = arith.constant 17 : i32
    %407 = tpu.dynamic_rotate %381 by %c17_i32_419 dim 1 : vector<8x384xf32>, i32 -> vector<8x384xf32>
    %c88_420 = arith.constant 88 : index
    %c0_421 = arith.constant 0 : index
    %408 = vector.load %arg24[%c88_420, %c0_421] : memref<144x384xf32, #tpu.memory_space<vmem>>, vector<8x384xf32>
    tpu.vector_store %arg24[%c88_420, %c0_421], %407 {strides = array<i32>} : memref<144x384xf32, #tpu.memory_space<vmem>>, vector<8x384xf32>,
    %c1_i32_422 = arith.constant 1 : i32
    %409 = tpu.dynamic_rotate %381 by %c1_i32_422 dim 1 : vector<8x384xf32>, i32 -> vector<8x384xf32>
    %c96_423 = arith.constant 96 : index
    %c0_424 = arith.constant 0 : index
    %410 = vector.load %arg24[%c96_423, %c0_424] : memref<144x384xf32, #tpu.memory_space<vmem>>, vector<8x384xf32>
    tpu.vector_store %arg24[%c96_423, %c0_424], %409 {strides = array<i32>} : memref<144x384xf32, #tpu.memory_space<vmem>>, vector<8x384xf32>,
    %c104_425 = arith.constant 104 : index
    %c0_426 = arith.constant 0 : index
    %411 = vector.load %arg24[%c104_425, %c0_426] : memref<144x384xf32, #tpu.memory_space<vmem>>, vector<8x384xf32>
    tpu.vector_store %arg24[%c104_425, %c0_426], %381 {strides = array<i32>} : memref<144x384xf32, #tpu.memory_space<vmem>>, vector<8x384xf32>,
    %c383_i32_427 = arith.constant 383 : i32
    %412 = tpu.dynamic_rotate %381 by %c383_i32_427 dim 1 : vector<8x384xf32>, i32 -> vector<8x384xf32>
    %c112_428 = arith.constant 112 : index
    %c0_429 = arith.constant 0 : index
    %413 = vector.load %arg24[%c112_428, %c0_429] : memref<144x384xf32, #tpu.memory_space<vmem>>, vector<8x384xf32>
    tpu.vector_store %arg24[%c112_428, %c0_429], %412 {strides = array<i32>} : memref<144x384xf32, #tpu.memory_space<vmem>>, vector<8x384xf32>,
    %c367_i32_430 = arith.constant 367 : i32
    %414 = tpu.dynamic_rotate %381 by %c367_i32_430 dim 1 : vector<8x384xf32>, i32 -> vector<8x384xf32>
    %c120_431 = arith.constant 120 : index
    %c0_432 = arith.constant 0 : index
    %415 = vector.load %arg24[%c120_431, %c0_432] : memref<144x384xf32, #tpu.memory_space<vmem>>, vector<8x384xf32>
    tpu.vector_store %arg24[%c120_431, %c0_432], %414 {strides = array<i32>} : memref<144x384xf32, #tpu.memory_space<vmem>>, vector<8x384xf32>,
    %c366_i32_433 = arith.constant 366 : i32
    %416 = tpu.dynamic_rotate %381 by %c366_i32_433 dim 1 : vector<8x384xf32>, i32 -> vector<8x384xf32>
    %c128_434 = arith.constant 128 : index
    %c0_435 = arith.constant 0 : index
    %417 = vector.load %arg24[%c128_434, %c0_435] : memref<144x384xf32, #tpu.memory_space<vmem>>, vector<8x384xf32>
    tpu.vector_store %arg24[%c128_434, %c0_435], %416 {strides = array<i32>} : memref<144x384xf32, #tpu.memory_space<vmem>>, vector<8x384xf32>,
    %c365_i32_436 = arith.constant 365 : i32
    %418 = tpu.dynamic_rotate %381 by %c365_i32_436 dim 1 : vector<8x384xf32>, i32 -> vector<8x384xf32>
    %c136_437 = arith.constant 136 : index
    %c0_438 = arith.constant 0 : index
    %419 = vector.load %arg24[%c136_437, %c0_438] : memref<144x384xf32, #tpu.memory_space<vmem>>, vector<8x384xf32>
    tpu.vector_store %arg24[%c136_437, %c0_438], %418 {strides = array<i32>} : memref<144x384xf32, #tpu.memory_space<vmem>>, vector<8x384xf32>,
    %c0_439 = arith.constant 0 : index
    %c0_440 = arith.constant 0 : index
    %420 = vector.load %arg24[%c0_439, %c0_440] : memref<144x384xf32, #tpu.memory_space<vmem>>, vector<144x384xf32>
    %cst_441 = arith.constant dense<0.000000e+00> : vector<8x384xf32>
    %421 = tpu.matmul %383, %420, %cst_441 {dimension_numbers = #tpu.dot_dimension_numbers<[1], [0], [0], [1], [0, 0, 1, 1], [], []>} : vector<8x144xf32>, vector<144x384xf32>, vector<8x384xf32> -> vector<8x384xf32>
    %422 = vector.broadcast %385 : vector<8x1xf32> to vector<8x384xf32>
    %423 = arith.addf %421, %422 : vector<8x384xf32>
    %424 = arith.mulf %423, %2 : vector<8x384xf32>
    %c1_442 = arith.constant 1 : index
    %c0_443 = arith.constant 0 : index
    %c0_444 = arith.constant 0 : index
    %425 = vector.load %arg14[%c1_442, %c0_443, %c0_444] : memref<2x8x2xf32, #tpu.memory_space<vmem>>, vector<1x8x2xf32>
    %426 = vector.shape_cast %425 : vector<1x8x2xf32> to vector<8x2xf32>
    %c1_445 = arith.constant 1 : index
    %c0_446 = arith.constant 0 : index
    %c0_447 = arith.constant 0 : index
    %427 = vector.load %arg15[%c1_445, %c0_446, %c0_447] : memref<2x1x2xf32, #tpu.memory_space<vmem>>, vector<1x1x2xf32>
    %428 = vector.shape_cast %427 : vector<1x1x2xf32> to vector<1x2xf32>
    %c1_448 = arith.constant 1 : index
    %c0_449 = arith.constant 0 : index
    %c0_450 = arith.constant 0 : index
    %429 = vector.load %arg16[%c1_448, %c0_449, %c0_450] : memref<2x8x2xf32, #tpu.memory_space<vmem>>, vector<1x8x2xf32>
    %430 = vector.shape_cast %429 : vector<1x8x2xf32> to vector<8x2xf32>
    %c1_451 = arith.constant 1 : index
    %c0_452 = arith.constant 0 : index
    %c0_453 = arith.constant 0 : index
    %431 = vector.load %arg17[%c1_451, %c0_452, %c0_453] : memref<2x8x1xf32, #tpu.memory_space<vmem>>, vector<1x8x1xf32>
    %432 = vector.shape_cast %431 : vector<1x8x1xf32> to vector<8x1xf32>
    %cst_454 = arith.constant dense<0.000000e+00> : vector<8xf32>
    %433 = vector.multi_reduction <add>, %424, %cst_454 [1] : vector<8x384xf32> to vector<8xf32>
    %434 = vector.shape_cast %433 : vector<8xf32> to vector<8x1xf32>
    %cst_455 = arith.constant 3.906250e-03 : f32
    %435 = vector.broadcast %cst_455 : f32 to vector<8x1xf32>
    %436 = arith.mulf %434, %435 : vector<8x1xf32>
    %437 = vector.broadcast %436 : vector<8x1xf32> to vector<8x2xf32>
    %438 = arith.mulf %426, %437 : vector<8x2xf32>
    %cst_456 = arith.constant dense<0.000000e+00> : vector<2xf32>
    %439 = vector.multi_reduction <add>, %438, %cst_456 [0] : vector<8x2xf32> to vector<2xf32>
    %440 = vector.shape_cast %439 : vector<2xf32> to vector<1x2xf32>
    %441 = arith.addf %440, %428 : vector<1x2xf32>
    %cst_457 = arith.constant 0.000000e+00 : f32
    %442 = vector.broadcast %cst_457 : f32 to vector<1x2xf32>
    %443 = arith.maximumf %441, %442 : vector<1x2xf32>
    %444 = vector.broadcast %443 : vector<1x2xf32> to vector<8x2xf32>
    %445 = arith.mulf %430, %444 : vector<8x2xf32>
    %cst_458 = arith.constant dense<0.000000e+00> : vector<8xf32>
    %446 = vector.multi_reduction <add>, %445, %cst_458 [1] : vector<8x2xf32> to vector<8xf32>
    %447 = vector.shape_cast %446 : vector<8xf32> to vector<8x1xf32>
    %448 = arith.addf %447, %432 : vector<8x1xf32>
    %449 = math.absf %448 : vector<8x1xf32>
    %cst_459 = arith.constant 0.000000e+00 : f32
    %450 = vector.broadcast %cst_459 : f32 to vector<8x1xf32>
    %451 = arith.subf %450, %449 : vector<8x1xf32>
    %452 = math.exp %451 : vector<8x1xf32>
    %cst_460 = arith.constant 0.000000e+00 : f32
    %453 = vector.broadcast %cst_460 : f32 to vector<8x1xf32>
    %454 = arith.cmpf oge, %448, %453 : vector<8x1xf32>
    %cst_461 = arith.constant 1.000000e+00 : f32
    %455 = vector.broadcast %cst_461 : f32 to vector<8x1xf32>
    %456 = arith.addf %455, %452 : vector<8x1xf32>
    %cst_462 = arith.constant 1.000000e+00 : f32
    %457 = vector.broadcast %cst_462 : f32 to vector<8x1xf32>
    %458 = arith.divf %457, %456 : vector<8x1xf32>
    %cst_463 = arith.constant 1.000000e+00 : f32
    %459 = vector.broadcast %cst_463 : f32 to vector<8x1xf32>
    %460 = arith.addf %459, %452 : vector<8x1xf32>
    %461 = arith.divf %452, %460 : vector<8x1xf32>
    %462 = arith.select %454, %458, %461 : vector<8x1xi1>, vector<8x1xf32>
    %463 = vector.broadcast %462 : vector<8x1xf32> to vector<8x384xf32>
    %464 = arith.mulf %424, %463 : vector<8x384xf32>
    %c1_464 = arith.constant 1 : index
    %c0_465 = arith.constant 0 : index
    %c0_466 = arith.constant 0 : index
    %465 = vector.load %arg18[%c1_464, %c0_465, %c0_466] : memref<2x8x2xf32, #tpu.memory_space<vmem>>, vector<1x8x2xf32>
    %466 = vector.shape_cast %465 : vector<1x8x2xf32> to vector<8x2xf32>
    %c1_467 = arith.constant 1 : index
    %c0_468 = arith.constant 0 : index
    %c0_469 = arith.constant 0 : index
    %467 = vector.load %arg19[%c1_467, %c0_468, %c0_469] : memref<2x1x2xf32, #tpu.memory_space<vmem>>, vector<1x1x2xf32>
    %468 = vector.shape_cast %467 : vector<1x1x2xf32> to vector<1x2xf32>
    %c1_470 = arith.constant 1 : index
    %c0_471 = arith.constant 0 : index
    %c0_472 = arith.constant 0 : index
    %469 = vector.load %arg20[%c1_470, %c0_471, %c0_472] : memref<2x8x2xf32, #tpu.memory_space<vmem>>, vector<1x8x2xf32>
    %470 = vector.shape_cast %469 : vector<1x8x2xf32> to vector<8x2xf32>
    %c1_473 = arith.constant 1 : index
    %c0_474 = arith.constant 0 : index
    %c0_475 = arith.constant 0 : index
    %471 = vector.load %arg21[%c1_473, %c0_474, %c0_475] : memref<2x8x1xf32, #tpu.memory_space<vmem>>, vector<1x8x1xf32>
    %472 = vector.shape_cast %471 : vector<1x8x1xf32> to vector<8x1xf32>
    %cst_476 = arith.constant dense<0.000000e+00> : vector<8xf32>
    %473 = vector.multi_reduction <add>, %371, %cst_476 [1] : vector<8x384xf32> to vector<8xf32>
    %474 = vector.shape_cast %473 : vector<8xf32> to vector<8x1xf32>
    %cst_477 = arith.constant 3.906250e-03 : f32
    %475 = vector.broadcast %cst_477 : f32 to vector<8x1xf32>
    %476 = arith.mulf %474, %475 : vector<8x1xf32>
    %477 = vector.broadcast %476 : vector<8x1xf32> to vector<8x2xf32>
    %478 = arith.mulf %466, %477 : vector<8x2xf32>
    %cst_478 = arith.constant dense<0.000000e+00> : vector<2xf32>
    %479 = vector.multi_reduction <add>, %478, %cst_478 [0] : vector<8x2xf32> to vector<2xf32>
    %480 = vector.shape_cast %479 : vector<2xf32> to vector<1x2xf32>
    %481 = arith.addf %480, %468 : vector<1x2xf32>
    %cst_479 = arith.constant 0.000000e+00 : f32
    %482 = vector.broadcast %cst_479 : f32 to vector<1x2xf32>
    %483 = arith.maximumf %481, %482 : vector<1x2xf32>
    %484 = vector.broadcast %483 : vector<1x2xf32> to vector<8x2xf32>
    %485 = arith.mulf %470, %484 : vector<8x2xf32>
    %cst_480 = arith.constant dense<0.000000e+00> : vector<8xf32>
    %486 = vector.multi_reduction <add>, %485, %cst_480 [1] : vector<8x2xf32> to vector<8xf32>
    %487 = vector.shape_cast %486 : vector<8xf32> to vector<8x1xf32>
    %488 = arith.addf %487, %472 : vector<8x1xf32>
    %489 = math.absf %488 : vector<8x1xf32>
    %cst_481 = arith.constant 0.000000e+00 : f32
    %490 = vector.broadcast %cst_481 : f32 to vector<8x1xf32>
    %491 = arith.subf %490, %489 : vector<8x1xf32>
    %492 = math.exp %491 : vector<8x1xf32>
    %cst_482 = arith.constant 0.000000e+00 : f32
    %493 = vector.broadcast %cst_482 : f32 to vector<8x1xf32>
    %494 = arith.cmpf oge, %488, %493 : vector<8x1xf32>
    %cst_483 = arith.constant 1.000000e+00 : f32
    %495 = vector.broadcast %cst_483 : f32 to vector<8x1xf32>
    %496 = arith.addf %495, %492 : vector<8x1xf32>
    %cst_484 = arith.constant 1.000000e+00 : f32
    %497 = vector.broadcast %cst_484 : f32 to vector<8x1xf32>
    %498 = arith.divf %497, %496 : vector<8x1xf32>
    %cst_485 = arith.constant 1.000000e+00 : f32
    %499 = vector.broadcast %cst_485 : f32 to vector<8x1xf32>
    %500 = arith.addf %499, %492 : vector<8x1xf32>
    %501 = arith.divf %492, %500 : vector<8x1xf32>
    %502 = arith.select %494, %498, %501 : vector<8x1xi1>, vector<8x1xf32>
    %503 = vector.broadcast %502 : vector<8x1xf32> to vector<8x384xf32>
    %504 = arith.mulf %371, %503 : vector<8x384xf32>
    %505 = arith.addf %256, %464 : vector<8x384xf32>
    %506 = arith.addf %257, %504 : vector<8x384xf32>
    %507 = arith.addf %505, %505 : vector<8x384xf32>
    %c0_486 = arith.constant 0 : index
    %c0_487 = arith.constant 0 : index
    %c0_488 = arith.constant 0 : index
    %508 = vector.load %arg22[%c0_486, %c0_487, %c0_488] : memref<1x8x384xf32, #tpu.memory_space<vmem>>, vector<1x8x384xf32>
    %509 = vector.shape_cast %508 : vector<1x8x384xf32> to vector<8x384xf32>
    %510 = vector.shape_cast %507 : vector<8x384xf32> to vector<1x8x384xf32>
    tpu.vector_store %arg22[%c0_486, %c0_487, %c0_488], %510 {strides = array<i32>} : memref<1x8x384xf32, #tpu.memory_space<vmem>>, vector<1x8x384xf32>,
    %511 = arith.addf %506, %506 : vector<8x384xf32>
    %c0_489 = arith.constant 0 : index
    %c0_490 = arith.constant 0 : index
    %c0_491 = arith.constant 0 : index
    %512 = vector.load %arg23[%c0_489, %c0_490, %c0_491] : memref<1x8x384xf32, #tpu.memory_space<vmem>>, vector<1x8x384xf32>
    %513 = vector.shape_cast %512 : vector<1x8x384xf32> to vector<8x384xf32>
    %514 = vector.shape_cast %511 : vector<8x384xf32> to vector<1x8x384xf32>
    tpu.vector_store %arg23[%c0_489, %c0_490, %c0_491], %514 {strides = array<i32>} : memref<1x8x384xf32, #tpu.memory_space<vmem>>, vector<1x8x384xf32>,
    return
  }
  func.func @transform_0(%arg0: i32) -> (i32, i32) {
    %c0_i32 = arith.constant 0 : i32
    %c0_i32_0 = arith.constant 0 : i32
    %c0_i32_1 = arith.constant 0 : i32
    return %c0_i32, %c0_i32_0 : i32, i32
  }
  func.func @transform_1(%arg0: i32) -> (i32, i32, i32) {
    %c0_i32 = arith.constant 0 : i32
    %c0_i32_0 = arith.constant 0 : i32
    %c0_i32_1 = arith.constant 0 : i32
    return %arg0, %c0_i32, %c0_i32_0 : i32, i32, i32
  }
  func.func @transform_2(%arg0: i32) -> (i32, i32, i32) {
    %c0_i32 = arith.constant 0 : i32
    %c0_i32_0 = arith.constant 0 : i32
    %c0_i32_1 = arith.constant 0 : i32
    return %arg0, %c0_i32, %c0_i32_0 : i32, i32, i32
  }
  func.func @transform_3(%arg0: i32) -> (i32, i32, i32) {
    %c0_i32 = arith.constant 0 : i32
    %c0_i32_0 = arith.constant 0 : i32
    %c0_i32_1 = arith.constant 0 : i32
    %c0_i32_2 = arith.constant 0 : i32
    return %c0_i32, %c0_i32_0, %c0_i32_1 : i32, i32, i32
  }
  func.func @transform_4(%arg0: i32) -> (i32, i32, i32) {
    %c0_i32 = arith.constant 0 : i32
    %c0_i32_0 = arith.constant 0 : i32
    %c0_i32_1 = arith.constant 0 : i32
    %c0_i32_2 = arith.constant 0 : i32
    return %c0_i32, %c0_i32_0, %c0_i32_1 : i32, i32, i32
  }
  func.func @transform_5(%arg0: i32) -> (i32, i32, i32) {
    %c0_i32 = arith.constant 0 : i32
    %c0_i32_0 = arith.constant 0 : i32
    %c0_i32_1 = arith.constant 0 : i32
    %c0_i32_2 = arith.constant 0 : i32
    return %c0_i32, %c0_i32_0, %c0_i32_1 : i32, i32, i32
  }
  func.func @transform_6(%arg0: i32) -> (i32, i32, i32) {
    %c0_i32 = arith.constant 0 : i32
    %c0_i32_0 = arith.constant 0 : i32
    %c0_i32_1 = arith.constant 0 : i32
    %c0_i32_2 = arith.constant 0 : i32
    return %c0_i32, %c0_i32_0, %c0_i32_1 : i32, i32, i32
  }
  func.func @transform_7(%arg0: i32) -> (i32, i32, i32) {
    %c0_i32 = arith.constant 0 : i32
    %c0_i32_0 = arith.constant 0 : i32
    %c0_i32_1 = arith.constant 0 : i32
    %c0_i32_2 = arith.constant 0 : i32
    return %c0_i32, %c0_i32_0, %c0_i32_1 : i32, i32, i32
  }
  func.func @transform_8(%arg0: i32) -> (i32, i32, i32) {
    %c0_i32 = arith.constant 0 : i32
    %c0_i32_0 = arith.constant 0 : i32
    %c0_i32_1 = arith.constant 0 : i32
    %c0_i32_2 = arith.constant 0 : i32
    return %c0_i32, %c0_i32_0, %c0_i32_1 : i32, i32, i32
  }
  func.func @transform_9(%arg0: i32) -> (i32, i32, i32) {
    %c0_i32 = arith.constant 0 : i32
    %c0_i32_0 = arith.constant 0 : i32
    %c0_i32_1 = arith.constant 0 : i32
    %c0_i32_2 = arith.constant 0 : i32
    return %c0_i32, %c0_i32_0, %c0_i32_1 : i32, i32, i32
  }
  func.func @transform_10(%arg0: i32) -> (i32, i32, i32) {
    %c0_i32 = arith.constant 0 : i32
    %c0_i32_0 = arith.constant 0 : i32
    %c0_i32_1 = arith.constant 0 : i32
    %c0_i32_2 = arith.constant 0 : i32
    return %c0_i32, %c0_i32_0, %c0_i32_1 : i32, i32, i32
  }
  func.func @transform_11(%arg0: i32) -> (i32, i32, i32) {
    %c0_i32 = arith.constant 0 : i32
    %c0_i32_0 = arith.constant 0 : i32
    %c0_i32_1 = arith.constant 0 : i32
    %c0_i32_2 = arith.constant 0 : i32
    return %c0_i32, %c0_i32_0, %c0_i32_1 : i32, i32, i32
  }
  func.func @transform_12(%arg0: i32) -> (i32, i32, i32) {
    %c0_i32 = arith.constant 0 : i32
    %c0_i32_0 = arith.constant 0 : i32
    %c0_i32_1 = arith.constant 0 : i32
    %c0_i32_2 = arith.constant 0 : i32
    return %c0_i32, %c0_i32_0, %c0_i32_1 : i32, i32, i32
  }
  func.func @transform_13(%arg0: i32) -> (i32, i32, i32) {
    %c0_i32 = arith.constant 0 : i32
    %c0_i32_0 = arith.constant 0 : i32
    %c0_i32_1 = arith.constant 0 : i32
    %c0_i32_2 = arith.constant 0 : i32
    return %c0_i32, %c0_i32_0, %c0_i32_1 : i32, i32, i32
  }
  func.func @transform_14(%arg0: i32) -> (i32, i32, i32) {
    %c0_i32 = arith.constant 0 : i32
    %c0_i32_0 = arith.constant 0 : i32
    %c0_i32_1 = arith.constant 0 : i32
    %c0_i32_2 = arith.constant 0 : i32
    return %c0_i32, %c0_i32_0, %c0_i32_1 : i32, i32, i32
  }
  func.func @transform_15(%arg0: i32) -> (i32, i32, i32) {
    %c0_i32 = arith.constant 0 : i32
    %c0_i32_0 = arith.constant 0 : i32
    %c0_i32_1 = arith.constant 0 : i32
    %c0_i32_2 = arith.constant 0 : i32
    return %c0_i32, %c0_i32_0, %c0_i32_1 : i32, i32, i32
  }
  func.func @transform_16(%arg0: i32) -> (i32, i32, i32) {
    %c0_i32 = arith.constant 0 : i32
    %c0_i32_0 = arith.constant 0 : i32
    %c0_i32_1 = arith.constant 0 : i32
    %c0_i32_2 = arith.constant 0 : i32
    return %c0_i32, %c0_i32_0, %c0_i32_1 : i32, i32, i32
  }
  func.func @transform_17(%arg0: i32) -> (i32, i32, i32) {
    %c0_i32 = arith.constant 0 : i32
    %c0_i32_0 = arith.constant 0 : i32
    %c0_i32_1 = arith.constant 0 : i32
    %c0_i32_2 = arith.constant 0 : i32
    return %c0_i32, %c0_i32_0, %c0_i32_1 : i32, i32, i32
  }
  func.func @transform_18(%arg0: i32) -> (i32, i32, i32) {
    %c0_i32 = arith.constant 0 : i32
    %c0_i32_0 = arith.constant 0 : i32
    %c0_i32_1 = arith.constant 0 : i32
    %c0_i32_2 = arith.constant 0 : i32
    return %c0_i32, %c0_i32_0, %c0_i32_1 : i32, i32, i32
  }
  func.func @transform_19(%arg0: i32) -> (i32, i32, i32) {
    %c0_i32 = arith.constant 0 : i32
    %c0_i32_0 = arith.constant 0 : i32
    %c0_i32_1 = arith.constant 0 : i32
    %c0_i32_2 = arith.constant 0 : i32
    return %c0_i32, %c0_i32_0, %c0_i32_1 : i32, i32, i32
  }
  func.func @transform_20(%arg0: i32) -> (i32, i32, i32) {
    %c0_i32 = arith.constant 0 : i32
    %c0_i32_0 = arith.constant 0 : i32
    %c0_i32_1 = arith.constant 0 : i32
    %c0_i32_2 = arith.constant 0 : i32
    return %c0_i32, %c0_i32_0, %c0_i32_1 : i32, i32, i32
  }
  func.func @transform_21(%arg0: i32) -> (i32, i32, i32) {
    %c0_i32 = arith.constant 0 : i32
    %c0_i32_0 = arith.constant 0 : i32
    %c0_i32_1 = arith.constant 0 : i32
    return %arg0, %c0_i32, %c0_i32_0 : i32, i32, i32
  }
  func.func @transform_22(%arg0: i32) -> (i32, i32, i32) {
    %c0_i32 = arith.constant 0 : i32
    %c0_i32_0 = arith.constant 0 : i32
    %c0_i32_1 = arith.constant 0 : i32
    return %arg0, %c0_i32, %c0_i32_0 : i32, i32, i32
  }
}

</mosaic_0001>

<llo_original>
// kernel: dpcag_forward.1
$region0: #{dpcag_forward.1}
  #allocation0 [shape = 'u32[]', space=smem, size = 0x4, offset = 0x4, fixed_abs, tag = 'smem constant byte address 0x4 - core index']
  #allocation1 [shape = 'u32[72,128]{1,0:T(1,128)}', space=vmem, size = 0x9000, scoped, tag = 'internal scratch']
  #allocation2 [shape = 'f32[144,384]{1,0:T(8,128)}', space=vmem, size = 0x36000, scoped, tag = 'scratch operand']
  %s0 = inlined_call_operand.vmem [shape: f32[1,384], index: 0, kind: input, shape index: {}]
  %s1 = inlined_call_operand.vmem [shape: f32[2,8,384], index: 1, kind: input, shape index: {}, may-alias: {1,21}]
  %s2 = inlined_call_operand.vmem [shape: f32[2,8,384], index: 2, kind: input, shape index: {}, may-alias: {2,22}]
  %s3 = inlined_call_operand.vmem [shape: f32[2,8,72], index: 3, kind: input, shape index: {}]
  %s4 = inlined_call_operand.vmem [shape: f32[2,8,1], index: 4, kind: input, shape index: {}]
  %s5 = inlined_call_operand.vmem [shape: f32[2,8,72], index: 5, kind: input, shape index: {}]
  %s6 = inlined_call_operand.vmem [shape: f32[2,8,1], index: 6, kind: input, shape index: {}]
  %s7 = inlined_call_operand.vmem [shape: f32[2,8,72], index: 7, kind: input, shape index: {}]
  %s8 = inlined_call_operand.vmem [shape: f32[2,8,1], index: 8, kind: input, shape index: {}]
  %s9 = inlined_call_operand.vmem [shape: f32[2,8,72], index: 9, kind: input, shape index: {}]
  %s10 = inlined_call_operand.vmem [shape: f32[2,8,1], index: 10, kind: input, shape index: {}]
  %s11 = inlined_call_operand.vmem [shape: f32[2,8,144], index: 11, kind: input, shape index: {}]
  %s12 = inlined_call_operand.vmem [shape: f32[2,8,1], index: 12, kind: input, shape index: {}]
  %s13 = inlined_call_operand.vmem [shape: f32[2,8,2], index: 13, kind: input, shape index: {}]
  %s14 = inlined_call_operand.vmem [shape: f32[2,1,2], index: 14, kind: input, shape index: {}]
  %s15 = inlined_call_operand.vmem [shape: f32[2,8,2], index: 15, kind: input, shape index: {}]
  %s16 = inlined_call_operand.vmem [shape: f32[2,8,1], index: 16, kind: input, shape index: {}]
  %s17 = inlined_call_operand.vmem [shape: f32[2,8,2], index: 17, kind: input, shape index: {}]
  %s18 = inlined_call_operand.vmem [shape: f32[2,1,2], index: 18, kind: input, shape index: {}]
  %s19 = inlined_call_operand.vmem [shape: f32[2,8,2], index: 19, kind: input, shape index: {}]
  %s20 = inlined_call_operand.vmem [shape: f32[2,8,1], index: 20, kind: input, shape index: {}]
  %s21 = inlined_call_operand.vmem [shape: f32[2,8,384], index: 21, kind: output, shape index: {0}, may-alias: {1,21}]
  %s22 = inlined_call_operand.vmem [shape: f32[2,8,384], index: 22, kind: output, shape index: {1}, may-alias: {2,22}]
  %23 = xla_tuple %s21, %s22
  %s24 = sld [smem:[#allocation0]]
  $region125: #{dpcag_forward.1} parent=0
    _
  %s26 = ssub.s32 1, %s24
  %s27 = scalar_select 0, %s26, %s24
  loop: start=0, step=1, limit=4
  $region2: #{dpcag_forward.1} parent=0 // loop_pre_header
    _
  $region3: #{dpcag_forward.1} parent=0 // loop_header
    %s29 = sphi 0, %s33
    %p30 = scmp.ge.s32.totalorder %s29, 4
    %s37 = sphi 0, %s37
    %s39 = sphi 0, %s37
    %s40 = sphi 0, %s39
    %s54 = sphi 0, %s40
    %s60 = sphi 0, %s62
    %s63 = sphi 0, %s60
    %s64 = sphi 0, %s63
    %s80 = sphi 0, %s64
    %s86 = sphi 0, %s88
    %s89 = sphi 0, %s86
    %s90 = sphi 0, %s89
    %s106 = sphi 0, %s90
    %s110 = sphi 0, %s110
    %s112 = sphi 0, %s110
    %s113 = sphi 0, %s112
    %s127 = sphi 0, %s113
    %s131 = sphi 0, %s131
    %s133 = sphi 0, %s131
    %s134 = sphi 0, %s133
    %s148 = sphi 0, %s134
    %s152 = sphi 0, %s152
    %s154 = sphi 0, %s152
    %s155 = sphi 0, %s154
    %s169 = sphi 0, %s155
    %s173 = sphi 0, %s173
    %s175 = sphi 0, %s173
    %s176 = sphi 0, %s175
    %s190 = sphi 0, %s176
    %s194 = sphi 0, %s194
    %s196 = sphi 0, %s194
    %s197 = sphi 0, %s196
    %s211 = sphi 0, %s197
    %s215 = sphi 0, %s215
    %s217 = sphi 0, %s215
    %s218 = sphi 0, %s217
    %s232 = sphi 0, %s218
    %s236 = sphi 0, %s236
    %s238 = sphi 0, %s236
    %s239 = sphi 0, %s238
    %s253 = sphi 0, %s239
    %s257 = sphi 0, %s257
    %s259 = sphi 0, %s257
    %s260 = sphi 0, %s259
    %s274 = sphi 0, %s260
    %s278 = sphi 0, %s278
    %s280 = sphi 0, %s278
    %s281 = sphi 0, %s280
    %s295 = sphi 0, %s281
    %s299 = sphi 0, %s299
    %s301 = sphi 0, %s299
    %s302 = sphi 0, %s301
    %s316 = sphi 0, %s302
    %s320 = sphi 0, %s320
    %s322 = sphi 0, %s320
    %s323 = sphi 0, %s322
    %s337 = sphi 0, %s323
    %s341 = sphi 0, %s341
    %s343 = sphi 0, %s341
    %s344 = sphi 0, %s343
    %s358 = sphi 0, %s344
    %s362 = sphi 0, %s362
    %s364 = sphi 0, %s362
    %s365 = sphi 0, %s364
    %s379 = sphi 0, %s365
    %s383 = sphi 0, %s383
    %s385 = sphi 0, %s383
    %s386 = sphi 0, %s385
    %s400 = sphi 0, %s386
    %s404 = sphi 0, %s404
    %s406 = sphi 0, %s404
    %s407 = sphi 0, %s406
    %s421 = sphi 0, %s407
    %s425 = sphi 0, %s425
    %s427 = sphi 0, %s425
    %s428 = sphi 0, %s427
    %s442 = sphi 0, %s428
    %s446 = sphi 0, %s446
    %s448 = sphi 0, %s446
    %s449 = sphi 0, %s448
    %s463 = sphi 0, %s449
    %s467 = sphi 0, %s467
    %s469 = sphi 0, %s467
    %s470 = sphi 0, %s469
    %s484 = sphi 0, %s470
    %s490 = sphi 0, %s492
    %s493 = sphi 0, %s490
    %s494 = sphi 0, %s493
    %s510 = sphi 0, %s494
    %s516 = sphi 0, %s518
    %s519 = sphi 0, %s516
    %s520 = sphi 0, %s519
    %s536 = sphi 0, %s520
  $region4: #{dpcag_forward.1} parent=0 // loop_header_branch
    %32 = sbr.rel (%p30) target = $region8
  $region5: #{dpcag_forward.1} parent=0 // loop_body
    %s34 = ssub.s32 %s29, 1
    %s35 = ssub.s32 %s29, 2
    %s36 = sadd.s32 %s29, 1
    %s38 = sadd.s32 %s37, 1
    %p41 = scmp.eq.s32.totalorder %s29, 1
    %p42 = scmp.ne.s32.totalorder %s37, %s39
    %p43 = scmp.eq.s32.totalorder %s29, 0
    %p44 = por %p42, %p43
    %p45 = scmp.ne.s32.totalorder %s37, %s39
    %p46 = scmp.eq.s32.totalorder %s34, 1
    %p47 = por %p45, %p46
    %p48 = scmp.ne.s32.totalorder %s39, %s40
    %p49 = scmp.eq.s32.totalorder %s34, 0
    %p50 = por %p48, %p49
    %p51 = scmp.ne.s32.totalorder %s39, %s40
    %p52 = scmp.eq.s32.totalorder %s35, 1
    %p53 = por %p51, %p52
    %p55 = scmp.ne.s32.totalorder %s40, %s54
    %p56 = scmp.eq.s32.totalorder %s35, 0
    %p57 = por %p55, %p56
    %s58 = ssub.s32 %s29, %s36
    %p59 = scmp.eq.s32.totalorder %s58, 0
    %s61 = sadd.s32 %s60, 1
    %s62 = scalar_select %p59, %s60, %s61
    %p65 = pneg %p59
    %p66 = scmp.eq.s32.totalorder %s29, 1
    %p67 = por %p65, %p66
    %p68 = scmp.ne.s32.totalorder %s60, %s63
    %p69 = scmp.eq.s32.totalorder %s29, 0
    %p70 = por %p68, %p69
    %p71 = scmp.ne.s32.totalorder %s60, %s63
    %p72 = scmp.eq.s32.totalorder %s34, 1
    %p73 = por %p71, %p72
    %p74 = scmp.ne.s32.totalorder %s63, %s64
    %p75 = scmp.eq.s32.totalorder %s34, 0
    %p76 = por %p74, %p75
    %p77 = scmp.ne.s32.totalorder %s63, %s64
    %p78 = scmp.eq.s32.totalorder %s35, 1
    %p79 = por %p77, %p78
    %p81 = scmp.ne.s32.totalorder %s64, %s80
    %p82 = scmp.eq.s32.totalorder %s35, 0
    %p83 = por %p81, %p82
    %s84 = ssub.s32 %s29, %s36
    %p85 = scmp.eq.s32.totalorder %s84, 0
    %s87 = sadd.s32 %s86, 1
    %s88 = scalar_select %p85, %s86, %s87
    %p91 = pneg %p85
    %p92 = scmp.eq.s32.totalorder %s29, 1
    %p93 = por %p91, %p92
    %p94 = scmp.ne.s32.totalorder %s86, %s89
    %p95 = scmp.eq.s32.totalorder %s29, 0
    %p96 = por %p94, %p95
    %p97 = scmp.ne.s32.totalorder %s86, %s89
    %p98 = scmp.eq.s32.totalorder %s34, 1
    %p99 = por %p97, %p98
    %p100 = scmp.ne.s32.totalorder %s89, %s90
    %p101 = scmp.eq.s32.totalorder %s34, 0
    %p102 = por %p100, %p101
    %p103 = scmp.ne.s32.totalorder %s89, %s90
    %p104 = scmp.eq.s32.totalorder %s35, 1
    %p105 = por %p103, %p104
    %p107 = scmp.ne.s32.totalorder %s90, %s106
    %p108 = scmp.eq.s32.totalorder %s35, 0
    %p109 = por %p107, %p108
    %s111 = sadd.s32 %s110, 1
    %p114 = scmp.eq.s32.totalorder %s29, 1
    %p115 = scmp.ne.s32.totalorder %s110, %s112
    %p116 = scmp.eq.s32.totalorder %s29, 0
    %p117 = por %p115, %p116
    %p118 = scmp.ne.s32.totalorder %s110, %s112
    %p119 = scmp.eq.s32.totalorder %s34, 1
    %p120 = por %p118, %p119
    %p121 = scmp.ne.s32.totalorder %s112, %s113
    %p122 = scmp.eq.s32.totalorder %s34, 0
    %p123 = por %p121, %p122
    %p124 = scmp.ne.s32.totalorder %s112, %s113
    %p125 = scmp.eq.s32.totalorder %s35, 1
    %p126 = por %p124, %p125
    %p128 = scmp.ne.s32.totalorder %s113, %s127
    %p129 = scmp.eq.s32.totalorder %s35, 0
    %p130 = por %p128, %p129
    %s132 = sadd.s32 %s131, 1
    %p135 = scmp.eq.s32.totalorder %s29, 1
    %p136 = scmp.ne.s32.totalorder %s131, %s133
    %p137 = scmp.eq.s32.totalorder %s29, 0
    %p138 = por %p136, %p137
    %p139 = scmp.ne.s32.totalorder %s131, %s133
    %p140 = scmp.eq.s32.totalorder %s34, 1
    %p141 = por %p139, %p140
    %p142 = scmp.ne.s32.totalorder %s133, %s134
    %p143 = scmp.eq.s32.totalorder %s34, 0
    %p144 = por %p142, %p143
    %p145 = scmp.ne.s32.totalorder %s133, %s134
    %p146 = scmp.eq.s32.totalorder %s35, 1
    %p147 = por %p145, %p146
    %p149 = scmp.ne.s32.totalorder %s134, %s148
    %p150 = scmp.eq.s32.totalorder %s35, 0
    %p151 = por %p149, %p150
    %s153 = sadd.s32 %s152, 1
    %p156 = scmp.eq.s32.totalorder %s29, 1
    %p157 = scmp.ne.s32.totalorder %s152, %s154
    %p158 = scmp.eq.s32.totalorder %s29, 0
    %p159 = por %p157, %p158
    %p160 = scmp.ne.s32.totalorder %s152, %s154
    %p161 = scmp.eq.s32.totalorder %s34, 1
    %p162 = por %p160, %p161
    %p163 = scmp.ne.s32.totalorder %s154, %s155
    %p164 = scmp.eq.s32.totalorder %s34, 0
    %p165 = por %p163, %p164
    %p166 = scmp.ne.s32.totalorder %s154, %s155
    %p167 = scmp.eq.s32.totalorder %s35, 1
    %p168 = por %p166, %p167
    %p170 = scmp.ne.s32.totalorder %s155, %s169
    %p171 = scmp.eq.s32.totalorder %s35, 0
    %p172 = por %p170, %p171
    %s174 = sadd.s32 %s173, 1
    %p177 = scmp.eq.s32.totalorder %s29, 1
    %p178 = scmp.ne.s32.totalorder %s173, %s175
    %p179 = scmp.eq.s32.totalorder %s29, 0
    %p180 = por %p178, %p179
    %p181 = scmp.ne.s32.totalorder %s173, %s175
    %p182 = scmp.eq.s32.totalorder %s34, 1
    %p183 = por %p181, %p182
    %p184 = scmp.ne.s32.totalorder %s175, %s176
    %p185 = scmp.eq.s32.totalorder %s34, 0
    %p186 = por %p184, %p185
    %p187 = scmp.ne.s32.totalorder %s175, %s176
    %p188 = scmp.eq.s32.totalorder %s35, 1
    %p189 = por %p187, %p188
    %p191 = scmp.ne.s32.totalorder %s176, %s190
    %p192 = scmp.eq.s32.totalorder %s35, 0
    %p193 = por %p191, %p192
    %s195 = sadd.s32 %s194, 1
    %p198 = scmp.eq.s32.totalorder %s29, 1
    %p199 = scmp.ne.s32.totalorder %s194, %s196
    %p200 = scmp.eq.s32.totalorder %s29, 0
    %p201 = por %p199, %p200
    %p202 = scmp.ne.s32.totalorder %s194, %s196
    %p203 = scmp.eq.s32.totalorder %s34, 1
    %p204 = por %p202, %p203
    %p205 = scmp.ne.s32.totalorder %s196, %s197
    %p206 = scmp.eq.s32.totalorder %s34, 0
    %p207 = por %p205, %p206
    %p208 = scmp.ne.s32.totalorder %s196, %s197
    %p209 = scmp.eq.s32.totalorder %s35, 1
    %p210 = por %p208, %p209
    %p212 = scmp.ne.s32.totalorder %s197, %s211
    %p213 = scmp.eq.s32.totalorder %s35, 0
    %p214 = por %p212, %p213
    %s216 = sadd.s32 %s215, 1
    %p219 = scmp.eq.s32.totalorder %s29, 1
    %p220 = scmp.ne.s32.totalorder %s215, %s217
    %p221 = scmp.eq.s32.totalorder %s29, 0
    %p222 = por %p220, %p221
    %p223 = scmp.ne.s32.totalorder %s215, %s217
    %p224 = scmp.eq.s32.totalorder %s34, 1
    %p225 = por %p223, %p224
    %p226 = scmp.ne.s32.totalorder %s217, %s218
    %p227 = scmp.eq.s32.totalorder %s34, 0
    %p228 = por %p226, %p227
    %p229 = scmp.ne.s32.totalorder %s217, %s218
    %p230 = scmp.eq.s32.totalorder %s35, 1
    %p231 = por %p229, %p230
    %p233 = scmp.ne.s32.totalorder %s218, %s232
    %p234 = scmp.eq.s32.totalorder %s35, 0
    %p235 = por %p233, %p234
    %s237 = sadd.s32 %s236, 1
    %p240 = scmp.eq.s32.totalorder %s29, 1
    %p241 = scmp.ne.s32.totalorder %s236, %s238
    %p242 = scmp.eq.s32.totalorder %s29, 0
    %p243 = por %p241, %p242
    %p244 = scmp.ne.s32.totalorder %s236, %s238
    %p245 = scmp.eq.s32.totalorder %s34, 1
    %p246 = por %p244, %p245
    %p247 = scmp.ne.s32.totalorder %s238, %s239
    %p248 = scmp.eq.s32.totalorder %s34, 0
    %p249 = por %p247, %p248
    %p250 = scmp.ne.s32.totalorder %s238, %s239
    %p251 = scmp.eq.s32.totalorder %s35, 1
    %p252 = por %p250, %p251
    %p254 = scmp.ne.s32.totalorder %s239, %s253
    %p255 = scmp.eq.s32.totalorder %s35, 0
    %p256 = por %p254, %p255
    %s258 = sadd.s32 %s257, 1
    %p261 = scmp.eq.s32.totalorder %s29, 1
    %p262 = scmp.ne.s32.totalorder %s257, %s259
    %p263 = scmp.eq.s32.totalorder %s29, 0
    %p264 = por %p262, %p263
    %p265 = scmp.ne.s32.totalorder %s257, %s259
    %p266 = scmp.eq.s32.totalorder %s34, 1
    %p267 = por %p265, %p266
    %p268 = scmp.ne.s32.totalorder %s259, %s260
    %p269 = scmp.eq.s32.totalorder %s34, 0
    %p270 = por %p268, %p269
    %p271 = scmp.ne.s32.totalorder %s259, %s260
    %p272 = scmp.eq.s32.totalorder %s35, 1
    %p273 = por %p271, %p272
    %p275 = scmp.ne.s32.totalorder %s260, %s274
    %p276 = scmp.eq.s32.totalorder %s35, 0
    %p277 = por %p275, %p276
    %s279 = sadd.s32 %s278, 1
    %p282 = scmp.eq.s32.totalorder %s29, 1
    %p283 = scmp.ne.s32.totalorder %s278, %s280
    %p284 = scmp.eq.s32.totalorder %s29, 0
    %p285 = por %p283, %p284
    %p286 = scmp.ne.s32.totalorder %s278, %s280
    %p287 = scmp.eq.s32.totalorder %s34, 1
    %p288 = por %p286, %p287
    %p289 = scmp.ne.s32.totalorder %s280, %s281
    %p290 = scmp.eq.s32.totalorder %s34, 0
    %p291 = por %p289, %p290
    %p292 = scmp.ne.s32.totalorder %s280, %s281
    %p293 = scmp.eq.s32.totalorder %s35, 1
    %p294 = por %p292, %p293
    %p296 = scmp.ne.s32.totalorder %s281, %s295
    %p297 = scmp.eq.s32.totalorder %s35, 0
    %p298 = por %p296, %p297
    %s300 = sadd.s32 %s299, 1
    %p303 = scmp.eq.s32.totalorder %s29, 1
    %p304 = scmp.ne.s32.totalorder %s299, %s301
    %p305 = scmp.eq.s32.totalorder %s29, 0
    %p306 = por %p304, %p305
    %p307 = scmp.ne.s32.totalorder %s299, %s301
    %p308 = scmp.eq.s32.totalorder %s34, 1
    %p309 = por %p307, %p308
    %p310 = scmp.ne.s32.totalorder %s301, %s302
    %p311 = scmp.eq.s32.totalorder %s34, 0
    %p312 = por %p310, %p311
    %p313 = scmp.ne.s32.totalorder %s301, %s302
    %p314 = scmp.eq.s32.totalorder %s35, 1
    %p315 = por %p313, %p314
    %p317 = scmp.ne.s32.totalorder %s302, %s316
    %p318 = scmp.eq.s32.totalorder %s35, 0
    %p319 = por %p317, %p318
    %s321 = sadd.s32 %s320, 1
    %p324 = scmp.eq.s32.totalorder %s29, 1
    %p325 = scmp.ne.s32.totalorder %s320, %s322
    %p326 = scmp.eq.s32.totalorder %s29, 0
    %p327 = por %p325, %p326
    %p328 = scmp.ne.s32.totalorder %s320, %s322
    %p329 = scmp.eq.s32.totalorder %s34, 1
    %p330 = por %p328, %p329
    %p331 = scmp.ne.s32.totalorder %s322, %s323
    %p332 = scmp.eq.s32.totalorder %s34, 0
    %p333 = por %p331, %p332
    %p334 = scmp.ne.s32.totalorder %s322, %s323
    %p335 = scmp.eq.s32.totalorder %s35, 1
    %p336 = por %p334, %p335
    %p338 = scmp.ne.s32.totalorder %s323, %s337
    %p339 = scmp.eq.s32.totalorder %s35, 0
    %p340 = por %p338, %p339
    %s342 = sadd.s32 %s341, 1
    %p345 = scmp.eq.s32.totalorder %s29, 1
    %p346 = scmp.ne.s32.totalorder %s341, %s343
    %p347 = scmp.eq.s32.totalorder %s29, 0
    %p348 = por %p346, %p347
    %p349 = scmp.ne.s32.totalorder %s341, %s343
    %p350 = scmp.eq.s32.totalorder %s34, 1
    %p351 = por %p349, %p350
    %p352 = scmp.ne.s32.totalorder %s343, %s344
    %p353 = scmp.eq.s32.totalorder %s34, 0
    %p354 = por %p352, %p353
    %p355 = scmp.ne.s32.totalorder %s343, %s344
    %p356 = scmp.eq.s32.totalorder %s35, 1
    %p357 = por %p355, %p356
    %p359 = scmp.ne.s32.totalorder %s344, %s358
    %p360 = scmp.eq.s32.totalorder %s35, 0
    %p361 = por %p359, %p360
    %s363 = sadd.s32 %s362, 1
    %p366 = scmp.eq.s32.totalorder %s29, 1
    %p367 = scmp.ne.s32.totalorder %s362, %s364
    %p368 = scmp.eq.s32.totalorder %s29, 0
    %p369 = por %p367, %p368
    %p370 = scmp.ne.s32.totalorder %s362, %s364
    %p371 = scmp.eq.s32.totalorder %s34, 1
    %p372 = por %p370, %p371
    %p373 = scmp.ne.s32.totalorder %s364, %s365
    %p374 = scmp.eq.s32.totalorder %s34, 0
    %p375 = por %p373, %p374
    %p376 = scmp.ne.s32.totalorder %s364, %s365
    %p377 = scmp.eq.s32.totalorder %s35, 1
    %p378 = por %p376, %p377
    %p380 = scmp.ne.s32.totalorder %s365, %s379
    %p381 = scmp.eq.s32.totalorder %s35, 0
    %p382 = por %p380, %p381
    %s384 = sadd.s32 %s383, 1
    %p387 = scmp.eq.s32.totalorder %s29, 1
    %p388 = scmp.ne.s32.totalorder %s383, %s385
    %p389 = scmp.eq.s32.totalorder %s29, 0
    %p390 = por %p388, %p389
    %p391 = scmp.ne.s32.totalorder %s383, %s385
    %p392 = scmp.eq.s32.totalorder %s34, 1
    %p393 = por %p391, %p392
    %p394 = scmp.ne.s32.totalorder %s385, %s386
    %p395 = scmp.eq.s32.totalorder %s34, 0
    %p396 = por %p394, %p395
    %p397 = scmp.ne.s32.totalorder %s385, %s386
    %p398 = scmp.eq.s32.totalorder %s35, 1
    %p399 = por %p397, %p398
    %p401 = scmp.ne.s32.totalorder %s386, %s400
    %p402 = scmp.eq.s32.totalorder %s35, 0
    %p403 = por %p401, %p402
    %s405 = sadd.s32 %s404, 1
    %p408 = scmp.eq.s32.totalorder %s29, 1
    %p409 = scmp.ne.s32.totalorder %s404, %s406
    %p410 = scmp.eq.s32.totalorder %s29, 0
    %p411 = por %p409, %p410
    %p412 = scmp.ne.s32.totalorder %s404, %s406
    %p413 = scmp.eq.s32.totalorder %s34, 1
    %p414 = por %p412, %p413
    %p415 = scmp.ne.s32.totalorder %s406, %s407
    %p416 = scmp.eq.s32.totalorder %s34, 0
    %p417 = por %p415, %p416
    %p418 = scmp.ne.s32.totalorder %s406, %s407
    %p419 = scmp.eq.s32.totalorder %s35, 1
    %p420 = por %p418, %p419
    %p422 = scmp.ne.s32.totalorder %s407, %s421
    %p423 = scmp.eq.s32.totalorder %s35, 0
    %p424 = por %p422, %p423
    %s426 = sadd.s32 %s425, 1
    %p429 = scmp.eq.s32.totalorder %s29, 1
    %p430 = scmp.ne.s32.totalorder %s425, %s427
    %p431 = scmp.eq.s32.totalorder %s29, 0
    %p432 = por %p430, %p431
    %p433 = scmp.ne.s32.totalorder %s425, %s427
    %p434 = scmp.eq.s32.totalorder %s34, 1
    %p435 = por %p433, %p434
    %p436 = scmp.ne.s32.totalorder %s427, %s428
    %p437 = scmp.eq.s32.totalorder %s34, 0
    %p438 = por %p436, %p437
    %p439 = scmp.ne.s32.totalorder %s427, %s428
    %p440 = scmp.eq.s32.totalorder %s35, 1
    %p441 = por %p439, %p440
    %p443 = scmp.ne.s32.totalorder %s428, %s442
    %p444 = scmp.eq.s32.totalorder %s35, 0
    %p445 = por %p443, %p444
    %s447 = sadd.s32 %s446, 1
    %p450 = scmp.eq.s32.totalorder %s29, 1
    %p451 = scmp.ne.s32.totalorder %s446, %s448
    %p452 = scmp.eq.s32.totalorder %s29, 0
    %p453 = por %p451, %p452
    %p454 = scmp.ne.s32.totalorder %s446, %s448
    %p455 = scmp.eq.s32.totalorder %s34, 1
    %p456 = por %p454, %p455
    %p457 = scmp.ne.s32.totalorder %s448, %s449
    %p458 = scmp.eq.s32.totalorder %s34, 0
    %p459 = por %p457, %p458
    %p460 = scmp.ne.s32.totalorder %s448, %s449
    %p461 = scmp.eq.s32.totalorder %s35, 1
    %p462 = por %p460, %p461
    %p464 = scmp.ne.s32.totalorder %s449, %s463
    %p465 = scmp.eq.s32.totalorder %s35, 0
    %p466 = por %p464, %p465
    %s468 = sadd.s32 %s467, 1
    %p471 = scmp.eq.s32.totalorder %s29, 1
    %p472 = scmp.ne.s32.totalorder %s467, %s469
    %p473 = scmp.eq.s32.totalorder %s29, 0
    %p474 = por %p472, %p473
    %p475 = scmp.ne.s32.totalorder %s467, %s469
    %p476 = scmp.eq.s32.totalorder %s34, 1
    %p477 = por %p475, %p476
    %p478 = scmp.ne.s32.totalorder %s469, %s470
    %p479 = scmp.eq.s32.totalorder %s34, 0
    %p480 = por %p478, %p479
    %p481 = scmp.ne.s32.totalorder %s469, %s470
    %p482 = scmp.eq.s32.totalorder %s35, 1
    %p483 = por %p481, %p482
    %p485 = scmp.ne.s32.totalorder %s470, %s484
    %p486 = scmp.eq.s32.totalorder %s35, 0
    %p487 = por %p485, %p486
    %s488 = ssub.s32 %s29, %s36
    %p489 = scmp.eq.s32.totalorder %s488, 0
    %s491 = sadd.s32 %s490, 1
    %s492 = scalar_select %p489, %s490, %s491
    %p495 = pneg %p489
    %p496 = scmp.eq.s32.totalorder %s29, 1
    %p497 = por %p495, %p496
    %p498 = scmp.ne.s32.totalorder %s490, %s493
    %p499 = scmp.eq.s32.totalorder %s29, 0
    %p500 = por %p498, %p499
    %p501 = scmp.ne.s32.totalorder %s490, %s493
    %p502 = scmp.eq.s32.totalorder %s34, 1
    %p503 = por %p501, %p502
    %p504 = scmp.ne.s32.totalorder %s493, %s494
    %p505 = scmp.eq.s32.totalorder %s34, 0
    %p506 = por %p504, %p505
    %p507 = scmp.ne.s32.totalorder %s493, %s494
    %p508 = scmp.eq.s32.totalorder %s35, 1
    %p509 = por %p507, %p508
    %p511 = scmp.ne.s32.totalorder %s494, %s510
    %p512 = scmp.eq.s32.totalorder %s35, 0
    %p513 = por %p511, %p512
    %s514 = ssub.s32 %s29, %s36
    %p515 = scmp.eq.s32.totalorder %s514, 0
    %s517 = sadd.s32 %s516, 1
    %s518 = scalar_select %p515, %s516, %s517
    %p521 = pneg %p515
    %p522 = scmp.eq.s32.totalorder %s29, 1
    %p523 = por %p521, %p522
    %p524 = scmp.ne.s32.totalorder %s516, %s519
    %p525 = scmp.eq.s32.totalorder %s29, 0
    %p526 = por %p524, %p525
    %p527 = scmp.ne.s32.totalorder %s516, %s519
    %p528 = scmp.eq.s32.totalorder %s34, 1
    %p529 = por %p527, %p528
    %p530 = scmp.ne.s32.totalorder %s519, %s520
    %p531 = scmp.eq.s32.totalorder %s34, 0
    %p532 = por %p530, %p531
    %p533 = scmp.ne.s32.totalorder %s519, %s520
    %p534 = scmp.eq.s32.totalorder %s35, 1
    %p535 = por %p533, %p534
    %p537 = scmp.ne.s32.totalorder %s520, %s536
    %p538 = scmp.eq.s32.totalorder %s35, 0
    %p539 = por %p537, %p538
    %p540 = scmp.le.s32.totalorder 1, %s29
    %p541 = scmp.lt.s32.totalorder %s29, 3
    %p542 = pnand %p540, %p541
    %p543 = pneg %p542
    // Predicated region
    $region9: #{dpcag_forward.1} parent=5 // pred_check
      _
    $region10: #{dpcag_forward.1} parent=5 // pred_check_branch
      %545 = sbr.rel (%p542) target = $region12
    $region11: #{dpcag_forward.1} parent=5 // pred_region
      %s546 = ssub.s32 %s29, 1
      // Predicated region
      $region13: #{dpcag_forward.1} parent=11 // pred_check
        %p547 = pneg %p50
      $region14: #{dpcag_forward.1} parent=11 // pred_check_branch
        %549 = sbr.rel (%p547) target = $region16
      $region15: #{dpcag_forward.1} parent=11 // pred_region
        _
      $region16: #{dpcag_forward.1} parent=11 // pred_fallthru
        _
      // Predicated region
      $region17: #{dpcag_forward.1} parent=11 // pred_check
        %p550 = pneg %p123
      $region18: #{dpcag_forward.1} parent=11 // pred_check_branch
        %552 = sbr.rel (%p550) target = $region20
      $region19: #{dpcag_forward.1} parent=11 // pred_region
        _
      $region20: #{dpcag_forward.1} parent=11 // pred_fallthru
        _
      // Predicated region
      $region21: #{dpcag_forward.1} parent=11 // pred_check
        %p553 = pneg %p144
      $region22: #{dpcag_forward.1} parent=11 // pred_check_branch
        %555 = sbr.rel (%p553) target = $region24
      $region23: #{dpcag_forward.1} parent=11 // pred_region
        _
      $region24: #{dpcag_forward.1} parent=11 // pred_fallthru
        _
      // Predicated region
      $region25: #{dpcag_forward.1} parent=11 // pred_check
        %p556 = pneg %p165
      $region26: #{dpcag_forward.1} parent=11 // pred_check_branch
        %558 = sbr.rel (%p556) target = $region28
      $region27: #{dpcag_forward.1} parent=11 // pred_region
        _
      $region28: #{dpcag_forward.1} parent=11 // pred_fallthru
        _
      // Predicated region
      $region29: #{dpcag_forward.1} parent=11 // pred_check
        %p559 = pneg %p186
      $region30: #{dpcag_forward.1} parent=11 // pred_check_branch
        %561 = sbr.rel (%p559) target = $region32
      $region31: #{dpcag_forward.1} parent=11 // pred_region
        _
      $region32: #{dpcag_forward.1} parent=11 // pred_fallthru
        _
      // Predicated region
      $region33: #{dpcag_forward.1} parent=11 // pred_check
        %p562 = pneg %p207
      $region34: #{dpcag_forward.1} parent=11 // pred_check_branch
        %564 = sbr.rel (%p562) target = $region36
      $region35: #{dpcag_forward.1} parent=11 // pred_region
        _
      $region36: #{dpcag_forward.1} parent=11 // pred_fallthru
        _
      // Predicated region
      $region37: #{dpcag_forward.1} parent=11 // pred_check
        %p565 = pneg %p228
      $region38: #{dpcag_forward.1} parent=11 // pred_check_branch
        %567 = sbr.rel (%p565) target = $region40
      $region39: #{dpcag_forward.1} parent=11 // pred_region
        _
      $region40: #{dpcag_forward.1} parent=11 // pred_fallthru
        _
      // Predicated region
      $region41: #{dpcag_forward.1} parent=11 // pred_check
        %p568 = pneg %p249
      $region42: #{dpcag_forward.1} parent=11 // pred_check_branch
        %570 = sbr.rel (%p568) target = $region44
      $region43: #{dpcag_forward.1} parent=11 // pred_region
        _
      $region44: #{dpcag_forward.1} parent=11 // pred_fallthru
        _
      // Predicated region
      $region45: #{dpcag_forward.1} parent=11 // pred_check
        %p571 = pneg %p270
      $region46: #{dpcag_forward.1} parent=11 // pred_check_branch
        %573 = sbr.rel (%p571) target = $region48
      $region47: #{dpcag_forward.1} parent=11 // pred_region
        _
      $region48: #{dpcag_forward.1} parent=11 // pred_fallthru
        _
      // Predicated region
      $region49: #{dpcag_forward.1} parent=11 // pred_check
        %p574 = pneg %p291
      $region50: #{dpcag_forward.1} parent=11 // pred_check_branch
        %576 = sbr.rel (%p574) target = $region52
      $region51: #{dpcag_forward.1} parent=11 // pred_region
        _
      $region52: #{dpcag_forward.1} parent=11 // pred_fallthru
        _
      // Predicated region
      $region53: #{dpcag_forward.1} parent=11 // pred_check
        %p577 = pneg %p312
      $region54: #{dpcag_forward.1} parent=11 // pred_check_branch
        %579 = sbr.rel (%p577) target = $region56
      $region55: #{dpcag_forward.1} parent=11 // pred_region
        _
      $region56: #{dpcag_forward.1} parent=11 // pred_fallthru
        _
      // Predicated region
      $region57: #{dpcag_forward.1} parent=11 // pred_check
        %p580 = pneg %p333
      $region58: #{dpcag_forward.1} parent=11 // pred_check_branch
        %582 = sbr.rel (%p580) target = $region60
      $region59: #{dpcag_forward.1} parent=11 // pred_region
        _
      $region60: #{dpcag_forward.1} parent=11 // pred_fallthru
        _
      // Predicated region
      $region61: #{dpcag_forward.1} parent=11 // pred_check
        %p583 = pneg %p354
      $region62: #{dpcag_forward.1} parent=11 // pred_check_branch
        %585 = sbr.rel (%p583) target = $region64
      $region63: #{dpcag_forward.1} parent=11 // pred_region
        _
      $region64: #{dpcag_forward.1} parent=11 // pred_fallthru
        _
      // Predicated region
      $region65: #{dpcag_forward.1} parent=11 // pred_check
        %p586 = pneg %p375
      $region66: #{dpcag_forward.1} parent=11 // pred_check_branch
        %588 = sbr.rel (%p586) target = $region68
      $region67: #{dpcag_forward.1} parent=11 // pred_region
        _
      $region68: #{dpcag_forward.1} parent=11 // pred_fallthru
        _
      // Predicated region
      $region69: #{dpcag_forward.1} parent=11 // pred_check
        %p589 = pneg %p396
      $region70: #{dpcag_forward.1} parent=11 // pred_check_branch
        %591 = sbr.rel (%p589) target = $region72
      $region71: #{dpcag_forward.1} parent=11 // pred_region
        _
      $region72: #{dpcag_forward.1} parent=11 // pred_fallthru
        _
      // Predicated region
      $region73: #{dpcag_forward.1} parent=11 // pred_check
        %p592 = pneg %p417
      $region74: #{dpcag_forward.1} parent=11 // pred_check_branch
        %594 = sbr.rel (%p592) target = $region76
      $region75: #{dpcag_forward.1} parent=11 // pred_region
        _
      $region76: #{dpcag_forward.1} parent=11 // pred_fallthru
        _
      // Predicated region
      $region77: #{dpcag_forward.1} parent=11 // pred_check
        %p595 = pneg %p438
      $region78: #{dpcag_forward.1} parent=11 // pred_check_branch
        %597 = sbr.rel (%p595) target = $region80
      $region79: #{dpcag_forward.1} parent=11 // pred_region
        _
      $region80: #{dpcag_forward.1} parent=11 // pred_fallthru
        _
      // Predicated region
      $region81: #{dpcag_forward.1} parent=11 // pred_check
        %p598 = pneg %p459
      $region82: #{dpcag_forward.1} parent=11 // pred_check_branch
        %600 = sbr.rel (%p598) target = $region84
      $region83: #{dpcag_forward.1} parent=11 // pred_region
        _
      $region84: #{dpcag_forward.1} parent=11 // pred_fallthru
        _
      // Predicated region
      $region85: #{dpcag_forward.1} parent=11 // pred_check
        %p601 = pneg %p480
      $region86: #{dpcag_forward.1} parent=11 // pred_check_branch
        %603 = sbr.rel (%p601) target = $region88
      $region87: #{dpcag_forward.1} parent=11 // pred_region
        _
      $region88: #{dpcag_forward.1} parent=11 // pred_fallthru
        _
    $region12: #{dpcag_forward.1} parent=5 // pred_fallthru
      _
    %p604 = scmp.lt.s32.totalorder %s29, 2
    // Predicated region
    $region89: #{dpcag_forward.1} parent=5 // pred_check
      %p605 = pneg %p604
    $region90: #{dpcag_forward.1} parent=5 // pred_check_branch
      %607 = sbr.rel (%p605) target = $region92
    $region91: #{dpcag_forward.1} parent=5 // pred_region
      // Predicated region
      $region93: #{dpcag_forward.1} parent=91 // pred_check
        %p608 = pneg %p70
      $region94: #{dpcag_forward.1} parent=91 // pred_check_branch
        %610 = sbr.rel (%p608) target = $region96
      $region95: #{dpcag_forward.1} parent=91 // pred_region
        %p611 = scmp.lt.s32.totalorder %s29, 1
        %s612 = scalar_select %p611, %s29, 1
        %s613 = smul.addr %s612, 3
        %s614 = smul.addr %s613, 8
        %s615 = scalar_lea.vmem %s1, %s614
      $region96: #{dpcag_forward.1} parent=91 // pred_fallthru
        _
      // Predicated region
      $region97: #{dpcag_forward.1} parent=91 // pred_check
        %p616 = pneg %p96
      $region98: #{dpcag_forward.1} parent=91 // pred_check_branch
        %618 = sbr.rel (%p616) target = $region100
      $region99: #{dpcag_forward.1} parent=91 // pred_region
        %p619 = scmp.lt.s32.totalorder %s29, 1
        %s620 = scalar_select %p619, %s29, 1
        %s621 = smul.addr %s620, 3
        %s622 = smul.addr %s621, 8
        %s623 = scalar_lea.vmem %s2, %s622
      $region100: #{dpcag_forward.1} parent=91 // pred_fallthru
        _
    $region92: #{dpcag_forward.1} parent=5 // pred_fallthru
      _
    %p624 = scmp.le.s32.totalorder 1, %s29
    %p625 = scmp.lt.s32.totalorder %s29, 3
    %p626 = pnand %p624, %p625
    %p627 = pneg %p626
    // Predicated region
    $region101: #{dpcag_forward.1} parent=5 // pred_check
      _
    $region102: #{dpcag_forward.1} parent=5 // pred_check_branch
      %629 = sbr.rel (%p626) target = $region104
    $region103: #{dpcag_forward.1} parent=5 // pred_region
      %s630 = ssub.s32 %s29, 1
      %p631 = pneg %p50
      %p632 = pneg %p47
      %p633 = scmp.lt.s32.totalorder %s34, 1
      %s634 = scalar_select %p633, %s34, 1
      %s635 = smul.addr %s634, 3
      %s636 = smul.addr %s635, 8
      %s637 = scalar_lea.vmem %s1, %s636
      %p638 = pneg %p76
      %p639 = pneg %p73
      %p640 = scmp.lt.s32.totalorder %s34, 1
      %s641 = scalar_select %p640, %s34, 1
      %s642 = smul.addr %s641, 3
      %s643 = smul.addr %s642, 8
      %s644 = scalar_lea.vmem %s2, %s643
      %p645 = pneg %p102
      %p646 = pneg %p99
      %p647 = pneg %p123
      %p648 = pneg %p120
      %p649 = pneg %p144
      %p650 = pneg %p141
      %p651 = pneg %p165
      %p652 = pneg %p162
      %p653 = pneg %p186
      %p654 = pneg %p183
      %p655 = pneg %p207
      %p656 = pneg %p204
      %p657 = pneg %p228
      %p658 = pneg %p225
      %p659 = pneg %p249
      %p660 = pneg %p246
      %p661 = pneg %p270
      %p662 = pneg %p267
      %p663 = pneg %p291
      %p664 = pneg %p288
      %p665 = pneg %p312
      %p666 = pneg %p309
      %p667 = pneg %p333
      %p668 = pneg %p330
      %p669 = pneg %p354
      %p670 = pneg %p351
      %p671 = pneg %p375
      %p672 = pneg %p372
      %p673 = pneg %p396
      %p674 = pneg %p393
      %p675 = pneg %p417
      %p676 = pneg %p414
      %p677 = pneg %p438
      %p678 = pneg %p435
      %p679 = pneg %p459
      %p680 = pneg %p456
      %p681 = pneg %p480
      %p682 = pneg %p477
      %p683 = pneg %p506
      %p684 = pneg %p503
      %p685 = scmp.lt.s32.totalorder %s34, 1
      %s686 = scalar_select %p685, %s34, 1
      %s687 = smul.addr %s686, 3
      %s688 = smul.addr %s687, 8
      %s689 = scalar_lea.vmem %s21, %s688
      %p690 = pneg %p532
      %p691 = pneg %p529
      %p692 = scmp.lt.s32.totalorder %s34, 1
      %s693 = scalar_select %p692, %s34, 1
      %s694 = smul.addr %s693, 3
      %s695 = smul.addr %s694, 8
      %s696 = scalar_lea.vmem %s22, %s695
      %p697 = scmp.lt.s32.totalorder %s34, 1
      %s698 = scalar_select %p697, %s34, 1
      %s699 = smul.addr %s698, 3
      %s700 = smul.addr %s699, 8
      %s701 = scalar_lea.vmem %s1, %s700
      %p702 = scmp.lt.s32.totalorder %s34, 1
      %s703 = scalar_select %p702, %s34, 1
      %s704 = smul.addr %s703, 3
      %s705 = smul.addr %s704, 8
      %s706 = scalar_lea.vmem %s2, %s705
      %p707 = scmp.lt.s32.totalorder %s34, 1
      %s708 = scalar_select %p707, %s34, 1
      %s709 = smul.addr %s708, 3
      %s710 = smul.addr %s709, 8
      %s711 = scalar_lea.vmem %s21, %s710
      %p712 = scmp.lt.s32.totalorder %s34, 1
      %s713 = scalar_select %p712, %s34, 1
      %s714 = smul.addr %s713, 3
      %s715 = smul.addr %s714, 8
      %s716 = scalar_lea.vmem %s22, %s715
      %v717 = vld [vmem:[%s0] sm:$0x7]
      %v719 = vperm.slane %v717, 0
      %v720 = vperm.slane %v717, 1
      %v721 = vperm.slane %v717, 2
      %v725 = vld [vmem:[%s701] sm:$0xff]
      %v726 = vld [vmem:[%s701 + $0x8] sm:$0xff]
      %v727 = vld [vmem:[%s701 + $0x10] sm:$0xff]
      %v728 = vld [vmem:[%s706] sm:$0xff]
      %v729 = vld [vmem:[%s706 + $0x8] sm:$0xff]
      %v730 = vld [vmem:[%s706 + $0x10] sm:$0xff]
      %v731 = vld [vmem:[%s3] sm:$0xff]
      %v732 = vld [vmem:[%s4] sm:$0xff]
      %733 = vrot.lane.b32.xlu0 %v725, 19
      %v734 = vpop.permute.xlu0 %733
      %735 = vrot.lane.b32.xlu0 %v726, 19
      %v736 = vpop.permute.xlu0 %735
      %737 = vrot.lane.b32.xlu0 %v727, 19
      %v738 = vpop.permute.xlu0 %737
      %v739 = vlaneseq
      %v740 = vand.u32 %v739, 127
      %vm741 = vcmp.lt.s32.totalorder %v740, 19
      %v742 = vsel %vm741, %v736, %v738
      %v743 = vsel %vm741, %v734, %v736
      %v744 = vsel %vm741, %v738, %v734
      %745 = vst [vmem:[#allocation2] sm:$0xff] %v744
      %746 = vst [vmem:[#allocation2 + $0x8] sm:$0xff] %v743
      %747 = vst [vmem:[#allocation2 + $0x10] sm:$0xff] %v742
      %748 = vrot.lane.b32.xlu0 %v725, 18
      %v749 = vpop.permute.xlu0 %748
      %750 = vrot.lane.b32.xlu0 %v726, 18
      %v751 = vpop.permute.xlu0 %750
      %752 = vrot.lane.b32.xlu0 %v727, 18
      %v753 = vpop.permute.xlu0 %752
      %vm754 = vcmp.lt.s32.totalorder %v740, 18
      %v755 = vsel %vm754, %v751, %v753
      %v756 = vsel %vm754, %v749, %v751
      %v757 = vsel %vm754, %v753, %v749
      %758 = vst [vmem:[#allocation2 + $0x18] sm:$0xff] %v757
      %759 = vst [vmem:[#allocation2 + $0x20] sm:$0xff] %v756
      %760 = vst [vmem:[#allocation2 + $0x28] sm:$0xff] %v755
      %761 = vrot.lane.b32.xlu0 %v725, 17
      %v762 = vpop.permute.xlu0 %761
      %763 = vrot.lane.b32.xlu0 %v726, 17
      %v764 = vpop.permute.xlu0 %763
      %765 = vrot.lane.b32.xlu0 %v727, 17
      %v766 = vpop.permute.xlu0 %765
      %vm767 = vcmp.lt.s32.totalorder %v740, 17
      %v768 = vsel %vm767, %v764, %v766
      %v769 = vsel %vm767, %v762, %v764
      %v770 = vsel %vm767, %v766, %v762
      %771 = vst [vmem:[#allocation2 + $0x30] sm:$0xff] %v770
      %772 = vst [vmem:[#allocation2 + $0x38] sm:$0xff] %v769
      %773 = vst [vmem:[#allocation2 + $0x40] sm:$0xff] %v768
      %774 = vrot.lane.b32.xlu0 %v725, 1
      %v775 = vpop.permute.xlu0 %774
      %776 = vrot.lane.b32.xlu0 %v726, 1
      %v777 = vpop.permute.xlu0 %776
      %778 = vrot.lane.b32.xlu0 %v727, 1
      %v779 = vpop.permute.xlu0 %778
      %vm780 = vcmp.lt.s32.totalorder %v740, 1
      %v781 = vsel %vm780, %v777, %v779
      %v782 = vsel %vm780, %v775, %v777
      %v783 = vsel %vm780, %v779, %v775
      %784 = vst [vmem:[#allocation2 + $0x48] sm:$0xff] %v783
      %785 = vst [vmem:[#allocation2 + $0x50] sm:$0xff] %v782
      %786 = vst [vmem:[#allocation2 + $0x58] sm:$0xff] %v781
      %787 = vst [vmem:[#allocation2 + $0x60] sm:$0xff] %v725
      %788 = vst [vmem:[#allocation2 + $0x68] sm:$0xff] %v726
      %789 = vst [vmem:[#allocation2 + $0x70] sm:$0xff] %v727
      %790 = vrot.lane.b32.xlu0 %v725, 127
      %v791 = vpop.permute.xlu0 %790
      %792 = vrot.lane.b32.xlu0 %v726, 127
      %v793 = vpop.permute.xlu0 %792
      %794 = vrot.lane.b32.xlu0 %v727, 127
      %v795 = vpop.permute.xlu0 %794
      %vm796 = vcmp.lt.s32.totalorder %v740, 127
      %v797 = vsel %vm796, %v793, %v795
      %v798 = vsel %vm796, %v791, %v793
      %v799 = vsel %vm796, %v795, %v791
      %800 = vst [vmem:[#allocation2 + $0x78] sm:$0xff] %v798
      %801 = vst [vmem:[#allocation2 + $0x80] sm:$0xff] %v797
      %802 = vst [vmem:[#allocation2 + $0x88] sm:$0xff] %v799
      %803 = vrot.lane.b32.xlu0 %v725, 111
      %v804 = vpop.permute.xlu0 %803
      %805 = vrot.lane.b32.xlu0 %v726, 111
      %v806 = vpop.permute.xlu0 %805
      %807 = vrot.lane.b32.xlu0 %v727, 111
      %v808 = vpop.permute.xlu0 %807
      %vm809 = vcmp.lt.s32.totalorder %v740, 111
      %v810 = vsel %vm809, %v806, %v808
      %v811 = vsel %vm809, %v804, %v806
      %v812 = vsel %vm809, %v808, %v804
      %813 = vst [vmem:[#allocation2 + $0x90] sm:$0xff] %v811
      %814 = vst [vmem:[#allocation2 + $0x98] sm:$0xff] %v810
      %815 = vst [vmem:[#allocation2 + $0xa0] sm:$0xff] %v812
      %816 = vrot.lane.b32.xlu0 %v725, 110
      %v817 = vpop.permute.xlu0 %816
      %818 = vrot.lane.b32.xlu0 %v726, 110
      %v819 = vpop.permute.xlu0 %818
      %820 = vrot.lane.b32.xlu0 %v727, 110
      %v821 = vpop.permute.xlu0 %820
      %vm822 = vcmp.lt.s32.totalorder %v740, 110
      %v823 = vsel %vm822, %v819, %v821
      %v824 = vsel %vm822, %v817, %v819
      %v825 = vsel %vm822, %v821, %v817
      %826 = vst [vmem:[#allocation2 + $0xa8] sm:$0xff] %v824
      %827 = vst [vmem:[#allocation2 + $0xb0] sm:$0xff] %v823
      %828 = vst [vmem:[#allocation2 + $0xb8] sm:$0xff] %v825
      %829 = vrot.lane.b32.xlu0 %v725, 109
      %v830 = vpop.permute.xlu0 %829
      %831 = vrot.lane.b32.xlu0 %v726, 109
      %v832 = vpop.permute.xlu0 %831
      %833 = vrot.lane.b32.xlu0 %v727, 109
      %v834 = vpop.permute.xlu0 %833
      %vm835 = vcmp.lt.s32.totalorder %v740, 109
      %v836 = vsel %vm835, %v832, %v834
      %v837 = vsel %vm835, %v830, %v832
      %v838 = vsel %vm835, %v834, %v830
      %839 = vst [vmem:[#allocation2 + $0xc0] sm:$0xff] %v837
      %840 = vst [vmem:[#allocation2 + $0xc8] sm:$0xff] %v836
      %841 = vst [vmem:[#allocation2 + $0xd0] sm:$0xff] %v838
      %v842 = vld [vmem:[#allocation2] sm:$0xff]
      %v843 = vld [vmem:[#allocation2 + $0x8] sm:$0xff]
      %v844 = vld [vmem:[#allocation2 + $0x10] sm:$0xff]
      %v845 = vld [vmem:[#allocation2 + $0x18] sm:$0xff]
      %v846 = vld [vmem:[#allocation2 + $0x20] sm:$0xff]
      %v847 = vld [vmem:[#allocation2 + $0x28] sm:$0xff]
      %v848 = vld [vmem:[#allocation2 + $0x30] sm:$0xff]
      %v849 = vld [vmem:[#allocation2 + $0x38] sm:$0xff]
      %v850 = vld [vmem:[#allocation2 + $0x40] sm:$0xff]
      %v851 = vld [vmem:[#allocation2 + $0x48] sm:$0xff]
      %v852 = vld [vmem:[#allocation2 + $0x50] sm:$0xff]
      %v853 = vld [vmem:[#allocation2 + $0x58] sm:$0xff]
      %v854 = vld [vmem:[#allocation2 + $0x60] sm:$0xff]
      %v855 = vld [vmem:[#allocation2 + $0x68] sm:$0xff]
      %v856 = vld [vmem:[#allocation2 + $0x70] sm:$0xff]
      %v857 = vld [vmem:[#allocation2 + $0x78] sm:$0xff]
      %v858 = vld [vmem:[#allocation2 + $0x80] sm:$0xff]
      %v859 = vld [vmem:[#allocation2 + $0x88] sm:$0xff]
      %v860 = vld [vmem:[#allocation2 + $0x90] sm:$0xff]
      %v861 = vld [vmem:[#allocation2 + $0x98] sm:$0xff]
      %v862 = vld [vmem:[#allocation2 + $0xa0] sm:$0xff]
      %v863 = vld [vmem:[#allocation2 + $0xa8] sm:$0xff]
      %v864 = vld [vmem:[#allocation2 + $0xb0] sm:$0xff]
      %v865 = vld [vmem:[#allocation2 + $0xb8] sm:$0xff]
      %v866 = vld [vmem:[#allocation2 + $0xc0] sm:$0xff]
      %v867 = vld [vmem:[#allocation2 + $0xc8] sm:$0xff]
      %v868 = vld [vmem:[#allocation2 + $0xd0] sm:$0xff]
      %870 = vset.pattern.permute.xlu0 0
      %871 = vperm.xlu0 %870, %v732
      %v872 = vpop.permute.xlu0 %871
      %vm874 = vcmask 588800
      %v876 = vsel %vm874, %v731, 0
      %878 = vmatpush.msra.mxu0 0.0
      %879 = vmatpush.msra.mxu0 0.0
      %880 = vmatpush.msra.mxu0 0.0
      %881 = vmatpush.msra.mxu0 0.0
      %882 = vmatpush.msra.mxu0 0.0
      %883 = vmatpush.msra.mxu0 0.0
      %884 = vmatpush.msra.mxu0 0.0
      %885 = vmatpush.msra.mxu0 %v866
      %886 = vmatpush.msra.mxu0 %v863
      %887 = vmatpush.msra.mxu0 %v860
      %888 = vmatpush.msra.mxu0 %v857
      %889 = vmatpush.msra.mxu0 %v854
      %890 = vmatpush.msra.mxu0 %v851
      %891 = vmatpush.msra.mxu0 %v848
      %892 = vmatpush.msra.mxu0 %v845
      %893 = vmatpush.msra.mxu0 %v842
      %894 = vmatmul.f32.gmra.mxu0 %v876
      %v895 = vpop.f32.mrf.mxu0
      %v896 = vadd.f32 %v872, %v895
      %897 = vdwg.mxu0
      %898 = vmatpush.msra.mxu0 0.0
      %899 = vmatpush.msra.mxu0 0.0
      %900 = vmatpush.msra.mxu0 0.0
      %901 = vmatpush.msra.mxu0 0.0
      %902 = vmatpush.msra.mxu0 0.0
      %903 = vmatpush.msra.mxu0 0.0
      %904 = vmatpush.msra.mxu0 0.0
      %905 = vmatpush.msra.mxu0 %v867
      %906 = vmatpush.msra.mxu0 %v864
      %907 = vmatpush.msra.mxu0 %v861
      %908 = vmatpush.msra.mxu0 %v858
      %909 = vmatpush.msra.mxu0 %v855
      %910 = vmatpush.msra.mxu0 %v852
      %911 = vmatpush.msra.mxu0 %v849
      %912 = vmatpush.msra.mxu0 %v846
      %913 = vmatpush.msra.mxu0 %v843
      %914 = vmatmul.f32.gmra.mxu0 %v876
      %v915 = vpop.f32.mrf.mxu0
      %v916 = vadd.f32 %v872, %v915
      %917 = vdwg.mxu0
      %918 = vmatpush.msra.mxu0 0.0
      %919 = vmatpush.msra.mxu0 0.0
      %920 = vmatpush.msra.mxu0 0.0
      %921 = vmatpush.msra.mxu0 0.0
      %922 = vmatpush.msra.mxu0 0.0
      %923 = vmatpush.msra.mxu0 0.0
      %924 = vmatpush.msra.mxu0 0.0
      %925 = vmatpush.msra.mxu0 %v868
      %926 = vmatpush.msra.mxu0 %v865
      %927 = vmatpush.msra.mxu0 %v862
      %928 = vmatpush.msra.mxu0 %v859
      %929 = vmatpush.msra.mxu0 %v856
      %930 = vmatpush.msra.mxu0 %v853
      %931 = vmatpush.msra.mxu0 %v850
      %932 = vmatpush.msra.mxu0 %v847
      %933 = vmatpush.msra.mxu0 %v844
      %934 = vmatmul.f32.gmra.mxu0 %v876
      %v935 = vpop.f32.mrf.mxu0
      %v936 = vadd.f32 %v872, %v935
      %937 = vdwg.mxu0
      %v938 = vmul.f32 %v896, %v719
      %v939 = vmul.f32 %v916, %v720
      %v940 = vmul.f32 %v936, %v721
      %vm941 = vcmp.ge.f32.partialorder %v938, 0.0
      %vm942 = vcmp.ge.f32.partialorder %v939, 0.0
      %vm943 = vcmp.ge.f32.partialorder %v940, 0.0
      %v944 = vmul.f32 %v938, 0.1
      %v945 = vmul.f32 %v939, 0.1
      %v946 = vmul.f32 %v940, 0.1
      %v947 = vsel %vm941, %v938, %v944
      %v948 = vsel %vm942, %v939, %v945
      %v949 = vsel %vm943, %v940, %v946
      %v950 = vld [vmem:[%s5] sm:$0xff]
      %v951 = vld [vmem:[%s6] sm:$0xff]
      %952 = vrot.lane.b32.xlu0 %v947, 19
      %v953 = vpop.permute.xlu0 %952
      %954 = vrot.lane.b32.xlu0 %v948, 19
      %v955 = vpop.permute.xlu0 %954
      %956 = vrot.lane.b32.xlu0 %v949, 19
      %v957 = vpop.permute.xlu0 %956
      %v958 = vsel %vm741, %v955, %v957
      %v959 = vsel %vm741, %v953, %v955
      %v960 = vsel %vm741, %v957, %v953
      %961 = vst [vmem:[#allocation2] sm:$0xff] %v960
      %962 = vst [vmem:[#allocation2 + $0x8] sm:$0xff] %v959
      %963 = vst [vmem:[#allocation2 + $0x10] sm:$0xff] %v958
      %964 = vrot.lane.b32.xlu0 %v947, 18
      %v965 = vpop.permute.xlu0 %964
      %966 = vrot.lane.b32.xlu0 %v948, 18
      %v967 = vpop.permute.xlu0 %966
      %968 = vrot.lane.b32.xlu0 %v949, 18
      %v969 = vpop.permute.xlu0 %968
      %v970 = vsel %vm754, %v967, %v969
      %v971 = vsel %vm754, %v965, %v967
      %v972 = vsel %vm754, %v969, %v965
      %973 = vst [vmem:[#allocation2 + $0x18] sm:$0xff] %v972
      %974 = vst [vmem:[#allocation2 + $0x20] sm:$0xff] %v971
      %975 = vst [vmem:[#allocation2 + $0x28] sm:$0xff] %v970
      %976 = vrot.lane.b32.xlu0 %v947, 17
      %v977 = vpop.permute.xlu0 %976
      %978 = vrot.lane.b32.xlu0 %v948, 17
      %v979 = vpop.permute.xlu0 %978
      %980 = vrot.lane.b32.xlu0 %v949, 17
      %v981 = vpop.permute.xlu0 %980
      %v982 = vsel %vm767, %v979, %v981
      %v983 = vsel %vm767, %v977, %v979
      %v984 = vsel %vm767, %v981, %v977
      %985 = vst [vmem:[#allocation2 + $0x30] sm:$0xff] %v984
      %986 = vst [vmem:[#allocation2 + $0x38] sm:$0xff] %v983
      %987 = vst [vmem:[#allocation2 + $0x40] sm:$0xff] %v982
      %988 = vrot.lane.b32.xlu0 %v947, 1
      %v989 = vpop.permute.xlu0 %988
      %990 = vrot.lane.b32.xlu0 %v948, 1
      %v991 = vpop.permute.xlu0 %990
      %992 = vrot.lane.b32.xlu0 %v949, 1
      %v993 = vpop.permute.xlu0 %992
      %v994 = vsel %vm780, %v991, %v993
      %v995 = vsel %vm780, %v989, %v991
      %v996 = vsel %vm780, %v993, %v989
      %997 = vst [vmem:[#allocation2 + $0x48] sm:$0xff] %v996
      %998 = vst [vmem:[#allocation2 + $0x50] sm:$0xff] %v995
      %999 = vst [vmem:[#allocation2 + $0x58] sm:$0xff] %v994
      %1000 = vst [vmem:[#allocation2 + $0x60] sm:$0xff] %v947
      %1001 = vst [vmem:[#allocation2 + $0x68] sm:$0xff] %v948
      %1002 = vst [vmem:[#allocation2 + $0x70] sm:$0xff] %v949
      %1003 = vrot.lane.b32.xlu0 %v947, 127
      %v1004 = vpop.permute.xlu0 %1003
      %1005 = vrot.lane.b32.xlu0 %v948, 127
      %v1006 = vpop.permute.xlu0 %1005
      %1007 = vrot.lane.b32.xlu0 %v949, 127
      %v1008 = vpop.permute.xlu0 %1007
      %v1009 = vsel %vm796, %v1006, %v1008
      %v1010 = vsel %vm796, %v1004, %v1006
      %v1011 = vsel %vm796, %v1008, %v1004
      %1012 = vst [vmem:[#allocation2 + $0x78] sm:$0xff] %v1010
      %1013 = vst [vmem:[#allocation2 + $0x80] sm:$0xff] %v1009
      %1014 = vst [vmem:[#allocation2 + $0x88] sm:$0xff] %v1011
      %1015 = vrot.lane.b32.xlu0 %v947, 111
      %v1016 = vpop.permute.xlu0 %1015
      %1017 = vrot.lane.b32.xlu0 %v948, 111
      %v1018 = vpop.permute.xlu0 %1017
      %1019 = vrot.lane.b32.xlu0 %v949, 111
      %v1020 = vpop.permute.xlu0 %1019
      %v1021 = vsel %vm809, %v1018, %v1020
      %v1022 = vsel %vm809, %v1016, %v1018
      %v1023 = vsel %vm809, %v1020, %v1016
      %1024 = vst [vmem:[#allocation2 + $0x90] sm:$0xff] %v1022
      %1025 = vst [vmem:[#allocation2 + $0x98] sm:$0xff] %v1021
      %1026 = vst [vmem:[#allocation2 + $0xa0] sm:$0xff] %v1023
      %1027 = vrot.lane.b32.xlu0 %v947, 110
      %v1028 = vpop.permute.xlu0 %1027
      %1029 = vrot.lane.b32.xlu0 %v948, 110
      %v1030 = vpop.permute.xlu0 %1029
      %1031 = vrot.lane.b32.xlu0 %v949, 110
      %v1032 = vpop.permute.xlu0 %1031
      %v1033 = vsel %vm822, %v1030, %v1032
      %v1034 = vsel %vm822, %v1028, %v1030
      %v1035 = vsel %vm822, %v1032, %v1028
      %1036 = vst [vmem:[#allocation2 + $0xa8] sm:$0xff] %v1034
      %1037 = vst [vmem:[#allocation2 + $0xb0] sm:$0xff] %v1033
      %1038 = vst [vmem:[#allocation2 + $0xb8] sm:$0xff] %v1035
      %1039 = vrot.lane.b32.xlu0 %v947, 109
      %v1040 = vpop.permute.xlu0 %1039
      %1041 = vrot.lane.b32.xlu0 %v948, 109
      %v1042 = vpop.permute.xlu0 %1041
      %1043 = vrot.lane.b32.xlu0 %v949, 109
      %v1044 = vpop.permute.xlu0 %1043
      %v1045 = vsel %vm835, %v1042, %v1044
      %v1046 = vsel %vm835, %v1040, %v1042
      %v1047 = vsel %vm835, %v1044, %v1040
      %1048 = vst [vmem:[#allocation2 + $0xc0] sm:$0xff] %v1046
      %1049 = vst [vmem:[#allocation2 + $0xc8] sm:$0xff] %v1045
      %1050 = vst [vmem:[#allocation2 + $0xd0] sm:$0xff] %v1047
      %v1051 = vld [vmem:[#allocation2] sm:$0xff]
      %v1052 = vld [vmem:[#allocation2 + $0x8] sm:$0xff]
      %v1053 = vld [vmem:[#allocation2 + $0x10] sm:$0xff]
      %v1054 = vld [vmem:[#allocation2 + $0x18] sm:$0xff]
      %v1055 = vld [vmem:[#allocation2 + $0x20] sm:$0xff]
      %v1056 = vld [vmem:[#allocation2 + $0x28] sm:$0xff]
      %v1057 = vld [vmem:[#allocation2 + $0x30] sm:$0xff]
      %v1058 = vld [vmem:[#allocation2 + $0x38] sm:$0xff]
      %v1059 = vld [vmem:[#allocation2 + $0x40] sm:$0xff]
      %v1060 = vld [vmem:[#allocation2 + $0x48] sm:$0xff]
      %v1061 = vld [vmem:[#allocation2 + $0x50] sm:$0xff]
      %v1062 = vld [vmem:[#allocation2 + $0x58] sm:$0xff]
      %v1063 = vld [vmem:[#allocation2 + $0x60] sm:$0xff]
      %v1064 = vld [vmem:[#allocation2 + $0x68] sm:$0xff]
      %v1065 = vld [vmem:[#allocation2 + $0x70] sm:$0xff]
      %v1066 = vld [vmem:[#allocation2 + $0x78] sm:$0xff]
      %v1067 = vld [vmem:[#allocation2 + $0x80] sm:$0xff]
      %v1068 = vld [vmem:[#allocation2 + $0x88] sm:$0xff]
      %v1069 = vld [vmem:[#allocation2 + $0x90] sm:$0xff]
      %v1070 = vld [vmem:[#allocation2 + $0x98] sm:$0xff]
      %v1071 = vld [vmem:[#allocation2 + $0xa0] sm:$0xff]
      %v1072 = vld [vmem:[#allocation2 + $0xa8] sm:$0xff]
      %v1073 = vld [vmem:[#allocation2 + $0xb0] sm:$0xff]
      %v1074 = vld [vmem:[#allocation2 + $0xb8] sm:$0xff]
      %v1075 = vld [vmem:[#allocation2 + $0xc0] sm:$0xff]
      %v1076 = vld [vmem:[#allocation2 + $0xc8] sm:$0xff]
      %v1077 = vld [vmem:[#allocation2 + $0xd0] sm:$0xff]
      %1079 = vset.pattern.permute.xlu0 0
      %1080 = vperm.xlu0 %1079, %v951
      %v1081 = vpop.permute.xlu0 %1080
      %v1084 = vsel %vm874, %v950, 0
      %1086 = vmatpush.msra.mxu0 0.0
      %1087 = vmatpush.msra.mxu0 0.0
      %1088 = vmatpush.msra.mxu0 0.0
      %1089 = vmatpush.msra.mxu0 0.0
      %1090 = vmatpush.msra.mxu0 0.0
      %1091 = vmatpush.msra.mxu0 0.0
      %1092 = vmatpush.msra.mxu0 0.0
      %1093 = vmatpush.msra.mxu0 %v1075
      %1094 = vmatpush.msra.mxu0 %v1072
      %1095 = vmatpush.msra.mxu0 %v1069
      %1096 = vmatpush.msra.mxu0 %v1066
      %1097 = vmatpush.msra.mxu0 %v1063
      %1098 = vmatpush.msra.mxu0 %v1060
      %1099 = vmatpush.msra.mxu0 %v1057
      %1100 = vmatpush.msra.mxu0 %v1054
      %1101 = vmatpush.msra.mxu0 %v1051
      %1102 = vmatmul.f32.gmra.mxu0 %v1084
      %v1103 = vpop.f32.mrf.mxu0
      %v1104 = vadd.f32 %v1081, %v1103
      %1105 = vdwg.mxu0
      %1106 = vmatpush.msra.mxu0 0.0
      %1107 = vmatpush.msra.mxu0 0.0
      %1108 = vmatpush.msra.mxu0 0.0
      %1109 = vmatpush.msra.mxu0 0.0
      %1110 = vmatpush.msra.mxu0 0.0
      %1111 = vmatpush.msra.mxu0 0.0
      %1112 = vmatpush.msra.mxu0 0.0
      %1113 = vmatpush.msra.mxu0 %v1076
      %1114 = vmatpush.msra.mxu0 %v1073
      %1115 = vmatpush.msra.mxu0 %v1070
      %1116 = vmatpush.msra.mxu0 %v1067
      %1117 = vmatpush.msra.mxu0 %v1064
      %1118 = vmatpush.msra.mxu0 %v1061
      %1119 = vmatpush.msra.mxu0 %v1058
      %1120 = vmatpush.msra.mxu0 %v1055
      %1121 = vmatpush.msra.mxu0 %v1052
      %1122 = vmatmul.f32.gmra.mxu0 %v1084
      %v1123 = vpop.f32.mrf.mxu0
      %v1124 = vadd.f32 %v1081, %v1123
      %1125 = vdwg.mxu0
      %1126 = vmatpush.msra.mxu0 0.0
      %1127 = vmatpush.msra.mxu0 0.0
      %1128 = vmatpush.msra.mxu0 0.0
      %1129 = vmatpush.msra.mxu0 0.0
      %1130 = vmatpush.msra.mxu0 0.0
      %1131 = vmatpush.msra.mxu0 0.0
      %1132 = vmatpush.msra.mxu0 0.0
      %1133 = vmatpush.msra.mxu0 %v1077
      %1134 = vmatpush.msra.mxu0 %v1074
      %1135 = vmatpush.msra.mxu0 %v1071
      %1136 = vmatpush.msra.mxu0 %v1068
      %1137 = vmatpush.msra.mxu0 %v1065
      %1138 = vmatpush.msra.mxu0 %v1062
      %1139 = vmatpush.msra.mxu0 %v1059
      %1140 = vmatpush.msra.mxu0 %v1056
      %1141 = vmatpush.msra.mxu0 %v1053
      %1142 = vmatmul.f32.gmra.mxu0 %v1084
      %v1143 = vpop.f32.mrf.mxu0
      %v1144 = vadd.f32 %v1081, %v1143
      %1145 = vdwg.mxu0
      %v1146 = vmul.f32 %v1104, %v719
      %v1147 = vmul.f32 %v1124, %v720
      %v1148 = vmul.f32 %v1144, %v721
      %v1149 = vld [vmem:[%s7] sm:$0xff]
      %v1150 = vld [vmem:[%s8] sm:$0xff]
      %1151 = vrot.lane.b32.xlu0 %v728, 19
      %v1152 = vpop.permute.xlu0 %1151
      %1153 = vrot.lane.b32.xlu0 %v729, 19
      %v1154 = vpop.permute.xlu0 %1153
      %1155 = vrot.lane.b32.xlu0 %v730, 19
      %v1156 = vpop.permute.xlu0 %1155
      %v1157 = vsel %vm741, %v1154, %v1156
      %v1158 = vsel %vm741, %v1152, %v1154
      %v1159 = vsel %vm741, %v1156, %v1152
      %1160 = vst [vmem:[#allocation2] sm:$0xff] %v1159
      %1161 = vst [vmem:[#allocation2 + $0x8] sm:$0xff] %v1158
      %1162 = vst [vmem:[#allocation2 + $0x10] sm:$0xff] %v1157
      %1163 = vrot.lane.b32.xlu0 %v728, 18
      %v1164 = vpop.permute.xlu0 %1163
      %1165 = vrot.lane.b32.xlu0 %v729, 18
      %v1166 = vpop.permute.xlu0 %1165
      %1167 = vrot.lane.b32.xlu0 %v730, 18
      %v1168 = vpop.permute.xlu0 %1167
      %v1169 = vsel %vm754, %v1166, %v1168
      %v1170 = vsel %vm754, %v1164, %v1166
      %v1171 = vsel %vm754, %v1168, %v1164
      %1172 = vst [vmem:[#allocation2 + $0x18] sm:$0xff] %v1171
      %1173 = vst [vmem:[#allocation2 + $0x20] sm:$0xff] %v1170
      %1174 = vst [vmem:[#allocation2 + $0x28] sm:$0xff] %v1169
      %1175 = vrot.lane.b32.xlu0 %v728, 17
      %v1176 = vpop.permute.xlu0 %1175
      %1177 = vrot.lane.b32.xlu0 %v729, 17
      %v1178 = vpop.permute.xlu0 %1177
      %1179 = vrot.lane.b32.xlu0 %v730, 17
      %v1180 = vpop.permute.xlu0 %1179
      %v1181 = vsel %vm767, %v1178, %v1180
      %v1182 = vsel %vm767, %v1176, %v1178
      %v1183 = vsel %vm767, %v1180, %v1176
      %1184 = vst [vmem:[#allocation2 + $0x30] sm:$0xff] %v1183
      %1185 = vst [vmem:[#allocation2 + $0x38] sm:$0xff] %v1182
      %1186 = vst [vmem:[#allocation2 + $0x40] sm:$0xff] %v1181
      %1187 = vrot.lane.b32.xlu0 %v728, 1
      %v1188 = vpop.permute.xlu0 %1187
      %1189 = vrot.lane.b32.xlu0 %v729, 1
      %v1190 = vpop.permute.xlu0 %1189
      %1191 = vrot.lane.b32.xlu0 %v730, 1
      %v1192 = vpop.permute.xlu0 %1191
      %v1193 = vsel %vm780, %v1190, %v1192
      %v1194 = vsel %vm780, %v1188, %v1190
      %v1195 = vsel %vm780, %v1192, %v1188
      %1196 = vst [vmem:[#allocation2 + $0x48] sm:$0xff] %v1195
      %1197 = vst [vmem:[#allocation2 + $0x50] sm:$0xff] %v1194
      %1198 = vst [vmem:[#allocation2 + $0x58] sm:$0xff] %v1193
      %1199 = vst [vmem:[#allocation2 + $0x60] sm:$0xff] %v728
      %1200 = vst [vmem:[#allocation2 + $0x68] sm:$0xff] %v729
      %1201 = vst [vmem:[#allocation2 + $0x70] sm:$0xff] %v730
      %1202 = vrot.lane.b32.xlu0 %v728, 127
      %v1203 = vpop.permute.xlu0 %1202
      %1204 = vrot.lane.b32.xlu0 %v729, 127
      %v1205 = vpop.permute.xlu0 %1204
      %1206 = vrot.lane.b32.xlu0 %v730, 127
      %v1207 = vpop.permute.xlu0 %1206
      %v1208 = vsel %vm796, %v1205, %v1207
      %v1209 = vsel %vm796, %v1203, %v1205
      %v1210 = vsel %vm796, %v1207, %v1203
      %1211 = vst [vmem:[#allocation2 + $0x78] sm:$0xff] %v1209
      %1212 = vst [vmem:[#allocation2 + $0x80] sm:$0xff] %v1208
      %1213 = vst [vmem:[#allocation2 + $0x88] sm:$0xff] %v1210
      %1214 = vrot.lane.b32.xlu0 %v728, 111
      %v1215 = vpop.permute.xlu0 %1214
      %1216 = vrot.lane.b32.xlu0 %v729, 111
      %v1217 = vpop.permute.xlu0 %1216
      %1218 = vrot.lane.b32.xlu0 %v730, 111
      %v1219 = vpop.permute.xlu0 %1218
      %v1220 = vsel %vm809, %v1217, %v1219
      %v1221 = vsel %vm809, %v1215, %v1217
      %v1222 = vsel %vm809, %v1219, %v1215
      %1223 = vst [vmem:[#allocation2 + $0x90] sm:$0xff] %v1221
      %1224 = vst [vmem:[#allocation2 + $0x98] sm:$0xff] %v1220
      %1225 = vst [vmem:[#allocation2 + $0xa0] sm:$0xff] %v1222
      %1226 = vrot.lane.b32.xlu0 %v728, 110
      %v1227 = vpop.permute.xlu0 %1226
      %1228 = vrot.lane.b32.xlu0 %v729, 110
      %v1229 = vpop.permute.xlu0 %1228
      %1230 = vrot.lane.b32.xlu0 %v730, 110
      %v1231 = vpop.permute.xlu0 %1230
      %v1232 = vsel %vm822, %v1229, %v1231
      %v1233 = vsel %vm822, %v1227, %v1229
      %v1234 = vsel %vm822, %v1231, %v1227
      %1235 = vst [vmem:[#allocation2 + $0xa8] sm:$0xff] %v1233
      %1236 = vst [vmem:[#allocation2 + $0xb0] sm:$0xff] %v1232
      %1237 = vst [vmem:[#allocation2 + $0xb8] sm:$0xff] %v1234
      %1238 = vrot.lane.b32.xlu0 %v728, 109
      %v1239 = vpop.permute.xlu0 %1238
      %1240 = vrot.lane.b32.xlu0 %v729, 109
      %v1241 = vpop.permute.xlu0 %1240
      %1242 = vrot.lane.b32.xlu0 %v730, 109
      %v1243 = vpop.permute.xlu0 %1242
      %v1244 = vsel %vm835, %v1241, %v1243
      %v1245 = vsel %vm835, %v1239, %v1241
      %v1246 = vsel %vm835, %v1243, %v1239
      %1247 = vst [vmem:[#allocation2 + $0xc0] sm:$0xff] %v1245
      %1248 = vst [vmem:[#allocation2 + $0xc8] sm:$0xff] %v1244
      %1249 = vst [vmem:[#allocation2 + $0xd0] sm:$0xff] %v1246
      %v1250 = vld [vmem:[#allocation2] sm:$0xff]
      %v1251 = vld [vmem:[#allocation2 + $0x8] sm:$0xff]
      %v1252 = vld [vmem:[#allocation2 + $0x10] sm:$0xff]
      %v1253 = vld [vmem:[#allocation2 + $0x18] sm:$0xff]
      %v1254 = vld [vmem:[#allocation2 + $0x20] sm:$0xff]
      %v1255 = vld [vmem:[#allocation2 + $0x28] sm:$0xff]
      %v1256 = vld [vmem:[#allocation2 + $0x30] sm:$0xff]
      %v1257 = vld [vmem:[#allocation2 + $0x38] sm:$0xff]
      %v1258 = vld [vmem:[#allocation2 + $0x40] sm:$0xff]
      %v1259 = vld [vmem:[#allocation2 + $0x48] sm:$0xff]
      %v1260 = vld [vmem:[#allocation2 + $0x50] sm:$0xff]
      %v1261 = vld [vmem:[#allocation2 + $0x58] sm:$0xff]
      %v1262 = vld [vmem:[#allocation2 + $0x60] sm:$0xff]
      %v1263 = vld [vmem:[#allocation2 + $0x68] sm:$0xff]
      %v1264 = vld [vmem:[#allocation2 + $0x70] sm:$0xff]
      %v1265 = vld [vmem:[#allocation2 + $0x78] sm:$0xff]
      %v1266 = vld [vmem:[#allocation2 + $0x80] sm:$0xff]
      %v1267 = vld [vmem:[#allocation2 + $0x88] sm:$0xff]
      %v1268 = vld [vmem:[#allocation2 + $0x90] sm:$0xff]
      %v1269 = vld [vmem:[#allocation2 + $0x98] sm:$0xff]
      %v1270 = vld [vmem:[#allocation2 + $0xa0] sm:$0xff]
      %v1271 = vld [vmem:[#allocation2 + $0xa8] sm:$0xff]
      %v1272 = vld [vmem:[#allocation2 + $0xb0] sm:$0xff]
      %v1273 = vld [vmem:[#allocation2 + $0xb8] sm:$0xff]
      %v1274 = vld [vmem:[#allocation2 + $0xc0] sm:$0xff]
      %v1275 = vld [vmem:[#allocation2 + $0xc8] sm:$0xff]
      %v1276 = vld [vmem:[#allocation2 + $0xd0] sm:$0xff]
      %1278 = vset.pattern.permute.xlu0 0
      %1279 = vperm.xlu0 %1278, %v1150
      %v1280 = vpop.permute.xlu0 %1279
      %v1283 = vsel %vm874, %v1149, 0
      %1285 = vmatpush.msra.mxu0 0.0
      %1286 = vmatpush.msra.mxu0 0.0
      %1287 = vmatpush.msra.mxu0 0.0
      %1288 = vmatpush.msra.mxu0 0.0
      %1289 = vmatpush.msra.mxu0 0.0
      %1290 = vmatpush.msra.mxu0 0.0
      %1291 = vmatpush.msra.mxu0 0.0
      %1292 = vmatpush.msra.mxu0 %v1274
      %1293 = vmatpush.msra.mxu0 %v1271
      %1294 = vmatpush.msra.mxu0 %v1268
      %1295 = vmatpush.msra.mxu0 %v1265
      %1296 = vmatpush.msra.mxu0 %v1262
      %1297 = vmatpush.msra.mxu0 %v1259
      %1298 = vmatpush.msra.mxu0 %v1256
      %1299 = vmatpush.msra.mxu0 %v1253
      %1300 = vmatpush.msra.mxu0 %v1250
      %1301 = vmatmul.f32.gmra.mxu0 %v1283
      %v1302 = vpop.f32.mrf.mxu0
      %v1303 = vadd.f32 %v1280, %v1302
      %1304 = vdwg.mxu0
      %1305 = vmatpush.msra.mxu0 0.0
      %1306 = vmatpush.msra.mxu0 0.0
      %1307 = vmatpush.msra.mxu0 0.0
      %1308 = vmatpush.msra.mxu0 0.0
      %1309 = vmatpush.msra.mxu0 0.0
      %1310 = vmatpush.msra.mxu0 0.0
      %1311 = vmatpush.msra.mxu0 0.0
      %1312 = vmatpush.msra.mxu0 %v1275
      %1313 = vmatpush.msra.mxu0 %v1272
      %1314 = vmatpush.msra.mxu0 %v1269
      %1315 = vmatpush.msra.mxu0 %v1266
      %1316 = vmatpush.msra.mxu0 %v1263
      %1317 = vmatpush.msra.mxu0 %v1260
      %1318 = vmatpush.msra.mxu0 %v1257
      %1319 = vmatpush.msra.mxu0 %v1254
      %1320 = vmatpush.msra.mxu0 %v1251
      %1321 = vmatmul.f32.gmra.mxu0 %v1283
      %v1322 = vpop.f32.mrf.mxu0
      %v1323 = vadd.f32 %v1280, %v1322
      %1324 = vdwg.mxu0
      %1325 = vmatpush.msra.mxu0 0.0
      %1326 = vmatpush.msra.mxu0 0.0
      %1327 = vmatpush.msra.mxu0 0.0
      %1328 = vmatpush.msra.mxu0 0.0
      %1329 = vmatpush.msra.mxu0 0.0
      %1330 = vmatpush.msra.mxu0 0.0
      %1331 = vmatpush.msra.mxu0 0.0
      %1332 = vmatpush.msra.mxu0 %v1276
      %1333 = vmatpush.msra.mxu0 %v1273
      %1334 = vmatpush.msra.mxu0 %v1270
      %1335 = vmatpush.msra.mxu0 %v1267
      %1336 = vmatpush.msra.mxu0 %v1264
      %1337 = vmatpush.msra.mxu0 %v1261
      %1338 = vmatpush.msra.mxu0 %v1258
      %1339 = vmatpush.msra.mxu0 %v1255
      %1340 = vmatpush.msra.mxu0 %v1252
      %1341 = vmatmul.f32.gmra.mxu0 %v1283
      %v1342 = vpop.f32.mrf.mxu0
      %v1343 = vadd.f32 %v1280, %v1342
      %1344 = vdwg.mxu0
      %v1345 = vmul.f32 %v1303, %v719
      %v1346 = vmul.f32 %v1323, %v720
      %v1347 = vmul.f32 %v1343, %v721
      %vm1348 = vcmp.ge.f32.partialorder %v1345, 0.0
      %vm1349 = vcmp.ge.f32.partialorder %v1346, 0.0
      %vm1350 = vcmp.ge.f32.partialorder %v1347, 0.0
      %v1351 = vmul.f32 %v1345, 0.1
      %v1352 = vmul.f32 %v1346, 0.1
      %v1353 = vmul.f32 %v1347, 0.1
      %v1354 = vsel %vm1348, %v1345, %v1351
      %v1355 = vsel %vm1349, %v1346, %v1352
      %v1356 = vsel %vm1350, %v1347, %v1353
      %v1357 = vld [vmem:[%s9] sm:$0xff]
      %v1358 = vld [vmem:[%s10] sm:$0xff]
      %1359 = vrot.lane.b32.xlu0 %v1354, 19
      %v1360 = vpop.permute.xlu0 %1359
      %1361 = vrot.lane.b32.xlu0 %v1355, 19
      %v1362 = vpop.permute.xlu0 %1361
      %1363 = vrot.lane.b32.xlu0 %v1356, 19
      %v1364 = vpop.permute.xlu0 %1363
      %v1365 = vsel %vm741, %v1362, %v1364
      %v1366 = vsel %vm741, %v1360, %v1362
      %v1367 = vsel %vm741, %v1364, %v1360
      %1368 = vst [vmem:[#allocation2] sm:$0xff] %v1367
      %1369 = vst [vmem:[#allocation2 + $0x8] sm:$0xff] %v1366
      %1370 = vst [vmem:[#allocation2 + $0x10] sm:$0xff] %v1365
      %1371 = vrot.lane.b32.xlu0 %v1354, 18
      %v1372 = vpop.permute.xlu0 %1371
      %1373 = vrot.lane.b32.xlu0 %v1355, 18
      %v1374 = vpop.permute.xlu0 %1373
      %1375 = vrot.lane.b32.xlu0 %v1356, 18
      %v1376 = vpop.permute.xlu0 %1375
      %v1377 = vsel %vm754, %v1374, %v1376
      %v1378 = vsel %vm754, %v1372, %v1374
      %v1379 = vsel %vm754, %v1376, %v1372
      %1380 = vst [vmem:[#allocation2 + $0x18] sm:$0xff] %v1379
      %1381 = vst [vmem:[#allocation2 + $0x20] sm:$0xff] %v1378
      %1382 = vst [vmem:[#allocation2 + $0x28] sm:$0xff] %v1377
      %1383 = vrot.lane.b32.xlu0 %v1354, 17
      %v1384 = vpop.permute.xlu0 %1383
      %1385 = vrot.lane.b32.xlu0 %v1355, 17
      %v1386 = vpop.permute.xlu0 %1385
      %1387 = vrot.lane.b32.xlu0 %v1356, 17
      %v1388 = vpop.permute.xlu0 %1387
      %v1389 = vsel %vm767, %v1386, %v1388
      %v1390 = vsel %vm767, %v1384, %v1386
      %v1391 = vsel %vm767, %v1388, %v1384
      %1392 = vst [vmem:[#allocation2 + $0x30] sm:$0xff] %v1391
      %1393 = vst [vmem:[#allocation2 + $0x38] sm:$0xff] %v1390
      %1394 = vst [vmem:[#allocation2 + $0x40] sm:$0xff] %v1389
      %1395 = vrot.lane.b32.xlu0 %v1354, 1
      %v1396 = vpop.permute.xlu0 %1395
      %1397 = vrot.lane.b32.xlu0 %v1355, 1
      %v1398 = vpop.permute.xlu0 %1397
      %1399 = vrot.lane.b32.xlu0 %v1356, 1
      %v1400 = vpop.permute.xlu0 %1399
      %v1401 = vsel %vm780, %v1398, %v1400
      %v1402 = vsel %vm780, %v1396, %v1398
      %v1403 = vsel %vm780, %v1400, %v1396
      %1404 = vst [vmem:[#allocation2 + $0x48] sm:$0xff] %v1403
      %1405 = vst [vmem:[#allocation2 + $0x50] sm:$0xff] %v1402
      %1406 = vst [vmem:[#allocation2 + $0x58] sm:$0xff] %v1401
      %1407 = vst [vmem:[#allocation2 + $0x60] sm:$0xff] %v1354
      %1408 = vst [vmem:[#allocation2 + $0x68] sm:$0xff] %v1355
      %1409 = vst [vmem:[#allocation2 + $0x70] sm:$0xff] %v1356
      %1410 = vrot.lane.b32.xlu0 %v1354, 127
      %v1411 = vpop.permute.xlu0 %1410
      %1412 = vrot.lane.b32.xlu0 %v1355, 127
      %v1413 = vpop.permute.xlu0 %1412
      %1414 = vrot.lane.b32.xlu0 %v1356, 127
      %v1415 = vpop.permute.xlu0 %1414
      %v1416 = vsel %vm796, %v1413, %v1415
      %v1417 = vsel %vm796, %v1411, %v1413
      %v1418 = vsel %vm796, %v1415, %v1411
      %1419 = vst [vmem:[#allocation2 + $0x78] sm:$0xff] %v1417
      %1420 = vst [vmem:[#allocation2 + $0x80] sm:$0xff] %v1416
      %1421 = vst [vmem:[#allocation2 + $0x88] sm:$0xff] %v1418
      %1422 = vrot.lane.b32.xlu0 %v1354, 111
      %v1423 = vpop.permute.xlu0 %1422
      %1424 = vrot.lane.b32.xlu0 %v1355, 111
      %v1425 = vpop.permute.xlu0 %1424
      %1426 = vrot.lane.b32.xlu0 %v1356, 111
      %v1427 = vpop.permute.xlu0 %1426
      %v1428 = vsel %vm809, %v1425, %v1427
      %v1429 = vsel %vm809, %v1423, %v1425
      %v1430 = vsel %vm809, %v1427, %v1423
      %1431 = vst [vmem:[#allocation2 + $0x90] sm:$0xff] %v1429
      %1432 = vst [vmem:[#allocation2 + $0x98] sm:$0xff] %v1428
      %1433 = vst [vmem:[#allocation2 + $0xa0] sm:$0xff] %v1430
      %1434 = vrot.lane.b32.xlu0 %v1354, 110
      %v1435 = vpop.permute.xlu0 %1434
      %1436 = vrot.lane.b32.xlu0 %v1355, 110
      %v1437 = vpop.permute.xlu0 %1436
      %1438 = vrot.lane.b32.xlu0 %v1356, 110
      %v1439 = vpop.permute.xlu0 %1438
      %v1440 = vsel %vm822, %v1437, %v1439
      %v1441 = vsel %vm822, %v1435, %v1437
      %v1442 = vsel %vm822, %v1439, %v1435
      %1443 = vst [vmem:[#allocation2 + $0xa8] sm:$0xff] %v1441
      %1444 = vst [vmem:[#allocation2 + $0xb0] sm:$0xff] %v1440
      %1445 = vst [vmem:[#allocation2 + $0xb8] sm:$0xff] %v1442
      %1446 = vrot.lane.b32.xlu0 %v1354, 109
      %v1447 = vpop.permute.xlu0 %1446
      %1448 = vrot.lane.b32.xlu0 %v1355, 109
      %v1449 = vpop.permute.xlu0 %1448
      %1450 = vrot.lane.b32.xlu0 %v1356, 109
      %v1451 = vpop.permute.xlu0 %1450
      %v1452 = vsel %vm835, %v1449, %v1451
      %v1453 = vsel %vm835, %v1447, %v1449
      %v1454 = vsel %vm835, %v1451, %v1447
      %1455 = vst [vmem:[#allocation2 + $0xc0] sm:$0xff] %v1453
      %1456 = vst [vmem:[#allocation2 + $0xc8] sm:$0xff] %v1452
      %1457 = vst [vmem:[#allocation2 + $0xd0] sm:$0xff] %v1454
      %v1458 = vld [vmem:[#allocation2] sm:$0xff]
      %v1459 = vld [vmem:[#allocation2 + $0x8] sm:$0xff]
      %v1460 = vld [vmem:[#allocation2 + $0x10] sm:$0xff]
      %v1461 = vld [vmem:[#allocation2 + $0x18] sm:$0xff]
      %v1462 = vld [vmem:[#allocation2 + $0x20] sm:$0xff]
      %v1463 = vld [vmem:[#allocation2 + $0x28] sm:$0xff]
      %v1464 = vld [vmem:[#allocation2 + $0x30] sm:$0xff]
      %v1465 = vld [vmem:[#allocation2 + $0x38] sm:$0xff]
      %v1466 = vld [vmem:[#allocation2 + $0x40] sm:$0xff]
      %v1467 = vld [vmem:[#allocation2 + $0x48] sm:$0xff]
      %v1468 = vld [vmem:[#allocation2 + $0x50] sm:$0xff]
      %v1469 = vld [vmem:[#allocation2 + $0x58] sm:$0xff]
      %v1470 = vld [vmem:[#allocation2 + $0x60] sm:$0xff]
      %v1471 = vld [vmem:[#allocation2 + $0x68] sm:$0xff]
      %v1472 = vld [vmem:[#allocation2 + $0x70] sm:$0xff]
      %v1473 = vld [vmem:[#allocation2 + $0x78] sm:$0xff]
      %v1474 = vld [vmem:[#allocation2 + $0x80] sm:$0xff]
      %v1475 = vld [vmem:[#allocation2 + $0x88] sm:$0xff]
      %v1476 = vld [vmem:[#allocation2 + $0x90] sm:$0xff]
      %v1477 = vld [vmem:[#allocation2 + $0x98] sm:$0xff]
      %v1478 = vld [vmem:[#allocation2 + $0xa0] sm:$0xff]
      %v1479 = vld [vmem:[#allocation2 + $0xa8] sm:$0xff]
      %v1480 = vld [vmem:[#allocation2 + $0xb0] sm:$0xff]
      %v1481 = vld [vmem:[#allocation2 + $0xb8] sm:$0xff]
      %v1482 = vld [vmem:[#allocation2 + $0xc0] sm:$0xff]
      %v1483 = vld [vmem:[#allocation2 + $0xc8] sm:$0xff]
      %v1484 = vld [vmem:[#allocation2 + $0xd0] sm:$0xff]
      %1486 = vset.pattern.permute.xlu0 0
      %1487 = vperm.xlu0 %1486, %v1358
      %v1488 = vpop.permute.xlu0 %1487
      %v1491 = vsel %vm874, %v1357, 0
      %1493 = vmatpush.msra.mxu0 0.0
      %1494 = vmatpush.msra.mxu0 0.0
      %1495 = vmatpush.msra.mxu0 0.0
      %1496 = vmatpush.msra.mxu0 0.0
      %1497 = vmatpush.msra.mxu0 0.0
      %1498 = vmatpush.msra.mxu0 0.0
      %1499 = vmatpush.msra.mxu0 0.0
      %1500 = vmatpush.msra.mxu0 %v1482
      %1501 = vmatpush.msra.mxu0 %v1479
      %1502 = vmatpush.msra.mxu0 %v1476
      %1503 = vmatpush.msra.mxu0 %v1473
      %1504 = vmatpush.msra.mxu0 %v1470
      %1505 = vmatpush.msra.mxu0 %v1467
      %1506 = vmatpush.msra.mxu0 %v1464
      %1507 = vmatpush.msra.mxu0 %v1461
      %1508 = vmatpush.msra.mxu0 %v1458
      %1509 = vmatmul.f32.gmra.mxu0 %v1491
      %v1510 = vpop.f32.mrf.mxu0
      %v1511 = vadd.f32 %v1488, %v1510
      %1512 = vdwg.mxu0
      %1513 = vmatpush.msra.mxu0 0.0
      %1514 = vmatpush.msra.mxu0 0.0
      %1515 = vmatpush.msra.mxu0 0.0
      %1516 = vmatpush.msra.mxu0 0.0
      %1517 = vmatpush.msra.mxu0 0.0
      %1518 = vmatpush.msra.mxu0 0.0
      %1519 = vmatpush.msra.mxu0 0.0
      %1520 = vmatpush.msra.mxu0 %v1483
      %1521 = vmatpush.msra.mxu0 %v1480
      %1522 = vmatpush.msra.mxu0 %v1477
      %1523 = vmatpush.msra.mxu0 %v1474
      %1524 = vmatpush.msra.mxu0 %v1471
      %1525 = vmatpush.msra.mxu0 %v1468
      %1526 = vmatpush.msra.mxu0 %v1465
      %1527 = vmatpush.msra.mxu0 %v1462
      %1528 = vmatpush.msra.mxu0 %v1459
      %1529 = vmatmul.f32.gmra.mxu0 %v1491
      %v1530 = vpop.f32.mrf.mxu0
      %v1531 = vadd.f32 %v1488, %v1530
      %1532 = vdwg.mxu0
      %1533 = vmatpush.msra.mxu0 0.0
      %1534 = vmatpush.msra.mxu0 0.0
      %1535 = vmatpush.msra.mxu0 0.0
      %1536 = vmatpush.msra.mxu0 0.0
      %1537 = vmatpush.msra.mxu0 0.0
      %1538 = vmatpush.msra.mxu0 0.0
      %1539 = vmatpush.msra.mxu0 0.0
      %1540 = vmatpush.msra.mxu0 %v1484
      %1541 = vmatpush.msra.mxu0 %v1481
      %1542 = vmatpush.msra.mxu0 %v1478
      %1543 = vmatpush.msra.mxu0 %v1475
      %1544 = vmatpush.msra.mxu0 %v1472
      %1545 = vmatpush.msra.mxu0 %v1469
      %1546 = vmatpush.msra.mxu0 %v1466
      %1547 = vmatpush.msra.mxu0 %v1463
      %1548 = vmatpush.msra.mxu0 %v1460
      %1549 = vmatmul.f32.gmra.mxu0 %v1491
      %v1550 = vpop.f32.mrf.mxu0
      %v1551 = vadd.f32 %v1488, %v1550
      %1552 = vdwg.mxu0
      %v1553 = vmul.f32 %v1511, %v719
      %v1554 = vmul.f32 %v1531, %v720
      %v1555 = vmul.f32 %v1551, %v721
      %vm1556 = vcmp.ge.f32.partialorder %v1146, 0.0
      %vm1557 = vcmp.ge.f32.partialorder %v1147, 0.0
      %vm1558 = vcmp.ge.f32.partialorder %v1148, 0.0
      %v1559 = vmul.f32 %v1146, 0.1
      %v1560 = vmul.f32 %v1147, 0.1
      %v1561 = vmul.f32 %v1148, 0.1
      %v1562 = vsel %vm1556, %v1146, %v1559
      %v1563 = vsel %vm1557, %v1147, %v1560
      %v1564 = vsel %vm1558, %v1148, %v1561
      %vm1565 = vcmp.ge.f32.partialorder %v1553, 0.0
      %vm1566 = vcmp.ge.f32.partialorder %v1554, 0.0
      %vm1567 = vcmp.ge.f32.partialorder %v1555, 0.0
      %v1568 = vmul.f32 %v1553, 0.1
      %v1569 = vmul.f32 %v1554, 0.1
      %v1570 = vmul.f32 %v1555, 0.1
      %v1571 = vsel %vm1565, %v1553, %v1568
      %v1572 = vsel %vm1566, %v1554, %v1569
      %v1573 = vsel %vm1567, %v1555, %v1570
      %v1574 = vld [vmem:[%s11] sm:$0xff]
      %v1575 = vld [vmem:[%s11 + $0x8] sm:$0xff]
      %v1576 = vld [vmem:[%s12] sm:$0xff]
      %1577 = vrot.lane.b32.xlu0 %v1562, 19
      %v1578 = vpop.permute.xlu0 %1577
      %1579 = vrot.lane.b32.xlu0 %v1563, 19
      %v1580 = vpop.permute.xlu0 %1579
      %1581 = vrot.lane.b32.xlu0 %v1564, 19
      %v1582 = vpop.permute.xlu0 %1581
      %v1583 = vsel %vm741, %v1580, %v1582
      %v1584 = vsel %vm741, %v1578, %v1580
      %v1585 = vsel %vm741, %v1582, %v1578
      %1586 = vst [vmem:[#allocation2] sm:$0xff] %v1585
      %1587 = vst [vmem:[#allocation2 + $0x8] sm:$0xff] %v1584
      %1588 = vst [vmem:[#allocation2 + $0x10] sm:$0xff] %v1583
      %1589 = vrot.lane.b32.xlu0 %v1562, 18
      %v1590 = vpop.permute.xlu0 %1589
      %1591 = vrot.lane.b32.xlu0 %v1563, 18
      %v1592 = vpop.permute.xlu0 %1591
      %1593 = vrot.lane.b32.xlu0 %v1564, 18
      %v1594 = vpop.permute.xlu0 %1593
      %v1595 = vsel %vm754, %v1592, %v1594
      %v1596 = vsel %vm754, %v1590, %v1592
      %v1597 = vsel %vm754, %v1594, %v1590
      %1598 = vst [vmem:[#allocation2 + $0x18] sm:$0xff] %v1597
      %1599 = vst [vmem:[#allocation2 + $0x20] sm:$0xff] %v1596
      %1600 = vst [vmem:[#allocation2 + $0x28] sm:$0xff] %v1595
      %1601 = vrot.lane.b32.xlu0 %v1562, 17
      %v1602 = vpop.permute.xlu0 %1601
      %1603 = vrot.lane.b32.xlu0 %v1563, 17
      %v1604 = vpop.permute.xlu0 %1603
      %1605 = vrot.lane.b32.xlu0 %v1564, 17
      %v1606 = vpop.permute.xlu0 %1605
      %v1607 = vsel %vm767, %v1604, %v1606
      %v1608 = vsel %vm767, %v1602, %v1604
      %v1609 = vsel %vm767, %v1606, %v1602
      %1610 = vst [vmem:[#allocation2 + $0x30] sm:$0xff] %v1609
      %1611 = vst [vmem:[#allocation2 + $0x38] sm:$0xff] %v1608
      %1612 = vst [vmem:[#allocation2 + $0x40] sm:$0xff] %v1607
      %1613 = vrot.lane.b32.xlu0 %v1562, 1
      %v1614 = vpop.permute.xlu0 %1613
      %1615 = vrot.lane.b32.xlu0 %v1563, 1
      %v1616 = vpop.permute.xlu0 %1615
      %1617 = vrot.lane.b32.xlu0 %v1564, 1
      %v1618 = vpop.permute.xlu0 %1617
      %v1619 = vsel %vm780, %v1616, %v1618
      %v1620 = vsel %vm780, %v1614, %v1616
      %v1621 = vsel %vm780, %v1618, %v1614
      %1622 = vst [vmem:[#allocation2 + $0x48] sm:$0xff] %v1621
      %1623 = vst [vmem:[#allocation2 + $0x50] sm:$0xff] %v1620
      %1624 = vst [vmem:[#allocation2 + $0x58] sm:$0xff] %v1619
      %1625 = vst [vmem:[#allocation2 + $0x60] sm:$0xff] %v1562
      %1626 = vst [vmem:[#allocation2 + $0x68] sm:$0xff] %v1563
      %1627 = vst [vmem:[#allocation2 + $0x70] sm:$0xff] %v1564
      %1628 = vrot.lane.b32.xlu0 %v1562, 127
      %v1629 = vpop.permute.xlu0 %1628
      %1630 = vrot.lane.b32.xlu0 %v1563, 127
      %v1631 = vpop.permute.xlu0 %1630
      %1632 = vrot.lane.b32.xlu0 %v1564, 127
      %v1633 = vpop.permute.xlu0 %1632
      %v1634 = vsel %vm796, %v1631, %v1633
      %v1635 = vsel %vm796, %v1629, %v1631
      %v1636 = vsel %vm796, %v1633, %v1629
      %1637 = vst [vmem:[#allocation2 + $0x78] sm:$0xff] %v1635
      %1638 = vst [vmem:[#allocation2 + $0x80] sm:$0xff] %v1634
      %1639 = vst [vmem:[#allocation2 + $0x88] sm:$0xff] %v1636
      %1640 = vrot.lane.b32.xlu0 %v1562, 111
      %v1641 = vpop.permute.xlu0 %1640
      %1642 = vrot.lane.b32.xlu0 %v1563, 111
      %v1643 = vpop.permute.xlu0 %1642
      %1644 = vrot.lane.b32.xlu0 %v1564, 111
      %v1645 = vpop.permute.xlu0 %1644
      %v1646 = vsel %vm809, %v1643, %v1645
      %v1647 = vsel %vm809, %v1641, %v1643
      %v1648 = vsel %vm809, %v1645, %v1641
      %1649 = vst [vmem:[#allocation2 + $0x90] sm:$0xff] %v1647
      %1650 = vst [vmem:[#allocation2 + $0x98] sm:$0xff] %v1646
      %1651 = vst [vmem:[#allocation2 + $0xa0] sm:$0xff] %v1648
      %1652 = vrot.lane.b32.xlu0 %v1562, 110
      %v1653 = vpop.permute.xlu0 %1652
      %1654 = vrot.lane.b32.xlu0 %v1563, 110
      %v1655 = vpop.permute.xlu0 %1654
      %1656 = vrot.lane.b32.xlu0 %v1564, 110
      %v1657 = vpop.permute.xlu0 %1656
      %v1658 = vsel %vm822, %v1655, %v1657
      %v1659 = vsel %vm822, %v1653, %v1655
      %v1660 = vsel %vm822, %v1657, %v1653
      %1661 = vst [vmem:[#allocation2 + $0xa8] sm:$0xff] %v1659
      %1662 = vst [vmem:[#allocation2 + $0xb0] sm:$0xff] %v1658
      %1663 = vst [vmem:[#allocation2 + $0xb8] sm:$0xff] %v1660
      %1664 = vrot.lane.b32.xlu0 %v1562, 109
      %v1665 = vpop.permute.xlu0 %1664
      %1666 = vrot.lane.b32.xlu0 %v1563, 109
      %v1667 = vpop.permute.xlu0 %1666
      %1668 = vrot.lane.b32.xlu0 %v1564, 109
      %v1669 = vpop.permute.xlu0 %1668
      %v1670 = vsel %vm835, %v1667, %v1669
      %v1671 = vsel %vm835, %v1665, %v1667
      %v1672 = vsel %vm835, %v1669, %v1665
      %1673 = vst [vmem:[#allocation2 + $0xc0] sm:$0xff] %v1671
      %1674 = vst [vmem:[#allocation2 + $0xc8] sm:$0xff] %v1670
      %1675 = vst [vmem:[#allocation2 + $0xd0] sm:$0xff] %v1672
      %1676 = vrot.lane.b32.xlu0 %v1571, 19
      %v1677 = vpop.permute.xlu0 %1676
      %1678 = vrot.lane.b32.xlu0 %v1572, 19
      %v1679 = vpop.permute.xlu0 %1678
      %1680 = vrot.lane.b32.xlu0 %v1573, 19
      %v1681 = vpop.permute.xlu0 %1680
      %v1682 = vsel %vm741, %v1679, %v1681
      %v1683 = vsel %vm741, %v1677, %v1679
      %v1684 = vsel %vm741, %v1681, %v1677
      %1685 = vst [vmem:[#allocation2 + $0xd8] sm:$0xff] %v1684
      %1686 = vst [vmem:[#allocation2 + $0xe0] sm:$0xff] %v1683
      %1687 = vst [vmem:[#allocation2 + $0xe8] sm:$0xff] %v1682
      %1688 = vrot.lane.b32.xlu0 %v1571, 18
      %v1689 = vpop.permute.xlu0 %1688
      %1690 = vrot.lane.b32.xlu0 %v1572, 18
      %v1691 = vpop.permute.xlu0 %1690
      %1692 = vrot.lane.b32.xlu0 %v1573, 18
      %v1693 = vpop.permute.xlu0 %1692
      %v1694 = vsel %vm754, %v1691, %v1693
      %v1695 = vsel %vm754, %v1689, %v1691
      %v1696 = vsel %vm754, %v1693, %v1689
      %1697 = vst [vmem:[#allocation2 + $0xf0] sm:$0xff] %v1696
      %1698 = vst [vmem:[#allocation2 + $0xf8] sm:$0xff] %v1695
      %1699 = vst [vmem:[#allocation2 + $0x100] sm:$0xff] %v1694
      %1700 = vrot.lane.b32.xlu0 %v1571, 17
      %v1701 = vpop.permute.xlu0 %1700
      %1702 = vrot.lane.b32.xlu0 %v1572, 17
      %v1703 = vpop.permute.xlu0 %1702
      %1704 = vrot.lane.b32.xlu0 %v1573, 17
      %v1705 = vpop.permute.xlu0 %1704
      %v1706 = vsel %vm767, %v1703, %v1705
      %v1707 = vsel %vm767, %v1701, %v1703
      %v1708 = vsel %vm767, %v1705, %v1701
      %1709 = vst [vmem:[#allocation2 + $0x108] sm:$0xff] %v1708
      %1710 = vst [vmem:[#allocation2 + $0x110] sm:$0xff] %v1707
      %1711 = vst [vmem:[#allocation2 + $0x118] sm:$0xff] %v1706
      %1712 = vrot.lane.b32.xlu0 %v1571, 1
      %v1713 = vpop.permute.xlu0 %1712
      %1714 = vrot.lane.b32.xlu0 %v1572, 1
      %v1715 = vpop.permute.xlu0 %1714
      %1716 = vrot.lane.b32.xlu0 %v1573, 1
      %v1717 = vpop.permute.xlu0 %1716
      %v1718 = vsel %vm780, %v1715, %v1717
      %v1719 = vsel %vm780, %v1713, %v1715
      %v1720 = vsel %vm780, %v1717, %v1713
      %1721 = vst [vmem:[#allocation2 + $0x120] sm:$0xff] %v1720
      %1722 = vst [vmem:[#allocation2 + $0x128] sm:$0xff] %v1719
      %1723 = vst [vmem:[#allocation2 + $0x130] sm:$0xff] %v1718
      %1724 = vst [vmem:[#allocation2 + $0x138] sm:$0xff] %v1571
      %1725 = vst [vmem:[#allocation2 + $0x140] sm:$0xff] %v1572
      %1726 = vst [vmem:[#allocation2 + $0x148] sm:$0xff] %v1573
      %1727 = vrot.lane.b32.xlu0 %v1571, 127
      %v1728 = vpop.permute.xlu0 %1727
      %1729 = vrot.lane.b32.xlu0 %v1572, 127
      %v1730 = vpop.permute.xlu0 %1729
      %1731 = vrot.lane.b32.xlu0 %v1573, 127
      %v1732 = vpop.permute.xlu0 %1731
      %v1733 = vsel %vm796, %v1730, %v1732
      %v1734 = vsel %vm796, %v1728, %v1730
      %v1735 = vsel %vm796, %v1732, %v1728
      %1736 = vst [vmem:[#allocation2 + $0x150] sm:$0xff] %v1734
      %1737 = vst [vmem:[#allocation2 + $0x158] sm:$0xff] %v1733
      %1738 = vst [vmem:[#allocation2 + $0x160] sm:$0xff] %v1735
      %1739 = vrot.lane.b32.xlu0 %v1571, 111
      %v1740 = vpop.permute.xlu0 %1739
      %1741 = vrot.lane.b32.xlu0 %v1572, 111
      %v1742 = vpop.permute.xlu0 %1741
      %1743 = vrot.lane.b32.xlu0 %v1573, 111
      %v1744 = vpop.permute.xlu0 %1743
      %v1745 = vsel %vm809, %v1742, %v1744
      %v1746 = vsel %vm809, %v1740, %v1742
      %v1747 = vsel %vm809, %v1744, %v1740
      %1748 = vst [vmem:[#allocation2 + $0x168] sm:$0xff] %v1746
      %1749 = vst [vmem:[#allocation2 + $0x170] sm:$0xff] %v1745
      %1750 = vst [vmem:[#allocation2 + $0x178] sm:$0xff] %v1747
      %1751 = vrot.lane.b32.xlu0 %v1571, 110
      %v1752 = vpop.permute.xlu0 %1751
      %1753 = vrot.lane.b32.xlu0 %v1572, 110
      %v1754 = vpop.permute.xlu0 %1753
      %1755 = vrot.lane.b32.xlu0 %v1573, 110
      %v1756 = vpop.permute.xlu0 %1755
      %v1757 = vsel %vm822, %v1754, %v1756
      %v1758 = vsel %vm822, %v1752, %v1754
      %v1759 = vsel %vm822, %v1756, %v1752
      %1760 = vst [vmem:[#allocation2 + $0x180] sm:$0xff] %v1758
      %1761 = vst [vmem:[#allocation2 + $0x188] sm:$0xff] %v1757
      %1762 = vst [vmem:[#allocation2 + $0x190] sm:$0xff] %v1759
      %1763 = vrot.lane.b32.xlu0 %v1571, 109
      %v1764 = vpop.permute.xlu0 %1763
      %1765 = vrot.lane.b32.xlu0 %v1572, 109
      %v1766 = vpop.permute.xlu0 %1765
      %1767 = vrot.lane.b32.xlu0 %v1573, 109
      %v1768 = vpop.permute.xlu0 %1767
      %v1769 = vsel %vm835, %v1766, %v1768
      %v1770 = vsel %vm835, %v1764, %v1766
      %v1771 = vsel %vm835, %v1768, %v1764
      %1772 = vst [vmem:[#allocation2 + $0x198] sm:$0xff] %v1770
      %1773 = vst [vmem:[#allocation2 + $0x1a0] sm:$0xff] %v1769
      %1774 = vst [vmem:[#allocation2 + $0x1a8] sm:$0xff] %v1771
      %v1775 = vld [vmem:[#allocation2] sm:$0xff]
      %v1776 = vld [vmem:[#allocation2 + $0x8] sm:$0xff]
      %v1777 = vld [vmem:[#allocation2 + $0x10] sm:$0xff]
      %v1778 = vld [vmem:[#allocation2 + $0x18] sm:$0xff]
      %v1779 = vld [vmem:[#allocation2 + $0x20] sm:$0xff]
      %v1780 = vld [vmem:[#allocation2 + $0x28] sm:$0xff]
      %v1781 = vld [vmem:[#allocation2 + $0x30] sm:$0xff]
      %v1782 = vld [vmem:[#allocation2 + $0x38] sm:$0xff]
      %v1783 = vld [vmem:[#allocation2 + $0x40] sm:$0xff]
      %v1784 = vld [vmem:[#allocation2 + $0x48] sm:$0xff]
      %v1785 = vld [vmem:[#allocation2 + $0x50] sm:$0xff]
      %v1786 = vld [vmem:[#allocation2 + $0x58] sm:$0xff]
      %v1787 = vld [vmem:[#allocation2 + $0x60] sm:$0xff]
      %v1788 = vld [vmem:[#allocation2 + $0x68] sm:$0xff]
      %v1789 = vld [vmem:[#allocation2 + $0x70] sm:$0xff]
      %v1790 = vld [vmem:[#allocation2 + $0x78] sm:$0xff]
      %v1791 = vld [vmem:[#allocation2 + $0x80] sm:$0xff]
      %v1792 = vld [vmem:[#allocation2 + $0x88] sm:$0xff]
      %v1793 = vld [vmem:[#allocation2 + $0x90] sm:$0xff]
      %v1794 = vld [vmem:[#allocation2 + $0x98] sm:$0xff]
      %v1795 = vld [vmem:[#allocation2 + $0xa0] sm:$0xff]
      %v1796 = vld [vmem:[#allocation2 + $0xa8] sm:$0xff]
      %v1797 = vld [vmem:[#allocation2 + $0xb0] sm:$0xff]
      %v1798 = vld [vmem:[#allocation2 + $0xb8] sm:$0xff]
      %v1799 = vld [vmem:[#allocation2 + $0xc0] sm:$0xff]
      %v1800 = vld [vmem:[#allocation2 + $0xc8] sm:$0xff]
      %v1801 = vld [vmem:[#allocation2 + $0xd0] sm:$0xff]
      %v1802 = vld [vmem:[#allocation2 + $0xd8] sm:$0xff]
      %v1803 = vld [vmem:[#allocation2 + $0xe0] sm:$0xff]
      %v1804 = vld [vmem:[#allocation2 + $0xe8] sm:$0xff]
      %v1805 = vld [vmem:[#allocation2 + $0xf0] sm:$0xff]
      %v1806 = vld [vmem:[#allocation2 + $0xf8] sm:$0xff]
      %v1807 = vld [vmem:[#allocation2 + $0x100] sm:$0xff]
      %v1808 = vld [vmem:[#allocation2 + $0x108] sm:$0xff]
      %v1809 = vld [vmem:[#allocation2 + $0x110] sm:$0xff]
      %v1810 = vld [vmem:[#allocation2 + $0x118] sm:$0xff]
      %v1811 = vld [vmem:[#allocation2 + $0x120] sm:$0xff]
      %v1812 = vld [vmem:[#allocation2 + $0x128] sm:$0xff]
      %v1813 = vld [vmem:[#allocation2 + $0x130] sm:$0xff]
      %v1814 = vld [vmem:[#allocation2 + $0x138] sm:$0xff]
      %v1815 = vld [vmem:[#allocation2 + $0x140] sm:$0xff]
      %v1816 = vld [vmem:[#allocation2 + $0x148] sm:$0xff]
      %v1817 = vld [vmem:[#allocation2 + $0x150] sm:$0xff]
      %v1818 = vld [vmem:[#allocation2 + $0x158] sm:$0xff]
      %v1819 = vld [vmem:[#allocation2 + $0x160] sm:$0xff]
      %v1820 = vld [vmem:[#allocation2 + $0x168] sm:$0xff]
      %v1821 = vld [vmem:[#allocation2 + $0x170] sm:$0xff]
      %v1822 = vld [vmem:[#allocation2 + $0x178] sm:$0xff]
      %v1823 = vld [vmem:[#allocation2 + $0x180] sm:$0xff]
      %v1824 = vld [vmem:[#allocation2 + $0x188] sm:$0xff]
      %v1825 = vld [vmem:[#allocation2 + $0x190] sm:$0xff]
      %v1826 = vld [vmem:[#allocation2 + $0x198] sm:$0xff]
      %v1827 = vld [vmem:[#allocation2 + $0x1a0] sm:$0xff]
      %v1828 = vld [vmem:[#allocation2 + $0x1a8] sm:$0xff]
      %1830 = vset.pattern.permute.xlu0 0
      %1831 = vperm.xlu0 %1830, %v1576
      %v1832 = vpop.permute.xlu0 %1831
      %vm1834 = vcmask 130048
      %v1836 = vsel %vm1834, %v1575, 0
      %1838 = vmatpush.msra.mxu0 %v1820
      %1839 = vmatpush.msra.mxu0 %v1817
      %1840 = vmatpush.msra.mxu0 %v1814
      %1841 = vmatpush.msra.mxu0 %v1811
      %1842 = vmatpush.msra.mxu0 %v1808
      %1843 = vmatpush.msra.mxu0 %v1805
      %1844 = vmatpush.msra.mxu0 %v1802
      %1845 = vmatpush.msra.mxu0 %v1799
      %1846 = vmatpush.msra.mxu0 %v1796
      %1847 = vmatpush.msra.mxu0 %v1793
      %1848 = vmatpush.msra.mxu0 %v1790
      %1849 = vmatpush.msra.mxu0 %v1787
      %1850 = vmatpush.msra.mxu0 %v1784
      %1851 = vmatpush.msra.mxu0 %v1781
      %1852 = vmatpush.msra.mxu0 %v1778
      %1853 = vmatpush.msra.mxu0 %v1775
      %1854 = vmatmul.f32.gmra.mxu0 %v1574
      %v1855 = vpop.f32.mrf.mxu0
      %v1856 = vadd.f32 %v1832, %v1855
      %1857 = vdwg.mxu0
      %1858 = vmatpush.msra.mxu0 0.0
      %1859 = vmatpush.msra.mxu0 0.0
      %1860 = vmatpush.msra.mxu0 0.0
      %1861 = vmatpush.msra.mxu0 0.0
      %1862 = vmatpush.msra.mxu0 0.0
      %1863 = vmatpush.msra.mxu0 0.0
      %1864 = vmatpush.msra.mxu0 0.0
      %1865 = vmatpush.msra.mxu0 0.0
      %1866 = vmatpush.msra.mxu0 0.0
      %1867 = vmatpush.msra.mxu0 0.0
      %1868 = vmatpush.msra.mxu0 0.0
      %1869 = vmatpush.msra.mxu0 0.0
      %1870 = vmatpush.msra.mxu0 0.0
      %1871 = vmatpush.msra.mxu0 0.0
      %1872 = vmatpush.msra.mxu0 %v1826
      %1873 = vmatpush.msra.mxu0 %v1823
      %1874 = vmatmul.f32.gmra.mxu0 %v1836
      %v1875 = vpop.f32.mrf.mxu0
      %v1876 = vadd.f32 %v1856, %v1875
      %1877 = vdwg.mxu0
      %1878 = vmatpush.msra.mxu0 %v1821
      %1879 = vmatpush.msra.mxu0 %v1818
      %1880 = vmatpush.msra.mxu0 %v1815
      %1881 = vmatpush.msra.mxu0 %v1812
      %1882 = vmatpush.msra.mxu0 %v1809
      %1883 = vmatpush.msra.mxu0 %v1806
      %1884 = vmatpush.msra.mxu0 %v1803
      %1885 = vmatpush.msra.mxu0 %v1800
      %1886 = vmatpush.msra.mxu0 %v1797
      %1887 = vmatpush.msra.mxu0 %v1794
      %1888 = vmatpush.msra.mxu0 %v1791
      %1889 = vmatpush.msra.mxu0 %v1788
      %1890 = vmatpush.msra.mxu0 %v1785
      %1891 = vmatpush.msra.mxu0 %v1782
      %1892 = vmatpush.msra.mxu0 %v1779
      %1893 = vmatpush.msra.mxu0 %v1776
      %1894 = vmatmul.f32.gmra.mxu0 %v1574
      %v1895 = vpop.f32.mrf.mxu0
      %v1896 = vadd.f32 %v1832, %v1895
      %1897 = vdwg.mxu0
      %1898 = vmatpush.msra.mxu0 0.0
      %1899 = vmatpush.msra.mxu0 0.0
      %1900 = vmatpush.msra.mxu0 0.0
      %1901 = vmatpush.msra.mxu0 0.0
      %1902 = vmatpush.msra.mxu0 0.0
      %1903 = vmatpush.msra.mxu0 0.0
      %1904 = vmatpush.msra.mxu0 0.0
      %1905 = vmatpush.msra.mxu0 0.0
      %1906 = vmatpush.msra.mxu0 0.0
      %1907 = vmatpush.msra.mxu0 0.0
      %1908 = vmatpush.msra.mxu0 0.0
      %1909 = vmatpush.msra.mxu0 0.0
      %1910 = vmatpush.msra.mxu0 0.0
      %1911 = vmatpush.msra.mxu0 0.0
      %1912 = vmatpush.msra.mxu0 %v1827
      %1913 = vmatpush.msra.mxu0 %v1824
      %1914 = vmatmul.f32.gmra.mxu0 %v1836
      %v1915 = vpop.f32.mrf.mxu0
      %v1916 = vadd.f32 %v1896, %v1915
      %1917 = vdwg.mxu0
      %1918 = vmatpush.msra.mxu0 %v1822
      %1919 = vmatpush.msra.mxu0 %v1819
      %1920 = vmatpush.msra.mxu0 %v1816
      %1921 = vmatpush.msra.mxu0 %v1813
      %1922 = vmatpush.msra.mxu0 %v1810
      %1923 = vmatpush.msra.mxu0 %v1807
      %1924 = vmatpush.msra.mxu0 %v1804
      %1925 = vmatpush.msra.mxu0 %v1801
      %1926 = vmatpush.msra.mxu0 %v1798
      %1927 = vmatpush.msra.mxu0 %v1795
      %1928 = vmatpush.msra.mxu0 %v1792
      %1929 = vmatpush.msra.mxu0 %v1789
      %1930 = vmatpush.msra.mxu0 %v1786
      %1931 = vmatpush.msra.mxu0 %v1783
      %1932 = vmatpush.msra.mxu0 %v1780
      %1933 = vmatpush.msra.mxu0 %v1777
      %1934 = vmatmul.f32.gmra.mxu0 %v1574
      %v1935 = vpop.f32.mrf.mxu0
      %v1936 = vadd.f32 %v1832, %v1935
      %1937 = vdwg.mxu0
      %1938 = vmatpush.msra.mxu0 0.0
      %1939 = vmatpush.msra.mxu0 0.0
      %1940 = vmatpush.msra.mxu0 0.0
      %1941 = vmatpush.msra.mxu0 0.0
      %1942 = vmatpush.msra.mxu0 0.0
      %1943 = vmatpush.msra.mxu0 0.0
      %1944 = vmatpush.msra.mxu0 0.0
      %1945 = vmatpush.msra.mxu0 0.0
      %1946 = vmatpush.msra.mxu0 0.0
      %1947 = vmatpush.msra.mxu0 0.0
      %1948 = vmatpush.msra.mxu0 0.0
      %1949 = vmatpush.msra.mxu0 0.0
      %1950 = vmatpush.msra.mxu0 0.0
      %1951 = vmatpush.msra.mxu0 0.0
      %1952 = vmatpush.msra.mxu0 %v1828
      %1953 = vmatpush.msra.mxu0 %v1825
      %1954 = vmatmul.f32.gmra.mxu0 %v1836
      %v1955 = vpop.f32.mrf.mxu0
      %v1956 = vadd.f32 %v1936, %v1955
      %1957 = vdwg.mxu0
      %v1958 = vmul.f32 %v1876, %v719
      %v1959 = vmul.f32 %v1916, %v720
      %v1960 = vmul.f32 %v1956, %v721
      %v1961 = vld [vmem:[%s13] sm:$0xff]
      %v1962 = vld [vmem:[%s14] sm:$0x1]
      %v1963 = vld [vmem:[%s15] sm:$0xff]
      %v1964 = vld [vmem:[%s16] sm:$0xff]
      %v1965 = vadd.f32 %v1958, %v1959
      %v1966 = vadd.f32 %v1965, %v1960
      %1967 = vadd.xlane.f32.xlu0 %v1966
      %v1968 = vpop.xlane.xlu0 %1967
      %v1969 = vmul.f32 %v1968, 0.00390625
      %v1970 = vmul.f32 %v1961, %v1969
      %vm1971 = vcmask 15360
      %v1972 = vsel %vm1971, %v1970, 0.0
      %v1973 = vrot.slane %v1972, 4
      %v1974 = vadd.f32 %v1972, %v1973
      %v1975 = vrot.slane %v1974, 2
      %v1976 = vadd.f32 %v1974, %v1975
      %v1977 = vrot.slane %v1976, 1
      %v1978 = vadd.f32 %v1976, %v1977
      %v1979 = vadd.f32 %v1978, %v1962
      %v1980 = vmax.f32 %v1979, 0.0
      %v1981 = vperm.slane %v1980, 0
      %v1982 = vmul.f32 %v1963, %v1981
      %v1983 = vsel %vm1971, %v1982, 0.0
      %1984 = vadd.xlane.f32.xlu0 %v1983
      %v1985 = vpop.xlane.xlu0 %1984
      %v1986 = vadd.f32 %v1985, %v1964
      %v1987 = vand.u32 2147483647, %v1986
      %v1988 = vsub.f32 0.0, %v1987
      %v1989 = vmul.f32 %v1988, 1.442695
      %v1990 = vpow.pop %v1989
      %vm1991 = vcmp.ge.f32.partialorder %v1986, 0.0
      %v1992 = vadd.f32 %v1990, 1.0
      %v1993 = vrcp.pop %v1992
      %v1994 = vmul.f32 %v1992, %v1993
      %v1995 = vsub.f32 1.0, %v1994
      %v1996 = vmul.f32 %v1993, %v1995
      %v1997 = vadd.f32 %v1993, %v1996
      %vm1998 = vweird.f32 %v1992
      %vm1999 = vweird.f32 %v1993
      %vm2000 = vmor %vm1998, %vm1999
      %v2001 = vsel %vm2000, %v1993, %v1997
      %v2002 = vand.u32 2147483647, %v1992
      %vm2003 = vcmp.eq.f32.partialorder %v2002, 8.507059e+37
      %v2004 = vand.u32 %v1992, 2147483648
      %v2005 = vor.u32 1.1754944e-38, %v2004
      %v2006 = vsel %vm2003, %v2005, %v2001
      %v2007 = vmul.f32 1.0, %v2006
      %v2008 = vmul.f32 %v1990, %v2006
      %v2009 = vsel %vm1991, %v2007, %v2008
      %2011 = vset.pattern.permute.xlu0 0
      %2012 = vperm.xlu0 %2011, %v2009
      %v2013 = vpop.permute.xlu0 %2012
      %v2015 = vmul.f32 %v1958, %v2013
      %v2016 = vmul.f32 %v1959, %v2013
      %v2017 = vmul.f32 %v1960, %v2013
      %v2018 = vld [vmem:[%s17] sm:$0xff]
      %v2019 = vld [vmem:[%s18] sm:$0x1]
      %v2020 = vld [vmem:[%s19] sm:$0xff]
      %v2021 = vld [vmem:[%s20] sm:$0xff]
      %v2022 = vadd.f32 %v1553, %v1554
      %v2023 = vadd.f32 %v2022, %v1555
      %2024 = vadd.xlane.f32.xlu0 %v2023
      %v2025 = vpop.xlane.xlu0 %2024
      %v2026 = vmul.f32 %v2025, 0.00390625
      %v2027 = vmul.f32 %v2018, %v2026
      %v2028 = vsel %vm1971, %v2027, 0.0
      %v2029 = vrot.slane %v2028, 4
      %v2030 = vadd.f32 %v2028, %v2029
      %v2031 = vrot.slane %v2030, 2
      %v2032 = vadd.f32 %v2030, %v2031
      %v2033 = vrot.slane %v2032, 1
      %v2034 = vadd.f32 %v2032, %v2033
      %v2035 = vadd.f32 %v2034, %v2019
      %v2036 = vmax.f32 %v2035, 0.0
      %v2037 = vperm.slane %v2036, 0
      %v2038 = vmul.f32 %v2020, %v2037
      %v2039 = vsel %vm1971, %v2038, 0.0
      %2040 = vadd.xlane.f32.xlu0 %v2039
      %v2041 = vpop.xlane.xlu0 %2040
      %v2042 = vadd.f32 %v2041, %v2021
      %v2043 = vand.u32 2147483647, %v2042
      %v2044 = vsub.f32 0.0, %v2043
      %v2045 = vmul.f32 %v2044, 1.442695
      %v2046 = vpow.pop %v2045
      %vm2047 = vcmp.ge.f32.partialorder %v2042, 0.0
      %v2048 = vadd.f32 %v2046, 1.0
      %v2049 = vrcp.pop %v2048
      %v2050 = vmul.f32 %v2048, %v2049
      %v2051 = vsub.f32 1.0, %v2050
      %v2052 = vmul.f32 %v2049, %v2051
      %v2053 = vadd.f32 %v2049, %v2052
      %vm2054 = vweird.f32 %v2048
      %vm2055 = vweird.f32 %v2049
      %vm2056 = vmor %vm2054, %vm2055
      %v2057 = vsel %vm2056, %v2049, %v2053
      %v2058 = vand.u32 2147483647, %v2048
      %vm2059 = vcmp.eq.f32.partialorder %v2058, 8.507059e+37
      %v2060 = vand.u32 %v2048, 2147483648
      %v2061 = vor.u32 1.1754944e-38, %v2060
      %v2062 = vsel %vm2059, %v2061, %v2057
      %v2063 = vmul.f32 1.0, %v2062
      %v2064 = vmul.f32 %v2046, %v2062
      %v2065 = vsel %vm2047, %v2063, %v2064
      %2067 = vset.pattern.permute.xlu0 0
      %2068 = vperm.xlu0 %2067, %v2065
      %v2069 = vpop.permute.xlu0 %2068
      %v2071 = vmul.f32 %v1553, %v2069
      %v2072 = vmul.f32 %v1554, %v2069
      %v2073 = vmul.f32 %v1555, %v2069
      %v2074 = vadd.f32 %v725, %v2015
      %v2075 = vadd.f32 %v726, %v2016
      %v2076 = vadd.f32 %v727, %v2017
      %v2077 = vadd.f32 %v728, %v2071
      %v2078 = vadd.f32 %v729, %v2072
      %v2079 = vadd.f32 %v730, %v2073
      %s2080 = scalar_lea.vmem %s3, 8
      %v2081 = vld [vmem:[%s2080] sm:$0xff]
      %s2082 = scalar_lea.vmem %s4, 8
      %v2083 = vld [vmem:[%s2082] sm:$0xff]
      %2084 = vrot.lane.b32.xlu0 %v2074, 19
      %v2085 = vpop.permute.xlu0 %2084
      %2086 = vrot.lane.b32.xlu0 %v2075, 19
      %v2087 = vpop.permute.xlu0 %2086
      %2088 = vrot.lane.b32.xlu0 %v2076, 19
      %v2089 = vpop.permute.xlu0 %2088
      %v2090 = vsel %vm741, %v2087, %v2089
      %v2091 = vsel %vm741, %v2085, %v2087
      %v2092 = vsel %vm741, %v2089, %v2085
      %2093 = vst [vmem:[#allocation2] sm:$0xff] %v2092
      %2094 = vst [vmem:[#allocation2 + $0x8] sm:$0xff] %v2091
      %2095 = vst [vmem:[#allocation2 + $0x10] sm:$0xff] %v2090
      %2096 = vrot.lane.b32.xlu0 %v2074, 18
      %v2097 = vpop.permute.xlu0 %2096
      %2098 = vrot.lane.b32.xlu0 %v2075, 18
      %v2099 = vpop.permute.xlu0 %2098
      %2100 = vrot.lane.b32.xlu0 %v2076, 18
      %v2101 = vpop.permute.xlu0 %2100
      %v2102 = vsel %vm754, %v2099, %v2101
      %v2103 = vsel %vm754, %v2097, %v2099
      %v2104 = vsel %vm754, %v2101, %v2097
      %2105 = vst [vmem:[#allocation2 + $0x18] sm:$0xff] %v2104
      %2106 = vst [vmem:[#allocation2 + $0x20] sm:$0xff] %v2103
      %2107 = vst [vmem:[#allocation2 + $0x28] sm:$0xff] %v2102
      %2108 = vrot.lane.b32.xlu0 %v2074, 17
      %v2109 = vpop.permute.xlu0 %2108
      %2110 = vrot.lane.b32.xlu0 %v2075, 17
      %v2111 = vpop.permute.xlu0 %2110
      %2112 = vrot.lane.b32.xlu0 %v2076, 17
      %v2113 = vpop.permute.xlu0 %2112
      %v2114 = vsel %vm767, %v2111, %v2113
      %v2115 = vsel %vm767, %v2109, %v2111
      %v2116 = vsel %vm767, %v2113, %v2109
      %2117 = vst [vmem:[#allocation2 + $0x30] sm:$0xff] %v2116
      %2118 = vst [vmem:[#allocation2 + $0x38] sm:$0xff] %v2115
      %2119 = vst [vmem:[#allocation2 + $0x40] sm:$0xff] %v2114
      %2120 = vrot.lane.b32.xlu0 %v2074, 1
      %v2121 = vpop.permute.xlu0 %2120
      %2122 = vrot.lane.b32.xlu0 %v2075, 1
      %v2123 = vpop.permute.xlu0 %2122
      %2124 = vrot.lane.b32.xlu0 %v2076, 1
      %v2125 = vpop.permute.xlu0 %2124
      %v2126 = vsel %vm780, %v2123, %v2125
      %v2127 = vsel %vm780, %v2121, %v2123
      %v2128 = vsel %vm780, %v2125, %v2121
      %2129 = vst [vmem:[#allocation2 + $0x48] sm:$0xff] %v2128
      %2130 = vst [vmem:[#allocation2 + $0x50] sm:$0xff] %v2127
      %2131 = vst [vmem:[#allocation2 + $0x58] sm:$0xff] %v2126
      %2132 = vst [vmem:[#allocation2 + $0x60] sm:$0xff] %v2074
      %2133 = vst [vmem:[#allocation2 + $0x68] sm:$0xff] %v2075
      %2134 = vst [vmem:[#allocation2 + $0x70] sm:$0xff] %v2076
      %2135 = vrot.lane.b32.xlu0 %v2074, 127
      %v2136 = vpop.permute.xlu0 %2135
      %2137 = vrot.lane.b32.xlu0 %v2075, 127
      %v2138 = vpop.permute.xlu0 %2137
      %2139 = vrot.lane.b32.xlu0 %v2076, 127
      %v2140 = vpop.permute.xlu0 %2139
      %v2141 = vsel %vm796, %v2138, %v2140
      %v2142 = vsel %vm796, %v2136, %v2138
      %v2143 = vsel %vm796, %v2140, %v2136
      %2144 = vst [vmem:[#allocation2 + $0x78] sm:$0xff] %v2142
      %2145 = vst [vmem:[#allocation2 + $0x80] sm:$0xff] %v2141
      %2146 = vst [vmem:[#allocation2 + $0x88] sm:$0xff] %v2143
      %2147 = vrot.lane.b32.xlu0 %v2074, 111
      %v2148 = vpop.permute.xlu0 %2147
      %2149 = vrot.lane.b32.xlu0 %v2075, 111
      %v2150 = vpop.permute.xlu0 %2149
      %2151 = vrot.lane.b32.xlu0 %v2076, 111
      %v2152 = vpop.permute.xlu0 %2151
      %v2153 = vsel %vm809, %v2150, %v2152
      %v2154 = vsel %vm809, %v2148, %v2150
      %v2155 = vsel %vm809, %v2152, %v2148
      %2156 = vst [vmem:[#allocation2 + $0x90] sm:$0xff] %v2154
      %2157 = vst [vmem:[#allocation2 + $0x98] sm:$0xff] %v2153
      %2158 = vst [vmem:[#allocation2 + $0xa0] sm:$0xff] %v2155
      %2159 = vrot.lane.b32.xlu0 %v2074, 110
      %v2160 = vpop.permute.xlu0 %2159
      %2161 = vrot.lane.b32.xlu0 %v2075, 110
      %v2162 = vpop.permute.xlu0 %2161
      %2163 = vrot.lane.b32.xlu0 %v2076, 110
      %v2164 = vpop.permute.xlu0 %2163
      %v2165 = vsel %vm822, %v2162, %v2164
      %v2166 = vsel %vm822, %v2160, %v2162
      %v2167 = vsel %vm822, %v2164, %v2160
      %2168 = vst [vmem:[#allocation2 + $0xa8] sm:$0xff] %v2166
      %2169 = vst [vmem:[#allocation2 + $0xb0] sm:$0xff] %v2165
      %2170 = vst [vmem:[#allocation2 + $0xb8] sm:$0xff] %v2167
      %2171 = vrot.lane.b32.xlu0 %v2074, 109
      %v2172 = vpop.permute.xlu0 %2171
      %2173 = vrot.lane.b32.xlu0 %v2075, 109
      %v2174 = vpop.permute.xlu0 %2173
      %2175 = vrot.lane.b32.xlu0 %v2076, 109
      %v2176 = vpop.permute.xlu0 %2175
      %v2177 = vsel %vm835, %v2174, %v2176
      %v2178 = vsel %vm835, %v2172, %v2174
      %v2179 = vsel %vm835, %v2176, %v2172
      %2180 = vst [vmem:[#allocation2 + $0xc0] sm:$0xff] %v2178
      %2181 = vst [vmem:[#allocation2 + $0xc8] sm:$0xff] %v2177
      %2182 = vst [vmem:[#allocation2 + $0xd0] sm:$0xff] %v2179
      %v2183 = vld [vmem:[#allocation2] sm:$0xff]
      %v2184 = vld [vmem:[#allocation2 + $0x8] sm:$0xff]
      %v2185 = vld [vmem:[#allocation2 + $0x10] sm:$0xff]
      %v2186 = vld [vmem:[#allocation2 + $0x18] sm:$0xff]
      %v2187 = vld [vmem:[#allocation2 + $0x20] sm:$0xff]
      %v2188 = vld [vmem:[#allocation2 + $0x28] sm:$0xff]
      %v2189 = vld [vmem:[#allocation2 + $0x30] sm:$0xff]
      %v2190 = vld [vmem:[#allocation2 + $0x38] sm:$0xff]
      %v2191 = vld [vmem:[#allocation2 + $0x40] sm:$0xff]
      %v2192 = vld [vmem:[#allocation2 + $0x48] sm:$0xff]
      %v2193 = vld [vmem:[#allocation2 + $0x50] sm:$0xff]
      %v2194 = vld [vmem:[#allocation2 + $0x58] sm:$0xff]
      %v2195 = vld [vmem:[#allocation2 + $0x60] sm:$0xff]
      %v2196 = vld [vmem:[#allocation2 + $0x68] sm:$0xff]
      %v2197 = vld [vmem:[#allocation2 + $0x70] sm:$0xff]
      %v2198 = vld [vmem:[#allocation2 + $0x78] sm:$0xff]
      %v2199 = vld [vmem:[#allocation2 + $0x80] sm:$0xff]
      %v2200 = vld [vmem:[#allocation2 + $0x88] sm:$0xff]
      %v2201 = vld [vmem:[#allocation2 + $0x90] sm:$0xff]
      %v2202 = vld [vmem:[#allocation2 + $0x98] sm:$0xff]
      %v2203 = vld [vmem:[#allocation2 + $0xa0] sm:$0xff]
      %v2204 = vld [vmem:[#allocation2 + $0xa8] sm:$0xff]
      %v2205 = vld [vmem:[#allocation2 + $0xb0] sm:$0xff]
      %v2206 = vld [vmem:[#allocation2 + $0xb8] sm:$0xff]
      %v2207 = vld [vmem:[#allocation2 + $0xc0] sm:$0xff]
      %v2208 = vld [vmem:[#allocation2 + $0xc8] sm:$0xff]
      %v2209 = vld [vmem:[#allocation2 + $0xd0] sm:$0xff]
      %2211 = vset.pattern.permute.xlu0 0
      %2212 = vperm.xlu0 %2211, %v2083
      %v2213 = vpop.permute.xlu0 %2212
      %v2216 = vsel %vm874, %v2081, 0
      %2218 = vmatpush.msra.mxu0 0.0
      %2219 = vmatpush.msra.mxu0 0.0
      %2220 = vmatpush.msra.mxu0 0.0
      %2221 = vmatpush.msra.mxu0 0.0
      %2222 = vmatpush.msra.mxu0 0.0
      %2223 = vmatpush.msra.mxu0 0.0
      %2224 = vmatpush.msra.mxu0 0.0
      %2225 = vmatpush.msra.mxu0 %v2207
      %2226 = vmatpush.msra.mxu0 %v2204
      %2227 = vmatpush.msra.mxu0 %v2201
      %2228 = vmatpush.msra.mxu0 %v2198
      %2229 = vmatpush.msra.mxu0 %v2195
      %2230 = vmatpush.msra.mxu0 %v2192
      %2231 = vmatpush.msra.mxu0 %v2189
      %2232 = vmatpush.msra.mxu0 %v2186
      %2233 = vmatpush.msra.mxu0 %v2183
      %2234 = vmatmul.f32.gmra.mxu0 %v2216
      %v2235 = vpop.f32.mrf.mxu0
      %v2236 = vadd.f32 %v2213, %v2235
      %2237 = vdwg.mxu0
      %2238 = vmatpush.msra.mxu0 0.0
      %2239 = vmatpush.msra.mxu0 0.0
      %2240 = vmatpush.msra.mxu0 0.0
      %2241 = vmatpush.msra.mxu0 0.0
      %2242 = vmatpush.msra.mxu0 0.0
      %2243 = vmatpush.msra.mxu0 0.0
      %2244 = vmatpush.msra.mxu0 0.0
      %2245 = vmatpush.msra.mxu0 %v2208
      %2246 = vmatpush.msra.mxu0 %v2205
      %2247 = vmatpush.msra.mxu0 %v2202
      %2248 = vmatpush.msra.mxu0 %v2199
      %2249 = vmatpush.msra.mxu0 %v2196
      %2250 = vmatpush.msra.mxu0 %v2193
      %2251 = vmatpush.msra.mxu0 %v2190
      %2252 = vmatpush.msra.mxu0 %v2187
      %2253 = vmatpush.msra.mxu0 %v2184
      %2254 = vmatmul.f32.gmra.mxu0 %v2216
      %v2255 = vpop.f32.mrf.mxu0
      %v2256 = vadd.f32 %v2213, %v2255
      %2257 = vdwg.mxu0
      %2258 = vmatpush.msra.mxu0 0.0
      %2259 = vmatpush.msra.mxu0 0.0
      %2260 = vmatpush.msra.mxu0 0.0
      %2261 = vmatpush.msra.mxu0 0.0
      %2262 = vmatpush.msra.mxu0 0.0
      %2263 = vmatpush.msra.mxu0 0.0
      %2264 = vmatpush.msra.mxu0 0.0
      %2265 = vmatpush.msra.mxu0 %v2209
      %2266 = vmatpush.msra.mxu0 %v2206
      %2267 = vmatpush.msra.mxu0 %v2203
      %2268 = vmatpush.msra.mxu0 %v2200
      %2269 = vmatpush.msra.mxu0 %v2197
      %2270 = vmatpush.msra.mxu0 %v2194
      %2271 = vmatpush.msra.mxu0 %v2191
      %2272 = vmatpush.msra.mxu0 %v2188
      %2273 = vmatpush.msra.mxu0 %v2185
      %2274 = vmatmul.f32.gmra.mxu0 %v2216
      %v2275 = vpop.f32.mrf.mxu0
      %v2276 = vadd.f32 %v2213, %v2275
      %2277 = vdwg.mxu0
      %v2278 = vmul.f32 %v2236, %v719
      %v2279 = vmul.f32 %v2256, %v720
      %v2280 = vmul.f32 %v2276, %v721
      %vm2281 = vcmp.ge.f32.partialorder %v2278, 0.0
      %vm2282 = vcmp.ge.f32.partialorder %v2279, 0.0
      %vm2283 = vcmp.ge.f32.partialorder %v2280, 0.0
      %v2284 = vmul.f32 %v2278, 0.1
      %v2285 = vmul.f32 %v2279, 0.1
      %v2286 = vmul.f32 %v2280, 0.1
      %v2287 = vsel %vm2281, %v2278, %v2284
      %v2288 = vsel %vm2282, %v2279, %v2285
      %v2289 = vsel %vm2283, %v2280, %v2286
      %s2290 = scalar_lea.vmem %s5, 8
      %v2291 = vld [vmem:[%s2290] sm:$0xff]
      %s2292 = scalar_lea.vmem %s6, 8
      %v2293 = vld [vmem:[%s2292] sm:$0xff]
      %2294 = vrot.lane.b32.xlu0 %v2287, 19
      %v2295 = vpop.permute.xlu0 %2294
      %2296 = vrot.lane.b32.xlu0 %v2288, 19
      %v2297 = vpop.permute.xlu0 %2296
      %2298 = vrot.lane.b32.xlu0 %v2289, 19
      %v2299 = vpop.permute.xlu0 %2298
      %v2300 = vsel %vm741, %v2297, %v2299
      %v2301 = vsel %vm741, %v2295, %v2297
      %v2302 = vsel %vm741, %v2299, %v2295
      %2303 = vst [vmem:[#allocation2] sm:$0xff] %v2302
      %2304 = vst [vmem:[#allocation2 + $0x8] sm:$0xff] %v2301
      %2305 = vst [vmem:[#allocation2 + $0x10] sm:$0xff] %v2300
      %2306 = vrot.lane.b32.xlu0 %v2287, 18
      %v2307 = vpop.permute.xlu0 %2306
      %2308 = vrot.lane.b32.xlu0 %v2288, 18
      %v2309 = vpop.permute.xlu0 %2308
      %2310 = vrot.lane.b32.xlu0 %v2289, 18
      %v2311 = vpop.permute.xlu0 %2310
      %v2312 = vsel %vm754, %v2309, %v2311
      %v2313 = vsel %vm754, %v2307, %v2309
      %v2314 = vsel %vm754, %v2311, %v2307
      %2315 = vst [vmem:[#allocation2 + $0x18] sm:$0xff] %v2314
      %2316 = vst [vmem:[#allocation2 + $0x20] sm:$0xff] %v2313
      %2317 = vst [vmem:[#allocation2 + $0x28] sm:$0xff] %v2312
      %2318 = vrot.lane.b32.xlu0 %v2287, 17
      %v2319 = vpop.permute.xlu0 %2318
      %2320 = vrot.lane.b32.xlu0 %v2288, 17
      %v2321 = vpop.permute.xlu0 %2320
      %2322 = vrot.lane.b32.xlu0 %v2289, 17
      %v2323 = vpop.permute.xlu0 %2322
      %v2324 = vsel %vm767, %v2321, %v2323
      %v2325 = vsel %vm767, %v2319, %v2321
      %v2326 = vsel %vm767, %v2323, %v2319
      %2327 = vst [vmem:[#allocation2 + $0x30] sm:$0xff] %v2326
      %2328 = vst [vmem:[#allocation2 + $0x38] sm:$0xff] %v2325
      %2329 = vst [vmem:[#allocation2 + $0x40] sm:$0xff] %v2324
      %2330 = vrot.lane.b32.xlu0 %v2287, 1
      %v2331 = vpop.permute.xlu0 %2330
      %2332 = vrot.lane.b32.xlu0 %v2288, 1
      %v2333 = vpop.permute.xlu0 %2332
      %2334 = vrot.lane.b32.xlu0 %v2289, 1
      %v2335 = vpop.permute.xlu0 %2334
      %v2336 = vsel %vm780, %v2333, %v2335
      %v2337 = vsel %vm780, %v2331, %v2333
      %v2338 = vsel %vm780, %v2335, %v2331
      %2339 = vst [vmem:[#allocation2 + $0x48] sm:$0xff] %v2338
      %2340 = vst [vmem:[#allocation2 + $0x50] sm:$0xff] %v2337
      %2341 = vst [vmem:[#allocation2 + $0x58] sm:$0xff] %v2336
      %2342 = vst [vmem:[#allocation2 + $0x60] sm:$0xff] %v2287
      %2343 = vst [vmem:[#allocation2 + $0x68] sm:$0xff] %v2288
      %2344 = vst [vmem:[#allocation2 + $0x70] sm:$0xff] %v2289
      %2345 = vrot.lane.b32.xlu0 %v2287, 127
      %v2346 = vpop.permute.xlu0 %2345
      %2347 = vrot.lane.b32.xlu0 %v2288, 127
      %v2348 = vpop.permute.xlu0 %2347
      %2349 = vrot.lane.b32.xlu0 %v2289, 127
      %v2350 = vpop.permute.xlu0 %2349
      %v2351 = vsel %vm796, %v2348, %v2350
      %v2352 = vsel %vm796, %v2346, %v2348
      %v2353 = vsel %vm796, %v2350, %v2346
      %2354 = vst [vmem:[#allocation2 + $0x78] sm:$0xff] %v2352
      %2355 = vst [vmem:[#allocation2 + $0x80] sm:$0xff] %v2351
      %2356 = vst [vmem:[#allocation2 + $0x88] sm:$0xff] %v2353
      %2357 = vrot.lane.b32.xlu0 %v2287, 111
      %v2358 = vpop.permute.xlu0 %2357
      %2359 = vrot.lane.b32.xlu0 %v2288, 111
      %v2360 = vpop.permute.xlu0 %2359
      %2361 = vrot.lane.b32.xlu0 %v2289, 111
      %v2362 = vpop.permute.xlu0 %2361
      %v2363 = vsel %vm809, %v2360, %v2362
      %v2364 = vsel %vm809, %v2358, %v2360
      %v2365 = vsel %vm809, %v2362, %v2358
      %2366 = vst [vmem:[#allocation2 + $0x90] sm:$0xff] %v2364
      %2367 = vst [vmem:[#allocation2 + $0x98] sm:$0xff] %v2363
      %2368 = vst [vmem:[#allocation2 + $0xa0] sm:$0xff] %v2365
      %2369 = vrot.lane.b32.xlu0 %v2287, 110
      %v2370 = vpop.permute.xlu0 %2369
      %2371 = vrot.lane.b32.xlu0 %v2288, 110
      %v2372 = vpop.permute.xlu0 %2371
      %2373 = vrot.lane.b32.xlu0 %v2289, 110
      %v2374 = vpop.permute.xlu0 %2373
      %v2375 = vsel %vm822, %v2372, %v2374
      %v2376 = vsel %vm822, %v2370, %v2372
      %v2377 = vsel %vm822, %v2374, %v2370
      %2378 = vst [vmem:[#allocation2 + $0xa8] sm:$0xff] %v2376
      %2379 = vst [vmem:[#allocation2 + $0xb0] sm:$0xff] %v2375
      %2380 = vst [vmem:[#allocation2 + $0xb8] sm:$0xff] %v2377
      %2381 = vrot.lane.b32.xlu0 %v2287, 109
      %v2382 = vpop.permute.xlu0 %2381
      %2383 = vrot.lane.b32.xlu0 %v2288, 109
      %v2384 = vpop.permute.xlu0 %2383
      %2385 = vrot.lane.b32.xlu0 %v2289, 109
      %v2386 = vpop.permute.xlu0 %2385
      %v2387 = vsel %vm835, %v2384, %v2386
      %v2388 = vsel %vm835, %v2382, %v2384
      %v2389 = vsel %vm835, %v2386, %v2382
      %2390 = vst [vmem:[#allocation2 + $0xc0] sm:$0xff] %v2388
      %2391 = vst [vmem:[#allocation2 + $0xc8] sm:$0xff] %v2387
      %2392 = vst [vmem:[#allocation2 + $0xd0] sm:$0xff] %v2389
      %v2393 = vld [vmem:[#allocation2] sm:$0xff]
      %v2394 = vld [vmem:[#allocation2 + $0x8] sm:$0xff]
      %v2395 = vld [vmem:[#allocation2 + $0x10] sm:$0xff]
      %v2396 = vld [vmem:[#allocation2 + $0x18] sm:$0xff]
      %v2397 = vld [vmem:[#allocation2 + $0x20] sm:$0xff]
      %v2398 = vld [vmem:[#allocation2 + $0x28] sm:$0xff]
      %v2399 = vld [vmem:[#allocation2 + $0x30] sm:$0xff]
      %v2400 = vld [vmem:[#allocation2 + $0x38] sm:$0xff]
      %v2401 = vld [vmem:[#allocation2 + $0x40] sm:$0xff]
      %v2402 = vld [vmem:[#allocation2 + $0x48] sm:$0xff]
      %v2403 = vld [vmem:[#allocation2 + $0x50] sm:$0xff]
      %v2404 = vld [vmem:[#allocation2 + $0x58] sm:$0xff]
      %v2405 = vld [vmem:[#allocation2 + $0x60] sm:$0xff]
      %v2406 = vld [vmem:[#allocation2 + $0x68] sm:$0xff]
      %v2407 = vld [vmem:[#allocation2 + $0x70] sm:$0xff]
      %v2408 = vld [vmem:[#allocation2 + $0x78] sm:$0xff]
      %v2409 = vld [vmem:[#allocation2 + $0x80] sm:$0xff]
      %v2410 = vld [vmem:[#allocation2 + $0x88] sm:$0xff]
      %v2411 = vld [vmem:[#allocation2 + $0x90] sm:$0xff]
      %v2412 = vld [vmem:[#allocation2 + $0x98] sm:$0xff]
      %v2413 = vld [vmem:[#allocation2 + $0xa0] sm:$0xff]
      %v2414 = vld [vmem:[#allocation2 + $0xa8] sm:$0xff]
      %v2415 = vld [vmem:[#allocation2 + $0xb0] sm:$0xff]
      %v2416 = vld [vmem:[#allocation2 + $0xb8] sm:$0xff]
      %v2417 = vld [vmem:[#allocation2 + $0xc0] sm:$0xff]
      %v2418 = vld [vmem:[#allocation2 + $0xc8] sm:$0xff]
      %v2419 = vld [vmem:[#allocation2 + $0xd0] sm:$0xff]
      %2421 = vset.pattern.permute.xlu0 0
      %2422 = vperm.xlu0 %2421, %v2293
      %v2423 = vpop.permute.xlu0 %2422
      %v2426 = vsel %vm874, %v2291, 0
      %2428 = vmatpush.msra.mxu0 0.0
      %2429 = vmatpush.msra.mxu0 0.0
      %2430 = vmatpush.msra.mxu0 0.0
      %2431 = vmatpush.msra.mxu0 0.0
      %2432 = vmatpush.msra.mxu0 0.0
      %2433 = vmatpush.msra.mxu0 0.0
      %2434 = vmatpush.msra.mxu0 0.0
      %2435 = vmatpush.msra.mxu0 %v2417
      %2436 = vmatpush.msra.mxu0 %v2414
      %2437 = vmatpush.msra.mxu0 %v2411
      %2438 = vmatpush.msra.mxu0 %v2408
      %2439 = vmatpush.msra.mxu0 %v2405
      %2440 = vmatpush.msra.mxu0 %v2402
      %2441 = vmatpush.msra.mxu0 %v2399
      %2442 = vmatpush.msra.mxu0 %v2396
      %2443 = vmatpush.msra.mxu0 %v2393
      %2444 = vmatmul.f32.gmra.mxu0 %v2426
      %v2445 = vpop.f32.mrf.mxu0
      %v2446 = vadd.f32 %v2423, %v2445
      %2447 = vdwg.mxu0
      %2448 = vmatpush.msra.mxu0 0.0
      %2449 = vmatpush.msra.mxu0 0.0
      %2450 = vmatpush.msra.mxu0 0.0
      %2451 = vmatpush.msra.mxu0 0.0
      %2452 = vmatpush.msra.mxu0 0.0
      %2453 = vmatpush.msra.mxu0 0.0
      %2454 = vmatpush.msra.mxu0 0.0
      %2455 = vmatpush.msra.mxu0 %v2418
      %2456 = vmatpush.msra.mxu0 %v2415
      %2457 = vmatpush.msra.mxu0 %v2412
      %2458 = vmatpush.msra.mxu0 %v2409
      %2459 = vmatpush.msra.mxu0 %v2406
      %2460 = vmatpush.msra.mxu0 %v2403
      %2461 = vmatpush.msra.mxu0 %v2400
      %2462 = vmatpush.msra.mxu0 %v2397
      %2463 = vmatpush.msra.mxu0 %v2394
      %2464 = vmatmul.f32.gmra.mxu0 %v2426
      %v2465 = vpop.f32.mrf.mxu0
      %v2466 = vadd.f32 %v2423, %v2465
      %2467 = vdwg.mxu0
      %2468 = vmatpush.msra.mxu0 0.0
      %2469 = vmatpush.msra.mxu0 0.0
      %2470 = vmatpush.msra.mxu0 0.0
      %2471 = vmatpush.msra.mxu0 0.0
      %2472 = vmatpush.msra.mxu0 0.0
      %2473 = vmatpush.msra.mxu0 0.0
      %2474 = vmatpush.msra.mxu0 0.0
      %2475 = vmatpush.msra.mxu0 %v2419
      %2476 = vmatpush.msra.mxu0 %v2416
      %2477 = vmatpush.msra.mxu0 %v2413
      %2478 = vmatpush.msra.mxu0 %v2410
      %2479 = vmatpush.msra.mxu0 %v2407
      %2480 = vmatpush.msra.mxu0 %v2404
      %2481 = vmatpush.msra.mxu0 %v2401
      %2482 = vmatpush.msra.mxu0 %v2398
      %2483 = vmatpush.msra.mxu0 %v2395
      %2484 = vmatmul.f32.gmra.mxu0 %v2426
      %v2485 = vpop.f32.mrf.mxu0
      %v2486 = vadd.f32 %v2423, %v2485
      %2487 = vdwg.mxu0
      %v2488 = vmul.f32 %v2446, %v719
      %v2489 = vmul.f32 %v2466, %v720
      %v2490 = vmul.f32 %v2486, %v721
      %s2491 = scalar_lea.vmem %s7, 8
      %v2492 = vld [vmem:[%s2491] sm:$0xff]
      %s2493 = scalar_lea.vmem %s8, 8
      %v2494 = vld [vmem:[%s2493] sm:$0xff]
      %2495 = vrot.lane.b32.xlu0 %v2077, 19
      %v2496 = vpop.permute.xlu0 %2495
      %2497 = vrot.lane.b32.xlu0 %v2078, 19
      %v2498 = vpop.permute.xlu0 %2497
      %2499 = vrot.lane.b32.xlu0 %v2079, 19
      %v2500 = vpop.permute.xlu0 %2499
      %v2501 = vsel %vm741, %v2498, %v2500
      %v2502 = vsel %vm741, %v2496, %v2498
      %v2503 = vsel %vm741, %v2500, %v2496
      %2504 = vst [vmem:[#allocation2] sm:$0xff] %v2503
      %2505 = vst [vmem:[#allocation2 + $0x8] sm:$0xff] %v2502
      %2506 = vst [vmem:[#allocation2 + $0x10] sm:$0xff] %v2501
      %2507 = vrot.lane.b32.xlu0 %v2077, 18
      %v2508 = vpop.permute.xlu0 %2507
      %2509 = vrot.lane.b32.xlu0 %v2078, 18
      %v2510 = vpop.permute.xlu0 %2509
      %2511 = vrot.lane.b32.xlu0 %v2079, 18
      %v2512 = vpop.permute.xlu0 %2511
      %v2513 = vsel %vm754, %v2510, %v2512
      %v2514 = vsel %vm754, %v2508, %v2510
      %v2515 = vsel %vm754, %v2512, %v2508
      %2516 = vst [vmem:[#allocation2 + $0x18] sm:$0xff] %v2515
      %2517 = vst [vmem:[#allocation2 + $0x20] sm:$0xff] %v2514
      %2518 = vst [vmem:[#allocation2 + $0x28] sm:$0xff] %v2513
      %2519 = vrot.lane.b32.xlu0 %v2077, 17
      %v2520 = vpop.permute.xlu0 %2519
      %2521 = vrot.lane.b32.xlu0 %v2078, 17
      %v2522 = vpop.permute.xlu0 %2521
      %2523 = vrot.lane.b32.xlu0 %v2079, 17
      %v2524 = vpop.permute.xlu0 %2523
      %v2525 = vsel %vm767, %v2522, %v2524
      %v2526 = vsel %vm767, %v2520, %v2522
      %v2527 = vsel %vm767, %v2524, %v2520
      %2528 = vst [vmem:[#allocation2 + $0x30] sm:$0xff] %v2527
      %2529 = vst [vmem:[#allocation2 + $0x38] sm:$0xff] %v2526
      %2530 = vst [vmem:[#allocation2 + $0x40] sm:$0xff] %v2525
      %2531 = vrot.lane.b32.xlu0 %v2077, 1
      %v2532 = vpop.permute.xlu0 %2531
      %2533 = vrot.lane.b32.xlu0 %v2078, 1
      %v2534 = vpop.permute.xlu0 %2533
      %2535 = vrot.lane.b32.xlu0 %v2079, 1
      %v2536 = vpop.permute.xlu0 %2535
      %v2537 = vsel %vm780, %v2534, %v2536
      %v2538 = vsel %vm780, %v2532, %v2534
      %v2539 = vsel %vm780, %v2536, %v2532
      %2540 = vst [vmem:[#allocation2 + $0x48] sm:$0xff] %v2539
      %2541 = vst [vmem:[#allocation2 + $0x50] sm:$0xff] %v2538
      %2542 = vst [vmem:[#allocation2 + $0x58] sm:$0xff] %v2537
      %2543 = vst [vmem:[#allocation2 + $0x60] sm:$0xff] %v2077
      %2544 = vst [vmem:[#allocation2 + $0x68] sm:$0xff] %v2078
      %2545 = vst [vmem:[#allocation2 + $0x70] sm:$0xff] %v2079
      %2546 = vrot.lane.b32.xlu0 %v2077, 127
      %v2547 = vpop.permute.xlu0 %2546
      %2548 = vrot.lane.b32.xlu0 %v2078, 127
      %v2549 = vpop.permute.xlu0 %2548
      %2550 = vrot.lane.b32.xlu0 %v2079, 127
      %v2551 = vpop.permute.xlu0 %2550
      %v2552 = vsel %vm796, %v2549, %v2551
      %v2553 = vsel %vm796, %v2547, %v2549
      %v2554 = vsel %vm796, %v2551, %v2547
      %2555 = vst [vmem:[#allocation2 + $0x78] sm:$0xff] %v2553
      %2556 = vst [vmem:[#allocation2 + $0x80] sm:$0xff] %v2552
      %2557 = vst [vmem:[#allocation2 + $0x88] sm:$0xff] %v2554
      %2558 = vrot.lane.b32.xlu0 %v2077, 111
      %v2559 = vpop.permute.xlu0 %2558
      %2560 = vrot.lane.b32.xlu0 %v2078, 111
      %v2561 = vpop.permute.xlu0 %2560
      %2562 = vrot.lane.b32.xlu0 %v2079, 111
      %v2563 = vpop.permute.xlu0 %2562
      %v2564 = vsel %vm809, %v2561, %v2563
      %v2565 = vsel %vm809, %v2559, %v2561
      %v2566 = vsel %vm809, %v2563, %v2559
      %2567 = vst [vmem:[#allocation2 + $0x90] sm:$0xff] %v2565
      %2568 = vst [vmem:[#allocation2 + $0x98] sm:$0xff] %v2564
      %2569 = vst [vmem:[#allocation2 + $0xa0] sm:$0xff] %v2566
      %2570 = vrot.lane.b32.xlu0 %v2077, 110
      %v2571 = vpop.permute.xlu0 %2570
      %2572 = vrot.lane.b32.xlu0 %v2078, 110
      %v2573 = vpop.permute.xlu0 %2572
      %2574 = vrot.lane.b32.xlu0 %v2079, 110
      %v2575 = vpop.permute.xlu0 %2574
      %v2576 = vsel %vm822, %v2573, %v2575
      %v2577 = vsel %vm822, %v2571, %v2573
      %v2578 = vsel %vm822, %v2575, %v2571
      %2579 = vst [vmem:[#allocation2 + $0xa8] sm:$0xff] %v2577
      %2580 = vst [vmem:[#allocation2 + $0xb0] sm:$0xff] %v2576
      %2581 = vst [vmem:[#allocation2 + $0xb8] sm:$0xff] %v2578
      %2582 = vrot.lane.b32.xlu0 %v2077, 109
      %v2583 = vpop.permute.xlu0 %2582
      %2584 = vrot.lane.b32.xlu0 %v2078, 109
      %v2585 = vpop.permute.xlu0 %2584
      %2586 = vrot.lane.b32.xlu0 %v2079, 109
      %v2587 = vpop.permute.xlu0 %2586
      %v2588 = vsel %vm835, %v2585, %v2587
      %v2589 = vsel %vm835, %v2583, %v2585
      %v2590 = vsel %vm835, %v2587, %v2583
      %2591 = vst [vmem:[#allocation2 + $0xc0] sm:$0xff] %v2589
      %2592 = vst [vmem:[#allocation2 + $0xc8] sm:$0xff] %v2588
      %2593 = vst [vmem:[#allocation2 + $0xd0] sm:$0xff] %v2590
      %v2594 = vld [vmem:[#allocation2] sm:$0xff]
      %v2595 = vld [vmem:[#allocation2 + $0x8] sm:$0xff]
      %v2596 = vld [vmem:[#allocation2 + $0x10] sm:$0xff]
      %v2597 = vld [vmem:[#allocation2 + $0x18] sm:$0xff]
      %v2598 = vld [vmem:[#allocation2 + $0x20] sm:$0xff]
      %v2599 = vld [vmem:[#allocation2 + $0x28] sm:$0xff]
      %v2600 = vld [vmem:[#allocation2 + $0x30] sm:$0xff]
      %v2601 = vld [vmem:[#allocation2 + $0x38] sm:$0xff]
      %v2602 = vld [vmem:[#allocation2 + $0x40] sm:$0xff]
      %v2603 = vld [vmem:[#allocation2 + $0x48] sm:$0xff]
      %v2604 = vld [vmem:[#allocation2 + $0x50] sm:$0xff]
      %v2605 = vld [vmem:[#allocation2 + $0x58] sm:$0xff]
      %v2606 = vld [vmem:[#allocation2 + $0x60] sm:$0xff]
      %v2607 = vld [vmem:[#allocation2 + $0x68] sm:$0xff]
      %v2608 = vld [vmem:[#allocation2 + $0x70] sm:$0xff]
      %v2609 = vld [vmem:[#allocation2 + $0x78] sm:$0xff]
      %v2610 = vld [vmem:[#allocation2 + $0x80] sm:$0xff]
      %v2611 = vld [vmem:[#allocation2 + $0x88] sm:$0xff]
      %v2612 = vld [vmem:[#allocation2 + $0x90] sm:$0xff]
      %v2613 = vld [vmem:[#allocation2 + $0x98] sm:$0xff]
      %v2614 = vld [vmem:[#allocation2 + $0xa0] sm:$0xff]
      %v2615 = vld [vmem:[#allocation2 + $0xa8] sm:$0xff]
      %v2616 = vld [vmem:[#allocation2 + $0xb0] sm:$0xff]
      %v2617 = vld [vmem:[#allocation2 + $0xb8] sm:$0xff]
      %v2618 = vld [vmem:[#allocation2 + $0xc0] sm:$0xff]
      %v2619 = vld [vmem:[#allocation2 + $0xc8] sm:$0xff]
      %v2620 = vld [vmem:[#allocation2 + $0xd0] sm:$0xff]
      %2622 = vset.pattern.permute.xlu0 0
      %2623 = vperm.xlu0 %2622, %v2494
      %v2624 = vpop.permute.xlu0 %2623
      %v2627 = vsel %vm874, %v2492, 0
      %2629 = vmatpush.msra.mxu0 0.0
      %2630 = vmatpush.msra.mxu0 0.0
      %2631 = vmatpush.msra.mxu0 0.0
      %2632 = vmatpush.msra.mxu0 0.0
      %2633 = vmatpush.msra.mxu0 0.0
      %2634 = vmatpush.msra.mxu0 0.0
      %2635 = vmatpush.msra.mxu0 0.0
      %2636 = vmatpush.msra.mxu0 %v2618
      %2637 = vmatpush.msra.mxu0 %v2615
      %2638 = vmatpush.msra.mxu0 %v2612
      %2639 = vmatpush.msra.mxu0 %v2609
      %2640 = vmatpush.msra.mxu0 %v2606
      %2641 = vmatpush.msra.mxu0 %v2603
      %2642 = vmatpush.msra.mxu0 %v2600
      %2643 = vmatpush.msra.mxu0 %v2597
      %2644 = vmatpush.msra.mxu0 %v2594
      %2645 = vmatmul.f32.gmra.mxu0 %v2627
      %v2646 = vpop.f32.mrf.mxu0
      %v2647 = vadd.f32 %v2624, %v2646
      %2648 = vdwg.mxu0
      %2649 = vmatpush.msra.mxu0 0.0
      %2650 = vmatpush.msra.mxu0 0.0
      %2651 = vmatpush.msra.mxu0 0.0
      %2652 = vmatpush.msra.mxu0 0.0
      %2653 = vmatpush.msra.mxu0 0.0
      %2654 = vmatpush.msra.mxu0 0.0
      %2655 = vmatpush.msra.mxu0 0.0
      %2656 = vmatpush.msra.mxu0 %v2619
      %2657 = vmatpush.msra.mxu0 %v2616
      %2658 = vmatpush.msra.mxu0 %v2613
      %2659 = vmatpush.msra.mxu0 %v2610
      %2660 = vmatpush.msra.mxu0 %v2607
      %2661 = vmatpush.msra.mxu0 %v2604
      %2662 = vmatpush.msra.mxu0 %v2601
      %2663 = vmatpush.msra.mxu0 %v2598
      %2664 = vmatpush.msra.mxu0 %v2595
      %2665 = vmatmul.f32.gmra.mxu0 %v2627
      %v2666 = vpop.f32.mrf.mxu0
      %v2667 = vadd.f32 %v2624, %v2666
      %2668 = vdwg.mxu0
      %2669 = vmatpush.msra.mxu0 0.0
      %2670 = vmatpush.msra.mxu0 0.0
      %2671 = vmatpush.msra.mxu0 0.0
      %2672 = vmatpush.msra.mxu0 0.0
      %2673 = vmatpush.msra.mxu0 0.0
      %2674 = vmatpush.msra.mxu0 0.0
      %2675 = vmatpush.msra.mxu0 0.0
      %2676 = vmatpush.msra.mxu0 %v2620
      %2677 = vmatpush.msra.mxu0 %v2617
      %2678 = vmatpush.msra.mxu0 %v2614
      %2679 = vmatpush.msra.mxu0 %v2611
      %2680 = vmatpush.msra.mxu0 %v2608
      %2681 = vmatpush.msra.mxu0 %v2605
      %2682 = vmatpush.msra.mxu0 %v2602
      %2683 = vmatpush.msra.mxu0 %v2599
      %2684 = vmatpush.msra.mxu0 %v2596
      %2685 = vmatmul.f32.gmra.mxu0 %v2627
      %v2686 = vpop.f32.mrf.mxu0
      %v2687 = vadd.f32 %v2624, %v2686
      %2688 = vdwg.mxu0
      %v2689 = vmul.f32 %v2647, %v719
      %v2690 = vmul.f32 %v2667, %v720
      %v2691 = vmul.f32 %v2687, %v721
      %vm2692 = vcmp.ge.f32.partialorder %v2689, 0.0
      %vm2693 = vcmp.ge.f32.partialorder %v2690, 0.0
      %vm2694 = vcmp.ge.f32.partialorder %v2691, 0.0
      %v2695 = vmul.f32 %v2689, 0.1
      %v2696 = vmul.f32 %v2690, 0.1
      %v2697 = vmul.f32 %v2691, 0.1
      %v2698 = vsel %vm2692, %v2689, %v2695
      %v2699 = vsel %vm2693, %v2690, %v2696
      %v2700 = vsel %vm2694, %v2691, %v2697
      %s2701 = scalar_lea.vmem %s9, 8
      %v2702 = vld [vmem:[%s2701] sm:$0xff]
      %s2703 = scalar_lea.vmem %s10, 8
      %v2704 = vld [vmem:[%s2703] sm:$0xff]
      %2705 = vrot.lane.b32.xlu0 %v2698, 19
      %v2706 = vpop.permute.xlu0 %2705
      %2707 = vrot.lane.b32.xlu0 %v2699, 19
      %v2708 = vpop.permute.xlu0 %2707
      %2709 = vrot.lane.b32.xlu0 %v2700, 19
      %v2710 = vpop.permute.xlu0 %2709
      %v2711 = vsel %vm741, %v2708, %v2710
      %v2712 = vsel %vm741, %v2706, %v2708
      %v2713 = vsel %vm741, %v2710, %v2706
      %2714 = vst [vmem:[#allocation2] sm:$0xff] %v2713
      %2715 = vst [vmem:[#allocation2 + $0x8] sm:$0xff] %v2712
      %2716 = vst [vmem:[#allocation2 + $0x10] sm:$0xff] %v2711
      %2717 = vrot.lane.b32.xlu0 %v2698, 18
      %v2718 = vpop.permute.xlu0 %2717
      %2719 = vrot.lane.b32.xlu0 %v2699, 18
      %v2720 = vpop.permute.xlu0 %2719
      %2721 = vrot.lane.b32.xlu0 %v2700, 18
      %v2722 = vpop.permute.xlu0 %2721
      %v2723 = vsel %vm754, %v2720, %v2722
      %v2724 = vsel %vm754, %v2718, %v2720
      %v2725 = vsel %vm754, %v2722, %v2718
      %2726 = vst [vmem:[#allocation2 + $0x18] sm:$0xff] %v2725
      %2727 = vst [vmem:[#allocation2 + $0x20] sm:$0xff] %v2724
      %2728 = vst [vmem:[#allocation2 + $0x28] sm:$0xff] %v2723
      %2729 = vrot.lane.b32.xlu0 %v2698, 17
      %v2730 = vpop.permute.xlu0 %2729
      %2731 = vrot.lane.b32.xlu0 %v2699, 17
      %v2732 = vpop.permute.xlu0 %2731
      %2733 = vrot.lane.b32.xlu0 %v2700, 17
      %v2734 = vpop.permute.xlu0 %2733
      %v2735 = vsel %vm767, %v2732, %v2734
      %v2736 = vsel %vm767, %v2730, %v2732
      %v2737 = vsel %vm767, %v2734, %v2730
      %2738 = vst [vmem:[#allocation2 + $0x30] sm:$0xff] %v2737
      %2739 = vst [vmem:[#allocation2 + $0x38] sm:$0xff] %v2736
      %2740 = vst [vmem:[#allocation2 + $0x40] sm:$0xff] %v2735
      %2741 = vrot.lane.b32.xlu0 %v2698, 1
      %v2742 = vpop.permute.xlu0 %2741
      %2743 = vrot.lane.b32.xlu0 %v2699, 1
      %v2744 = vpop.permute.xlu0 %2743
      %2745 = vrot.lane.b32.xlu0 %v2700, 1
      %v2746 = vpop.permute.xlu0 %2745
      %v2747 = vsel %vm780, %v2744, %v2746
      %v2748 = vsel %vm780, %v2742, %v2744
      %v2749 = vsel %vm780, %v2746, %v2742
      %2750 = vst [vmem:[#allocation2 + $0x48] sm:$0xff] %v2749
      %2751 = vst [vmem:[#allocation2 + $0x50] sm:$0xff] %v2748
      %2752 = vst [vmem:[#allocation2 + $0x58] sm:$0xff] %v2747
      %2753 = vst [vmem:[#allocation2 + $0x60] sm:$0xff] %v2698
      %2754 = vst [vmem:[#allocation2 + $0x68] sm:$0xff] %v2699
      %2755 = vst [vmem:[#allocation2 + $0x70] sm:$0xff] %v2700
      %2756 = vrot.lane.b32.xlu0 %v2698, 127
      %v2757 = vpop.permute.xlu0 %2756
      %2758 = vrot.lane.b32.xlu0 %v2699, 127
      %v2759 = vpop.permute.xlu0 %2758
      %2760 = vrot.lane.b32.xlu0 %v2700, 127
      %v2761 = vpop.permute.xlu0 %2760
      %v2762 = vsel %vm796, %v2759, %v2761
      %v2763 = vsel %vm796, %v2757, %v2759
      %v2764 = vsel %vm796, %v2761, %v2757
      %2765 = vst [vmem:[#allocation2 + $0x78] sm:$0xff] %v2763
      %2766 = vst [vmem:[#allocation2 + $0x80] sm:$0xff] %v2762
      %2767 = vst [vmem:[#allocation2 + $0x88] sm:$0xff] %v2764
      %2768 = vrot.lane.b32.xlu0 %v2698, 111
      %v2769 = vpop.permute.xlu0 %2768
      %2770 = vrot.lane.b32.xlu0 %v2699, 111
      %v2771 = vpop.permute.xlu0 %2770
      %2772 = vrot.lane.b32.xlu0 %v2700, 111
      %v2773 = vpop.permute.xlu0 %2772
      %v2774 = vsel %vm809, %v2771, %v2773
      %v2775 = vsel %vm809, %v2769, %v2771
      %v2776 = vsel %vm809, %v2773, %v2769
      %2777 = vst [vmem:[#allocation2 + $0x90] sm:$0xff] %v2775
      %2778 = vst [vmem:[#allocation2 + $0x98] sm:$0xff] %v2774
      %2779 = vst [vmem:[#allocation2 + $0xa0] sm:$0xff] %v2776
      %2780 = vrot.lane.b32.xlu0 %v2698, 110
      %v2781 = vpop.permute.xlu0 %2780
      %2782 = vrot.lane.b32.xlu0 %v2699, 110
      %v2783 = vpop.permute.xlu0 %2782
      %2784 = vrot.lane.b32.xlu0 %v2700, 110
      %v2785 = vpop.permute.xlu0 %2784
      %v2786 = vsel %vm822, %v2783, %v2785
      %v2787 = vsel %vm822, %v2781, %v2783
      %v2788 = vsel %vm822, %v2785, %v2781
      %2789 = vst [vmem:[#allocation2 + $0xa8] sm:$0xff] %v2787
      %2790 = vst [vmem:[#allocation2 + $0xb0] sm:$0xff] %v2786
      %2791 = vst [vmem:[#allocation2 + $0xb8] sm:$0xff] %v2788
      %2792 = vrot.lane.b32.xlu0 %v2698, 109
      %v2793 = vpop.permute.xlu0 %2792
      %2794 = vrot.lane.b32.xlu0 %v2699, 109
      %v2795 = vpop.permute.xlu0 %2794
      %2796 = vrot.lane.b32.xlu0 %v2700, 109
      %v2797 = vpop.permute.xlu0 %2796
      %v2798 = vsel %vm835, %v2795, %v2797
      %v2799 = vsel %vm835, %v2793, %v2795
      %v2800 = vsel %vm835, %v2797, %v2793
      %2801 = vst [vmem:[#allocation2 + $0xc0] sm:$0xff] %v2799
      %2802 = vst [vmem:[#allocation2 + $0xc8] sm:$0xff] %v2798
      %2803 = vst [vmem:[#allocation2 + $0xd0] sm:$0xff] %v2800
      %v2804 = vld [vmem:[#allocation2] sm:$0xff]
      %v2805 = vld [vmem:[#allocation2 + $0x8] sm:$0xff]
      %v2806 = vld [vmem:[#allocation2 + $0x10] sm:$0xff]
      %v2807 = vld [vmem:[#allocation2 + $0x18] sm:$0xff]
      %v2808 = vld [vmem:[#allocation2 + $0x20] sm:$0xff]
      %v2809 = vld [vmem:[#allocation2 + $0x28] sm:$0xff]
      %v2810 = vld [vmem:[#allocation2 + $0x30] sm:$0xff]
      %v2811 = vld [vmem:[#allocation2 + $0x38] sm:$0xff]
      %v2812 = vld [vmem:[#allocation2 + $0x40] sm:$0xff]
      %v2813 = vld [vmem:[#allocation2 + $0x48] sm:$0xff]
      %v2814 = vld [vmem:[#allocation2 + $0x50] sm:$0xff]
      %v2815 = vld [vmem:[#allocation2 + $0x58] sm:$0xff]
      %v2816 = vld [vmem:[#allocation2 + $0x60] sm:$0xff]
      %v2817 = vld [vmem:[#allocation2 + $0x68] sm:$0xff]
      %v2818 = vld [vmem:[#allocation2 + $0x70] sm:$0xff]
      %v2819 = vld [vmem:[#allocation2 + $0x78] sm:$0xff]
      %v2820 = vld [vmem:[#allocation2 + $0x80] sm:$0xff]
      %v2821 = vld [vmem:[#allocation2 + $0x88] sm:$0xff]
      %v2822 = vld [vmem:[#allocation2 + $0x90] sm:$0xff]
      %v2823 = vld [vmem:[#allocation2 + $0x98] sm:$0xff]
      %v2824 = vld [vmem:[#allocation2 + $0xa0] sm:$0xff]
      %v2825 = vld [vmem:[#allocation2 + $0xa8] sm:$0xff]
      %v2826 = vld [vmem:[#allocation2 + $0xb0] sm:$0xff]
      %v2827 = vld [vmem:[#allocation2 + $0xb8] sm:$0xff]
      %v2828 = vld [vmem:[#allocation2 + $0xc0] sm:$0xff]
      %v2829 = vld [vmem:[#allocation2 + $0xc8] sm:$0xff]
      %v2830 = vld [vmem:[#allocation2 + $0xd0] sm:$0xff]
      %2832 = vset.pattern.permute.xlu0 0
      %2833 = vperm.xlu0 %2832, %v2704
      %v2834 = vpop.permute.xlu0 %2833
      %v2837 = vsel %vm874, %v2702, 0
      %2839 = vmatpush.msra.mxu0 0.0
      %2840 = vmatpush.msra.mxu0 0.0
      %2841 = vmatpush.msra.mxu0 0.0
      %2842 = vmatpush.msra.mxu0 0.0
      %2843 = vmatpush.msra.mxu0 0.0
      %2844 = vmatpush.msra.mxu0 0.0
      %2845 = vmatpush.msra.mxu0 0.0
      %2846 = vmatpush.msra.mxu0 %v2828
      %2847 = vmatpush.msra.mxu0 %v2825
      %2848 = vmatpush.msra.mxu0 %v2822
      %2849 = vmatpush.msra.mxu0 %v2819
      %2850 = vmatpush.msra.mxu0 %v2816
      %2851 = vmatpush.msra.mxu0 %v2813
      %2852 = vmatpush.msra.mxu0 %v2810
      %2853 = vmatpush.msra.mxu0 %v2807
      %2854 = vmatpush.msra.mxu0 %v2804
      %2855 = vmatmul.f32.gmra.mxu0 %v2837
      %v2856 = vpop.f32.mrf.mxu0
      %v2857 = vadd.f32 %v2834, %v2856
      %2858 = vdwg.mxu0
      %2859 = vmatpush.msra.mxu0 0.0
      %2860 = vmatpush.msra.mxu0 0.0
      %2861 = vmatpush.msra.mxu0 0.0
      %2862 = vmatpush.msra.mxu0 0.0
      %2863 = vmatpush.msra.mxu0 0.0
      %2864 = vmatpush.msra.mxu0 0.0
      %2865 = vmatpush.msra.mxu0 0.0
      %2866 = vmatpush.msra.mxu0 %v2829
      %2867 = vmatpush.msra.mxu0 %v2826
      %2868 = vmatpush.msra.mxu0 %v2823
      %2869 = vmatpush.msra.mxu0 %v2820
      %2870 = vmatpush.msra.mxu0 %v2817
      %2871 = vmatpush.msra.mxu0 %v2814
      %2872 = vmatpush.msra.mxu0 %v2811
      %2873 = vmatpush.msra.mxu0 %v2808
      %2874 = vmatpush.msra.mxu0 %v2805
      %2875 = vmatmul.f32.gmra.mxu0 %v2837
      %v2876 = vpop.f32.mrf.mxu0
      %v2877 = vadd.f32 %v2834, %v2876
      %2878 = vdwg.mxu0
      %2879 = vmatpush.msra.mxu0 0.0
      %2880 = vmatpush.msra.mxu0 0.0
      %2881 = vmatpush.msra.mxu0 0.0
      %2882 = vmatpush.msra.mxu0 0.0
      %2883 = vmatpush.msra.mxu0 0.0
      %2884 = vmatpush.msra.mxu0 0.0
      %2885 = vmatpush.msra.mxu0 0.0
      %2886 = vmatpush.msra.mxu0 %v2830
      %2887 = vmatpush.msra.mxu0 %v2827
      %2888 = vmatpush.msra.mxu0 %v2824
      %2889 = vmatpush.msra.mxu0 %v2821
      %2890 = vmatpush.msra.mxu0 %v2818
      %2891 = vmatpush.msra.mxu0 %v2815
      %2892 = vmatpush.msra.mxu0 %v2812
      %2893 = vmatpush.msra.mxu0 %v2809
      %2894 = vmatpush.msra.mxu0 %v2806
      %2895 = vmatmul.f32.gmra.mxu0 %v2837
      %v2896 = vpop.f32.mrf.mxu0
      %v2897 = vadd.f32 %v2834, %v2896
      %2898 = vdwg.mxu0
      %v2899 = vmul.f32 %v2857, %v719
      %v2900 = vmul.f32 %v2877, %v720
      %v2901 = vmul.f32 %v2897, %v721
      %vm2902 = vcmp.ge.f32.partialorder %v2488, 0.0
      %vm2903 = vcmp.ge.f32.partialorder %v2489, 0.0
      %vm2904 = vcmp.ge.f32.partialorder %v2490, 0.0
      %v2905 = vmul.f32 %v2488, 0.1
      %v2906 = vmul.f32 %v2489, 0.1
      %v2907 = vmul.f32 %v2490, 0.1
      %v2908 = vsel %vm2902, %v2488, %v2905
      %v2909 = vsel %vm2903, %v2489, %v2906
      %v2910 = vsel %vm2904, %v2490, %v2907
      %vm2911 = vcmp.ge.f32.partialorder %v2899, 0.0
      %vm2912 = vcmp.ge.f32.partialorder %v2900, 0.0
      %vm2913 = vcmp.ge.f32.partialorder %v2901, 0.0
      %v2914 = vmul.f32 %v2899, 0.1
      %v2915 = vmul.f32 %v2900, 0.1
      %v2916 = vmul.f32 %v2901, 0.1
      %v2917 = vsel %vm2911, %v2899, %v2914
      %v2918 = vsel %vm2912, %v2900, %v2915
      %v2919 = vsel %vm2913, %v2901, %v2916
      %s2920 = scalar_lea.vmem %s11, 16
      %v2921 = vld [vmem:[%s2920] sm:$0xff]
      %v2922 = vld [vmem:[%s2920 + $0x8] sm:$0xff]
      %s2923 = scalar_lea.vmem %s12, 8
      %v2924 = vld [vmem:[%s2923] sm:$0xff]
      %2925 = vrot.lane.b32.xlu0 %v2908, 19
      %v2926 = vpop.permute.xlu0 %2925
      %2927 = vrot.lane.b32.xlu0 %v2909, 19
      %v2928 = vpop.permute.xlu0 %2927
      %2929 = vrot.lane.b32.xlu0 %v2910, 19
      %v2930 = vpop.permute.xlu0 %2929
      %v2931 = vsel %vm741, %v2928, %v2930
      %v2932 = vsel %vm741, %v2926, %v2928
      %v2933 = vsel %vm741, %v2930, %v2926
      %2934 = vst [vmem:[#allocation2] sm:$0xff] %v2933
      %2935 = vst [vmem:[#allocation2 + $0x8] sm:$0xff] %v2932
      %2936 = vst [vmem:[#allocation2 + $0x10] sm:$0xff] %v2931
      %2937 = vrot.lane.b32.xlu0 %v2908, 18
      %v2938 = vpop.permute.xlu0 %2937
      %2939 = vrot.lane.b32.xlu0 %v2909, 18
      %v2940 = vpop.permute.xlu0 %2939
      %2941 = vrot.lane.b32.xlu0 %v2910, 18
      %v2942 = vpop.permute.xlu0 %2941
      %v2943 = vsel %vm754, %v2940, %v2942
      %v2944 = vsel %vm754, %v2938, %v2940
      %v2945 = vsel %vm754, %v2942, %v2938
      %2946 = vst [vmem:[#allocation2 + $0x18] sm:$0xff] %v2945
      %2947 = vst [vmem:[#allocation2 + $0x20] sm:$0xff] %v2944
      %2948 = vst [vmem:[#allocation2 + $0x28] sm:$0xff] %v2943
      %2949 = vrot.lane.b32.xlu0 %v2908, 17
      %v2950 = vpop.permute.xlu0 %2949
      %2951 = vrot.lane.b32.xlu0 %v2909, 17
      %v2952 = vpop.permute.xlu0 %2951
      %2953 = vrot.lane.b32.xlu0 %v2910, 17
      %v2954 = vpop.permute.xlu0 %2953
      %v2955 = vsel %vm767, %v2952, %v2954
      %v2956 = vsel %vm767, %v2950, %v2952
      %v2957 = vsel %vm767, %v2954, %v2950
      %2958 = vst [vmem:[#allocation2 + $0x30] sm:$0xff] %v2957
      %2959 = vst [vmem:[#allocation2 + $0x38] sm:$0xff] %v2956
      %2960 = vst [vmem:[#allocation2 + $0x40] sm:$0xff] %v2955
      %2961 = vrot.lane.b32.xlu0 %v2908, 1
      %v2962 = vpop.permute.xlu0 %2961
      %2963 = vrot.lane.b32.xlu0 %v2909, 1
      %v2964 = vpop.permute.xlu0 %2963
      %2965 = vrot.lane.b32.xlu0 %v2910, 1
      %v2966 = vpop.permute.xlu0 %2965
      %v2967 = vsel %vm780, %v2964, %v2966
      %v2968 = vsel %vm780, %v2962, %v2964
      %v2969 = vsel %vm780, %v2966, %v2962
      %2970 = vst [vmem:[#allocation2 + $0x48] sm:$0xff] %v2969
      %2971 = vst [vmem:[#allocation2 + $0x50] sm:$0xff] %v2968
      %2972 = vst [vmem:[#allocation2 + $0x58] sm:$0xff] %v2967
      %2973 = vst [vmem:[#allocation2 + $0x60] sm:$0xff] %v2908
      %2974 = vst [vmem:[#allocation2 + $0x68] sm:$0xff] %v2909
      %2975 = vst [vmem:[#allocation2 + $0x70] sm:$0xff] %v2910
      %2976 = vrot.lane.b32.xlu0 %v2908, 127
      %v2977 = vpop.permute.xlu0 %2976
      %2978 = vrot.lane.b32.xlu0 %v2909, 127
      %v2979 = vpop.permute.xlu0 %2978
      %2980 = vrot.lane.b32.xlu0 %v2910, 127
      %v2981 = vpop.permute.xlu0 %2980
      %v2982 = vsel %vm796, %v2979, %v2981
      %v2983 = vsel %vm796, %v2977, %v2979
      %v2984 = vsel %vm796, %v2981, %v2977
      %2985 = vst [vmem:[#allocation2 + $0x78] sm:$0xff] %v2983
      %2986 = vst [vmem:[#allocation2 + $0x80] sm:$0xff] %v2982
      %2987 = vst [vmem:[#allocation2 + $0x88] sm:$0xff] %v2984
      %2988 = vrot.lane.b32.xlu0 %v2908, 111
      %v2989 = vpop.permute.xlu0 %2988
      %2990 = vrot.lane.b32.xlu0 %v2909, 111
      %v2991 = vpop.permute.xlu0 %2990
      %2992 = vrot.lane.b32.xlu0 %v2910, 111
      %v2993 = vpop.permute.xlu0 %2992
      %v2994 = vsel %vm809, %v2991, %v2993
      %v2995 = vsel %vm809, %v2989, %v2991
      %v2996 = vsel %vm809, %v2993, %v2989
      %2997 = vst [vmem:[#allocation2 + $0x90] sm:$0xff] %v2995
      %2998 = vst [vmem:[#allocation2 + $0x98] sm:$0xff] %v2994
      %2999 = vst [vmem:[#allocation2 + $0xa0] sm:$0xff] %v2996
      %3000 = vrot.lane.b32.xlu0 %v2908, 110
      %v3001 = vpop.permute.xlu0 %3000
      %3002 = vrot.lane.b32.xlu0 %v2909, 110
      %v3003 = vpop.permute.xlu0 %3002
      %3004 = vrot.lane.b32.xlu0 %v2910, 110
      %v3005 = vpop.permute.xlu0 %3004
      %v3006 = vsel %vm822, %v3003, %v3005
      %v3007 = vsel %vm822, %v3001, %v3003
      %v3008 = vsel %vm822, %v3005, %v3001
      %3009 = vst [vmem:[#allocation2 + $0xa8] sm:$0xff] %v3007
      %3010 = vst [vmem:[#allocation2 + $0xb0] sm:$0xff] %v3006
      %3011 = vst [vmem:[#allocation2 + $0xb8] sm:$0xff] %v3008
      %3012 = vrot.lane.b32.xlu0 %v2908, 109
      %v3013 = vpop.permute.xlu0 %3012
      %3014 = vrot.lane.b32.xlu0 %v2909, 109
      %v3015 = vpop.permute.xlu0 %3014
      %3016 = vrot.lane.b32.xlu0 %v2910, 109
      %v3017 = vpop.permute.xlu0 %3016
      %v3018 = vsel %vm835, %v3015, %v3017
      %v3019 = vsel %vm835, %v3013, %v3015
      %v3020 = vsel %vm835, %v3017, %v3013
      %3021 = vst [vmem:[#allocation2 + $0xc0] sm:$0xff] %v3019
      %3022 = vst [vmem:[#allocation2 + $0xc8] sm:$0xff] %v3018
      %3023 = vst [vmem:[#allocation2 + $0xd0] sm:$0xff] %v3020
      %3024 = vrot.lane.b32.xlu0 %v2917, 19
      %v3025 = vpop.permute.xlu0 %3024
      %3026 = vrot.lane.b32.xlu0 %v2918, 19
      %v3027 = vpop.permute.xlu0 %3026
      %3028 = vrot.lane.b32.xlu0 %v2919, 19
      %v3029 = vpop.permute.xlu0 %3028
      %v3030 = vsel %vm741, %v3027, %v3029
      %v3031 = vsel %vm741, %v3025, %v3027
      %v3032 = vsel %vm741, %v3029, %v3025
      %3033 = vst [vmem:[#allocation2 + $0xd8] sm:$0xff] %v3032
      %3034 = vst [vmem:[#allocation2 + $0xe0] sm:$0xff] %v3031
      %3035 = vst [vmem:[#allocation2 + $0xe8] sm:$0xff] %v3030
      %3036 = vrot.lane.b32.xlu0 %v2917, 18
      %v3037 = vpop.permute.xlu0 %3036
      %3038 = vrot.lane.b32.xlu0 %v2918, 18
      %v3039 = vpop.permute.xlu0 %3038
      %3040 = vrot.lane.b32.xlu0 %v2919, 18
      %v3041 = vpop.permute.xlu0 %3040
      %v3042 = vsel %vm754, %v3039, %v3041
      %v3043 = vsel %vm754, %v3037, %v3039
      %v3044 = vsel %vm754, %v3041, %v3037
      %3045 = vst [vmem:[#allocation2 + $0xf0] sm:$0xff] %v3044
      %3046 = vst [vmem:[#allocation2 + $0xf8] sm:$0xff] %v3043
      %3047 = vst [vmem:[#allocation2 + $0x100] sm:$0xff] %v3042
      %3048 = vrot.lane.b32.xlu0 %v2917, 17
      %v3049 = vpop.permute.xlu0 %3048
      %3050 = vrot.lane.b32.xlu0 %v2918, 17
      %v3051 = vpop.permute.xlu0 %3050
      %3052 = vrot.lane.b32.xlu0 %v2919, 17
      %v3053 = vpop.permute.xlu0 %3052
      %v3054 = vsel %vm767, %v3051, %v3053
      %v3055 = vsel %vm767, %v3049, %v3051
      %v3056 = vsel %vm767, %v3053, %v3049
      %3057 = vst [vmem:[#allocation2 + $0x108] sm:$0xff] %v3056
      %3058 = vst [vmem:[#allocation2 + $0x110] sm:$0xff] %v3055
      %3059 = vst [vmem:[#allocation2 + $0x118] sm:$0xff] %v3054
      %3060 = vrot.lane.b32.xlu0 %v2917, 1
      %v3061 = vpop.permute.xlu0 %3060
      %3062 = vrot.lane.b32.xlu0 %v2918, 1
      %v3063 = vpop.permute.xlu0 %3062
      %3064 = vrot.lane.b32.xlu0 %v2919, 1
      %v3065 = vpop.permute.xlu0 %3064
      %v3066 = vsel %vm780, %v3063, %v3065
      %v3067 = vsel %vm780, %v3061, %v3063
      %v3068 = vsel %vm780, %v3065, %v3061
      %3069 = vst [vmem:[#allocation2 + $0x120] sm:$0xff] %v3068
      %3070 = vst [vmem:[#allocation2 + $0x128] sm:$0xff] %v3067
      %3071 = vst [vmem:[#allocation2 + $0x130] sm:$0xff] %v3066
      %3072 = vst [vmem:[#allocation2 + $0x138] sm:$0xff] %v2917
      %3073 = vst [vmem:[#allocation2 + $0x140] sm:$0xff] %v2918
      %3074 = vst [vmem:[#allocation2 + $0x148] sm:$0xff] %v2919
      %3075 = vrot.lane.b32.xlu0 %v2917, 127
      %v3076 = vpop.permute.xlu0 %3075
      %3077 = vrot.lane.b32.xlu0 %v2918, 127
      %v3078 = vpop.permute.xlu0 %3077
      %3079 = vrot.lane.b32.xlu0 %v2919, 127
      %v3080 = vpop.permute.xlu0 %3079
      %v3081 = vsel %vm796, %v3078, %v3080
      %v3082 = vsel %vm796, %v3076, %v3078
      %v3083 = vsel %vm796, %v3080, %v3076
      %3084 = vst [vmem:[#allocation2 + $0x150] sm:$0xff] %v3082
      %3085 = vst [vmem:[#allocation2 + $0x158] sm:$0xff] %v3081
      %3086 = vst [vmem:[#allocation2 + $0x160] sm:$0xff] %v3083
      %3087 = vrot.lane.b32.xlu0 %v2917, 111
      %v3088 = vpop.permute.xlu0 %3087
      %3089 = vrot.lane.b32.xlu0 %v2918, 111
      %v3090 = vpop.permute.xlu0 %3089
      %3091 = vrot.lane.b32.xlu0 %v2919, 111
      %v3092 = vpop.permute.xlu0 %3091
      %v3093 = vsel %vm809, %v3090, %v3092
      %v3094 = vsel %vm809, %v3088, %v3090
      %v3095 = vsel %vm809, %v3092, %v3088
      %3096 = vst [vmem:[#allocation2 + $0x168] sm:$0xff] %v3094
      %3097 = vst [vmem:[#allocation2 + $0x170] sm:$0xff] %v3093
      %3098 = vst [vmem:[#allocation2 + $0x178] sm:$0xff] %v3095
      %3099 = vrot.lane.b32.xlu0 %v2917, 110
      %v3100 = vpop.permute.xlu0 %3099
      %3101 = vrot.lane.b32.xlu0 %v2918, 110
      %v3102 = vpop.permute.xlu0 %3101
      %3103 = vrot.lane.b32.xlu0 %v2919, 110
      %v3104 = vpop.permute.xlu0 %3103
      %v3105 = vsel %vm822, %v3102, %v3104
      %v3106 = vsel %vm822, %v3100, %v3102
      %v3107 = vsel %vm822, %v3104, %v3100
      %3108 = vst [vmem:[#allocation2 + $0x180] sm:$0xff] %v3106
      %3109 = vst [vmem:[#allocation2 + $0x188] sm:$0xff] %v3105
      %3110 = vst [vmem:[#allocation2 + $0x190] sm:$0xff] %v3107
      %3111 = vrot.lane.b32.xlu0 %v2917, 109
      %v3112 = vpop.permute.xlu0 %3111
      %3113 = vrot.lane.b32.xlu0 %v2918, 109
      %v3114 = vpop.permute.xlu0 %3113
      %3115 = vrot.lane.b32.xlu0 %v2919, 109
      %v3116 = vpop.permute.xlu0 %3115
      %v3117 = vsel %vm835, %v3114, %v3116
      %v3118 = vsel %vm835, %v3112, %v3114
      %v3119 = vsel %vm835, %v3116, %v3112
      %3120 = vst [vmem:[#allocation2 + $0x198] sm:$0xff] %v3118
      %3121 = vst [vmem:[#allocation2 + $0x1a0] sm:$0xff] %v3117
      %3122 = vst [vmem:[#allocation2 + $0x1a8] sm:$0xff] %v3119
      %v3123 = vld [vmem:[#allocation2] sm:$0xff]
      %v3124 = vld [vmem:[#allocation2 + $0x8] sm:$0xff]
      %v3125 = vld [vmem:[#allocation2 + $0x10] sm:$0xff]
      %v3126 = vld [vmem:[#allocation2 + $0x18] sm:$0xff]
      %v3127 = vld [vmem:[#allocation2 + $0x20] sm:$0xff]
      %v3128 = vld [vmem:[#allocation2 + $0x28] sm:$0xff]
      %v3129 = vld [vmem:[#allocation2 + $0x30] sm:$0xff]
      %v3130 = vld [vmem:[#allocation2 + $0x38] sm:$0xff]
      %v3131 = vld [vmem:[#allocation2 + $0x40] sm:$0xff]
      %v3132 = vld [vmem:[#allocation2 + $0x48] sm:$0xff]
      %v3133 = vld [vmem:[#allocation2 + $0x50] sm:$0xff]
      %v3134 = vld [vmem:[#allocation2 + $0x58] sm:$0xff]
      %v3135 = vld [vmem:[#allocation2 + $0x60] sm:$0xff]
      %v3136 = vld [vmem:[#allocation2 + $0x68] sm:$0xff]
      %v3137 = vld [vmem:[#allocation2 + $0x70] sm:$0xff]
      %v3138 = vld [vmem:[#allocation2 + $0x78] sm:$0xff]
      %v3139 = vld [vmem:[#allocation2 + $0x80] sm:$0xff]
      %v3140 = vld [vmem:[#allocation2 + $0x88] sm:$0xff]
      %v3141 = vld [vmem:[#allocation2 + $0x90] sm:$0xff]
      %v3142 = vld [vmem:[#allocation2 + $0x98] sm:$0xff]
      %v3143 = vld [vmem:[#allocation2 + $0xa0] sm:$0xff]
      %v3144 = vld [vmem:[#allocation2 + $0xa8] sm:$0xff]
      %v3145 = vld [vmem:[#allocation2 + $0xb0] sm:$0xff]
      %v3146 = vld [vmem:[#allocation2 + $0xb8] sm:$0xff]
      %v3147 = vld [vmem:[#allocation2 + $0xc0] sm:$0xff]
      %v3148 = vld [vmem:[#allocation2 + $0xc8] sm:$0xff]
      %v3149 = vld [vmem:[#allocation2 + $0xd0] sm:$0xff]
      %v3150 = vld [vmem:[#allocation2 + $0xd8] sm:$0xff]
      %v3151 = vld [vmem:[#allocation2 + $0xe0] sm:$0xff]
      %v3152 = vld [vmem:[#allocation2 + $0xe8] sm:$0xff]
      %v3153 = vld [vmem:[#allocation2 + $0xf0] sm:$0xff]
      %v3154 = vld [vmem:[#allocation2 + $0xf8] sm:$0xff]
      %v3155 = vld [vmem:[#allocation2 + $0x100] sm:$0xff]
      %v3156 = vld [vmem:[#allocation2 + $0x108] sm:$0xff]
      %v3157 = vld [vmem:[#allocation2 + $0x110] sm:$0xff]
      %v3158 = vld [vmem:[#allocation2 + $0x118] sm:$0xff]
      %v3159 = vld [vmem:[#allocation2 + $0x120] sm:$0xff]
      %v3160 = vld [vmem:[#allocation2 + $0x128] sm:$0xff]
      %v3161 = vld [vmem:[#allocation2 + $0x130] sm:$0xff]
      %v3162 = vld [vmem:[#allocation2 + $0x138] sm:$0xff]
      %v3163 = vld [vmem:[#allocation2 + $0x140] sm:$0xff]
      %v3164 = vld [vmem:[#allocation2 + $0x148] sm:$0xff]
      %v3165 = vld [vmem:[#allocation2 + $0x150] sm:$0xff]
      %v3166 = vld [vmem:[#allocation2 + $0x158] sm:$0xff]
      %v3167 = vld [vmem:[#allocation2 + $0x160] sm:$0xff]
      %v3168 = vld [vmem:[#allocation2 + $0x168] sm:$0xff]
      %v3169 = vld [vmem:[#allocation2 + $0x170] sm:$0xff]
      %v3170 = vld [vmem:[#allocation2 + $0x178] sm:$0xff]
      %v3171 = vld [vmem:[#allocation2 + $0x180] sm:$0xff]
      %v3172 = vld [vmem:[#allocation2 + $0x188] sm:$0xff]
      %v3173 = vld [vmem:[#allocation2 + $0x190] sm:$0xff]
      %v3174 = vld [vmem:[#allocation2 + $0x198] sm:$0xff]
      %v3175 = vld [vmem:[#allocation2 + $0x1a0] sm:$0xff]
      %v3176 = vld [vmem:[#allocation2 + $0x1a8] sm:$0xff]
      %3178 = vset.pattern.permute.xlu0 0
      %3179 = vperm.xlu0 %3178, %v2924
      %v3180 = vpop.permute.xlu0 %3179
      %v3183 = vsel %vm1834, %v2922, 0
      %3185 = vmatpush.msra.mxu0 %v3168
      %3186 = vmatpush.msra.mxu0 %v3165
      %3187 = vmatpush.msra.mxu0 %v3162
      %3188 = vmatpush.msra.mxu0 %v3159
      %3189 = vmatpush.msra.mxu0 %v3156
      %3190 = vmatpush.msra.mxu0 %v3153
      %3191 = vmatpush.msra.mxu0 %v3150
      %3192 = vmatpush.msra.mxu0 %v3147
      %3193 = vmatpush.msra.mxu0 %v3144
      %3194 = vmatpush.msra.mxu0 %v3141
      %3195 = vmatpush.msra.mxu0 %v3138
      %3196 = vmatpush.msra.mxu0 %v3135
      %3197 = vmatpush.msra.mxu0 %v3132
      %3198 = vmatpush.msra.mxu0 %v3129
      %3199 = vmatpush.msra.mxu0 %v3126
      %3200 = vmatpush.msra.mxu0 %v3123
      %3201 = vmatmul.f32.gmra.mxu0 %v2921
      %v3202 = vpop.f32.mrf.mxu0
      %v3203 = vadd.f32 %v3180, %v3202
      %3204 = vdwg.mxu0
      %3205 = vmatpush.msra.mxu0 0.0
      %3206 = vmatpush.msra.mxu0 0.0
      %3207 = vmatpush.msra.mxu0 0.0
      %3208 = vmatpush.msra.mxu0 0.0
      %3209 = vmatpush.msra.mxu0 0.0
      %3210 = vmatpush.msra.mxu0 0.0
      %3211 = vmatpush.msra.mxu0 0.0
      %3212 = vmatpush.msra.mxu0 0.0
      %3213 = vmatpush.msra.mxu0 0.0
      %3214 = vmatpush.msra.mxu0 0.0
      %3215 = vmatpush.msra.mxu0 0.0
      %3216 = vmatpush.msra.mxu0 0.0
      %3217 = vmatpush.msra.mxu0 0.0
      %3218 = vmatpush.msra.mxu0 0.0
      %3219 = vmatpush.msra.mxu0 %v3174
      %3220 = vmatpush.msra.mxu0 %v3171
      %3221 = vmatmul.f32.gmra.mxu0 %v3183
      %v3222 = vpop.f32.mrf.mxu0
      %v3223 = vadd.f32 %v3203, %v3222
      %3224 = vdwg.mxu0
      %3225 = vmatpush.msra.mxu0 %v3169
      %3226 = vmatpush.msra.mxu0 %v3166
      %3227 = vmatpush.msra.mxu0 %v3163
      %3228 = vmatpush.msra.mxu0 %v3160
      %3229 = vmatpush.msra.mxu0 %v3157
      %3230 = vmatpush.msra.mxu0 %v3154
      %3231 = vmatpush.msra.mxu0 %v3151
      %3232 = vmatpush.msra.mxu0 %v3148
      %3233 = vmatpush.msra.mxu0 %v3145
      %3234 = vmatpush.msra.mxu0 %v3142
      %3235 = vmatpush.msra.mxu0 %v3139
      %3236 = vmatpush.msra.mxu0 %v3136
      %3237 = vmatpush.msra.mxu0 %v3133
      %3238 = vmatpush.msra.mxu0 %v3130
      %3239 = vmatpush.msra.mxu0 %v3127
      %3240 = vmatpush.msra.mxu0 %v3124
      %3241 = vmatmul.f32.gmra.mxu0 %v2921
      %v3242 = vpop.f32.mrf.mxu0
      %v3243 = vadd.f32 %v3180, %v3242
      %3244 = vdwg.mxu0
      %3245 = vmatpush.msra.mxu0 0.0
      %3246 = vmatpush.msra.mxu0 0.0
      %3247 = vmatpush.msra.mxu0 0.0
      %3248 = vmatpush.msra.mxu0 0.0
      %3249 = vmatpush.msra.mxu0 0.0
      %3250 = vmatpush.msra.mxu0 0.0
      %3251 = vmatpush.msra.mxu0 0.0
      %3252 = vmatpush.msra.mxu0 0.0
      %3253 = vmatpush.msra.mxu0 0.0
      %3254 = vmatpush.msra.mxu0 0.0
      %3255 = vmatpush.msra.mxu0 0.0
      %3256 = vmatpush.msra.mxu0 0.0
      %3257 = vmatpush.msra.mxu0 0.0
      %3258 = vmatpush.msra.mxu0 0.0
      %3259 = vmatpush.msra.mxu0 %v3175
      %3260 = vmatpush.msra.mxu0 %v3172
      %3261 = vmatmul.f32.gmra.mxu0 %v3183
      %v3262 = vpop.f32.mrf.mxu0
      %v3263 = vadd.f32 %v3243, %v3262
      %3264 = vdwg.mxu0
      %3265 = vmatpush.msra.mxu0 %v3170
      %3266 = vmatpush.msra.mxu0 %v3167
      %3267 = vmatpush.msra.mxu0 %v3164
      %3268 = vmatpush.msra.mxu0 %v3161
      %3269 = vmatpush.msra.mxu0 %v3158
      %3270 = vmatpush.msra.mxu0 %v3155
      %3271 = vmatpush.msra.mxu0 %v3152
      %3272 = vmatpush.msra.mxu0 %v3149
      %3273 = vmatpush.msra.mxu0 %v3146
      %3274 = vmatpush.msra.mxu0 %v3143
      %3275 = vmatpush.msra.mxu0 %v3140
      %3276 = vmatpush.msra.mxu0 %v3137
      %3277 = vmatpush.msra.mxu0 %v3134
      %3278 = vmatpush.msra.mxu0 %v3131
      %3279 = vmatpush.msra.mxu0 %v3128
      %3280 = vmatpush.msra.mxu0 %v3125
      %3281 = vmatmul.f32.gmra.mxu0 %v2921
      %v3282 = vpop.f32.mrf.mxu0
      %v3283 = vadd.f32 %v3180, %v3282
      %3284 = vdwg.mxu0
      %3285 = vmatpush.msra.mxu0 0.0
      %3286 = vmatpush.msra.mxu0 0.0
      %3287 = vmatpush.msra.mxu0 0.0
      %3288 = vmatpush.msra.mxu0 0.0
      %3289 = vmatpush.msra.mxu0 0.0
      %3290 = vmatpush.msra.mxu0 0.0
      %3291 = vmatpush.msra.mxu0 0.0
      %3292 = vmatpush.msra.mxu0 0.0
      %3293 = vmatpush.msra.mxu0 0.0
      %3294 = vmatpush.msra.mxu0 0.0
      %3295 = vmatpush.msra.mxu0 0.0
      %3296 = vmatpush.msra.mxu0 0.0
      %3297 = vmatpush.msra.mxu0 0.0
      %3298 = vmatpush.msra.mxu0 0.0
      %3299 = vmatpush.msra.mxu0 %v3176
      %3300 = vmatpush.msra.mxu0 %v3173
      %3301 = vmatmul.f32.gmra.mxu0 %v3183
      %v3302 = vpop.f32.mrf.mxu0
      %v3303 = vadd.f32 %v3283, %v3302
      %3304 = vdwg.mxu0
      %v3305 = vmul.f32 %v3223, %v719
      %v3306 = vmul.f32 %v3263, %v720
      %v3307 = vmul.f32 %v3303, %v721
      %s3308 = scalar_lea.vmem %s13, 8
      %v3309 = vld [vmem:[%s3308] sm:$0xff]
      %s3310 = scalar_lea.vmem %s14, 1
      %v3311 = vld [vmem:[%s3310] sm:$0x1]
      %s3312 = scalar_lea.vmem %s15, 8
      %v3313 = vld [vmem:[%s3312] sm:$0xff]
      %s3314 = scalar_lea.vmem %s16, 8
      %v3315 = vld [vmem:[%s3314] sm:$0xff]
      %v3316 = vadd.f32 %v3305, %v3306
      %v3317 = vadd.f32 %v3316, %v3307
      %3318 = vadd.xlane.f32.xlu0 %v3317
      %v3319 = vpop.xlane.xlu0 %3318
      %v3320 = vmul.f32 %v3319, 0.00390625
      %v3321 = vmul.f32 %v3309, %v3320
      %v3322 = vsel %vm1971, %v3321, 0.0
      %v3323 = vrot.slane %v3322, 4
      %v3324 = vadd.f32 %v3322, %v3323
      %v3325 = vrot.slane %v3324, 2
      %v3326 = vadd.f32 %v3324, %v3325
      %v3327 = vrot.slane %v3326, 1
      %v3328 = vadd.f32 %v3326, %v3327
      %v3329 = vadd.f32 %v3328, %v3311
      %v3330 = vmax.f32 %v3329, 0.0
      %v3331 = vperm.slane %v3330, 0
      %v3332 = vmul.f32 %v3313, %v3331
      %v3333 = vsel %vm1971, %v3332, 0.0
      %3334 = vadd.xlane.f32.xlu0 %v3333
      %v3335 = vpop.xlane.xlu0 %3334
      %v3336 = vadd.f32 %v3335, %v3315
      %v3337 = vand.u32 2147483647, %v3336
      %v3338 = vsub.f32 0.0, %v3337
      %v3339 = vmul.f32 %v3338, 1.442695
      %v3340 = vpow.pop %v3339
      %vm3341 = vcmp.ge.f32.partialorder %v3336, 0.0
      %v3342 = vadd.f32 %v3340, 1.0
      %v3343 = vrcp.pop %v3342
      %v3344 = vmul.f32 %v3342, %v3343
      %v3345 = vsub.f32 1.0, %v3344
      %v3346 = vmul.f32 %v3343, %v3345
      %v3347 = vadd.f32 %v3343, %v3346
      %vm3348 = vweird.f32 %v3342
      %vm3349 = vweird.f32 %v3343
      %vm3350 = vmor %vm3348, %vm3349
      %v3351 = vsel %vm3350, %v3343, %v3347
      %v3352 = vand.u32 2147483647, %v3342
      %vm3353 = vcmp.eq.f32.partialorder %v3352, 8.507059e+37
      %v3354 = vand.u32 %v3342, 2147483648
      %v3355 = vor.u32 1.1754944e-38, %v3354
      %v3356 = vsel %vm3353, %v3355, %v3351
      %v3357 = vmul.f32 1.0, %v3356
      %v3358 = vmul.f32 %v3340, %v3356
      %v3359 = vsel %vm3341, %v3357, %v3358
      %3361 = vset.pattern.permute.xlu0 0
      %3362 = vperm.xlu0 %3361, %v3359
      %v3363 = vpop.permute.xlu0 %3362
      %v3365 = vmul.f32 %v3305, %v3363
      %v3366 = vmul.f32 %v3306, %v3363
      %v3367 = vmul.f32 %v3307, %v3363
      %s3368 = scalar_lea.vmem %s17, 8
      %v3369 = vld [vmem:[%s3368] sm:$0xff]
      %s3370 = scalar_lea.vmem %s18, 1
      %v3371 = vld [vmem:[%s3370] sm:$0x1]
      %s3372 = scalar_lea.vmem %s19, 8
      %v3373 = vld [vmem:[%s3372] sm:$0xff]
      %s3374 = scalar_lea.vmem %s20, 8
      %v3375 = vld [vmem:[%s3374] sm:$0xff]
      %v3376 = vadd.f32 %v2899, %v2900
      %v3377 = vadd.f32 %v3376, %v2901
      %3378 = vadd.xlane.f32.xlu0 %v3377
      %v3379 = vpop.xlane.xlu0 %3378
      %v3380 = vmul.f32 %v3379, 0.00390625
      %v3381 = vmul.f32 %v3369, %v3380
      %v3382 = vsel %vm1971, %v3381, 0.0
      %v3383 = vrot.slane %v3382, 4
      %v3384 = vadd.f32 %v3382, %v3383
      %v3385 = vrot.slane %v3384, 2
      %v3386 = vadd.f32 %v3384, %v3385
      %v3387 = vrot.slane %v3386, 1
      %v3388 = vadd.f32 %v3386, %v3387
      %v3389 = vadd.f32 %v3388, %v3371
      %v3390 = vmax.f32 %v3389, 0.0
      %v3391 = vperm.slane %v3390, 0
      %v3392 = vmul.f32 %v3373, %v3391
      %v3393 = vsel %vm1971, %v3392, 0.0
      %3394 = vadd.xlane.f32.xlu0 %v3393
      %v3395 = vpop.xlane.xlu0 %3394
      %v3396 = vadd.f32 %v3395, %v3375
      %v3397 = vand.u32 2147483647, %v3396
      %v3398 = vsub.f32 0.0, %v3397
      %v3399 = vmul.f32 %v3398, 1.442695
      %v3400 = vpow.pop %v3399
      %vm3401 = vcmp.ge.f32.partialorder %v3396, 0.0
      %v3402 = vadd.f32 %v3400, 1.0
      %v3403 = vrcp.pop %v3402
      %v3404 = vmul.f32 %v3402, %v3403
      %v3405 = vsub.f32 1.0, %v3404
      %v3406 = vmul.f32 %v3403, %v3405
      %v3407 = vadd.f32 %v3403, %v3406
      %vm3408 = vweird.f32 %v3402
      %vm3409 = vweird.f32 %v3403
      %vm3410 = vmor %vm3408, %vm3409
      %v3411 = vsel %vm3410, %v3403, %v3407
      %v3412 = vand.u32 2147483647, %v3402
      %vm3413 = vcmp.eq.f32.partialorder %v3412, 8.507059e+37
      %v3414 = vand.u32 %v3402, 2147483648
      %v3415 = vor.u32 1.1754944e-38, %v3414
      %v3416 = vsel %vm3413, %v3415, %v3411
      %v3417 = vmul.f32 1.0, %v3416
      %v3418 = vmul.f32 %v3400, %v3416
      %v3419 = vsel %vm3401, %v3417, %v3418
      %3421 = vset.pattern.permute.xlu0 0
      %3422 = vperm.xlu0 %3421, %v3419
      %v3423 = vpop.permute.xlu0 %3422
      %v3425 = vmul.f32 %v2899, %v3423
      %v3426 = vmul.f32 %v2900, %v3423
      %v3427 = vmul.f32 %v2901, %v3423
      %v3428 = vadd.f32 %v2074, %v3365
      %v3429 = vadd.f32 %v2075, %v3366
      %v3430 = vadd.f32 %v2076, %v3367
      %v3431 = vadd.f32 %v2077, %v3425
      %v3432 = vadd.f32 %v2078, %v3426
      %v3433 = vadd.f32 %v2079, %v3427
      %v3434 = vadd.f32 %v3428, %v3428
      %v3435 = vadd.f32 %v3429, %v3429
      %v3436 = vadd.f32 %v3430, %v3430
      %3437 = vst [vmem:[%s711] sm:$0xff] %v3434
      %3438 = vst [vmem:[%s711 + $0x8] sm:$0xff] %v3435
      %3439 = vst [vmem:[%s711 + $0x10] sm:$0xff] %v3436
      %v3440 = vadd.f32 %v3431, %v3431
      %v3441 = vadd.f32 %v3432, %v3432
      %v3442 = vadd.f32 %v3433, %v3433
      %3443 = vst [vmem:[%s716] sm:$0xff] %v3440
      %3444 = vst [vmem:[%s716 + $0x8] sm:$0xff] %v3441
      %3445 = vst [vmem:[%s716 + $0x10] sm:$0xff] %v3442
      %p3446 = scmp.lt.s32.totalorder %s34, 1
      %s3447 = scalar_select %p3446, %s34, 1
      %s3448 = smul.addr %s3447, 3
      %s3449 = smul.addr %s3448, 8
      %s3450 = scalar_lea.vmem %s21, %s3449
      %p3451 = scmp.lt.s32.totalorder %s34, 1
      %s3452 = scalar_select %p3451, %s34, 1
      %s3453 = smul.addr %s3452, 3
      %s3454 = smul.addr %s3453, 8
      %s3455 = scalar_lea.vmem %s22, %s3454
      // Predicated region
      $region105: #{dpcag_forward.1} parent=103 // pred_check
        %p3456 = pneg %p503
      $region106: #{dpcag_forward.1} parent=103 // pred_check_branch
        %3458 = sbr.rel (%p3456) target = $region108
      $region107: #{dpcag_forward.1} parent=103 // pred_region
        _
      $region108: #{dpcag_forward.1} parent=103 // pred_fallthru
        _
      // Predicated region
      $region109: #{dpcag_forward.1} parent=103 // pred_check
        %p3459 = pneg %p529
      $region110: #{dpcag_forward.1} parent=103 // pred_check_branch
        %3461 = sbr.rel (%p3459) target = $region112
      $region111: #{dpcag_forward.1} parent=103 // pred_region
        _
      $region112: #{dpcag_forward.1} parent=103 // pred_fallthru
        _
    $region104: #{dpcag_forward.1} parent=5 // pred_fallthru
      _
    %p3462 = scmp.le.s32.totalorder 2, %s29
    // Predicated region
    $region113: #{dpcag_forward.1} parent=5 // pred_check
      %p3463 = pneg %p3462
    $region114: #{dpcag_forward.1} parent=5 // pred_check_branch
      %3465 = sbr.rel (%p3463) target = $region116
    $region115: #{dpcag_forward.1} parent=5 // pred_region
      %s3466 = ssub.s32 %s29, 2
      // Predicated region
      $region117: #{dpcag_forward.1} parent=115 // pred_check
        %p3467 = pneg %p509
      $region118: #{dpcag_forward.1} parent=115 // pred_check_branch
        %3469 = sbr.rel (%p3467) target = $region120
      $region119: #{dpcag_forward.1} parent=115 // pred_region
        %p3470 = scmp.lt.s32.totalorder %s35, 1
        %s3471 = scalar_select %p3470, %s35, 1
        %s3472 = smul.addr %s3471, 3
        %s3473 = smul.addr %s3472, 8
        %s3474 = scalar_lea.vmem %s21, %s3473
      $region120: #{dpcag_forward.1} parent=115 // pred_fallthru
        _
      // Predicated region
      $region121: #{dpcag_forward.1} parent=115 // pred_check
        %p3475 = pneg %p535
      $region122: #{dpcag_forward.1} parent=115 // pred_check_branch
        %3477 = sbr.rel (%p3475) target = $region124
      $region123: #{dpcag_forward.1} parent=115 // pred_region
        %p3478 = scmp.lt.s32.totalorder %s35, 1
        %s3479 = scalar_select %p3478, %s35, 1
        %s3480 = smul.addr %s3479, 3
        %s3481 = smul.addr %s3480, 8
        %s3482 = scalar_lea.vmem %s22, %s3481
      $region124: #{dpcag_forward.1} parent=115 // pred_fallthru
        _
    $region116: #{dpcag_forward.1} parent=5 // pred_fallthru
      _
  $region6: #{dpcag_forward.1} parent=0 // loop_footer
    %s33 = sadd.s32 1, %s29
  $region7: #{dpcag_forward.1} parent=0 // loop_footer_branch
    %28 = sbr.rel target = $region3
  $region8: #{dpcag_forward.1} parent=0 // loop_exit
    _

</llo_original>
